<compile_context>
chip_gen: v7x
topology: tpu7x:2x2x1
jax: 0.10.0
libtpu: 0.0.40
codegen_flags: <defaults>
</compile_context>

<pallas_src>
import functools
import math

import jax
import jax.numpy as jnp
from jax.experimental import pallas as pl
from jax.experimental.pallas import tpu as pltpu

# ---------------- configuration (small synthetic sizes) ----------------
B = 2          # batch
L = 8          # sequence length
D = 32         # d_model
H = 4          # n_heads
DH = D // H    # head dim
DFF = 64       # d_ff
P = 4          # prefix length (pre_seq_len)
LK = L + P     # key/value length (prefix prepended)
NLAYERS = 2    # number of attention layers
KMA = 5        # moving_avg kernel size (odd)
EPS = 1e-5
SCALE = 1.0 / math.sqrt(DH)
DTYPE = jnp.float32

OUT_FLAT = L * D            # 256-lane dense output row per batch element
ATTN_FLAT = L * H * LK      # 384-lane dense attention row per (batch, layer)


# ---------------- in-kernel helpers ----------------
def _moving_avg_residual(x):
    """series_decomp residual on an (L, D) tile: x - AvgPool1d(replicate-pad(x), k=KMA, stride=1)."""
    pad = (KMA - 1) // 2
    front = jnp.broadcast_to(x[:1, :], (pad, x.shape[1]))
    end = jnp.broadcast_to(x[-1:, :], (pad, x.shape[1]))
    xp = jnp.concatenate([front, x, end], axis=0)          # (L + KMA - 1, D), stays in vregs/VMEM
    acc = xp[0:L, :]
    for j in range(1, KMA):                                 # static unrolled window sum
        acc = acc + xp[j:j + L, :]
    return x - acc * (1.0 / KMA)


def _flatten_rows(x):
    """(R, C) -> (1, R*C) row-major via lane-axis concat of row slices (lane-dense store layout)."""
    rows = x.shape[0]
    return jnp.concatenate([x[i:i + 1, :] for i in range(rows)], axis=1)


# ---------------- fully fused Encoder kernel ----------------
def _encoder_kernel(x_ref, pv_ref, wqkv_ref, bqkv_ref, wo_ref, bo_ref,
                    w1_ref, w2_ref, g_ref, b_ref, o_ref, a_ref):
    # One grid step == one batch element; the whole NLAYERS-deep encoder plus the final
    # my_Layernorm runs on VMEM-resident data with no intermediate HBM traffic.
    x = x_ref[0].astype(jnp.float32)                        # (L, D)

    for l in range(NLAYERS):                                # static unrolled layer loop
        # TODO(synk): exact scAuto handling of `past_value` is not in the given source; assumed
        # prefix-tuning semantics: prefix tokens are prepended to the K/V sequence.
        pv = pv_ref[l].astype(jnp.float32)                  # (P, D)
        kv_in = jnp.concatenate([pv, x], axis=0)            # (LK, D)

        # Q/K/V projections: separate dots against the (3, D, D)-laid-out weights
        # (split along a non-lane axis -> no lane-offset slicing of a fused result).
        q = jnp.dot(x, wqkv_ref[l, 0], preferred_element_type=jnp.float32) + bqkv_ref[l, 0]
        k = jnp.dot(kv_in, wqkv_ref[l, 1], preferred_element_type=jnp.float32) + bqkv_ref[l, 1]
        v = jnp.dot(kv_in, wqkv_ref[l, 2], preferred_element_type=jnp.float32) + bqkv_ref[l, 2]

        wo_l = wo_ref[l]                                    # (D, D)

        # All heads via static lane slices; output projection folded per head so the head
        # outputs never need a reshape/transpose/concat back to (L, D).
        new_x = jnp.zeros((L, D), jnp.float32)
        p_heads = []
        for h in range(H):
            lo = h * DH
            qh = q[:, lo:lo + DH]                           # (L, DH)
            kh = k[:, lo:lo + DH]                           # (LK, DH)
            vh = v[:, lo:lo + DH]                           # (LK, DH)
            s = jax.lax.dot_general(qh, kh, (((1,), (1,)), ((), ())),
                                    preferred_element_type=jnp.float32) * SCALE   # (L, LK)
            s = s - jnp.max(s, axis=-1, keepdims=True)
            e = jnp.exp(s)
            p = e / jnp.sum(e, axis=-1, keepdims=True)      # exact recip: exported probabilities
            oh = jnp.dot(p, vh, preferred_element_type=jnp.float32)               # (L, DH)
            new_x = new_x + jnp.dot(oh, wo_l[lo:lo + DH, :],
                                    preferred_element_type=jnp.float32)           # (L, D)
            p_heads.append(p)

        # output-projection bias + residual (dropout == identity at inference)
        x1 = x + new_x + bo_ref[l]

        # series_decomp #1 (keep residual part)
        x2 = _moving_avg_residual(x1)

        # FFN: Conv1d(k=1) -> ReLU -> Conv1d(k=1), no bias (as in Autoformer EncoderLayer)
        hid = jnp.maximum(jnp.dot(x2, w1_ref[l], preferred_element_type=jnp.float32), 0.0)
        y = jnp.dot(hid, w2_ref[l], preferred_element_type=jnp.float32)

        # series_decomp #2
        x = _moving_avg_residual(x2 + y)

        # lane-dense attention export: (L, H*LK) -> (1, L*H*LK) = (1, 384)
        p_cat = jnp.concatenate(p_heads, axis=1)            # (L, H*LK)
        a_ref[:, l, :] = _flatten_rows(p_cat).astype(a_ref.dtype)

    # ---- my_Layernorm: LayerNorm over D, then subtract the per-sequence mean ----
    mu = jnp.mean(x, axis=-1, keepdims=True)
    var = jnp.mean(jnp.square(x - mu), axis=-1, keepdims=True)   # biased variance (PyTorch LN)
    xhat = (x - mu) * jax.lax.rsqrt(var + EPS) * g_ref[...] + b_ref[...]
    xln = xhat - jnp.mean(xhat, axis=0, keepdims=True)

    # lane-dense main output: (L, D) -> (1, L*D) = (1, 256)
    o_ref[0] = _flatten_rows(xln).astype(o_ref.dtype)


# ---------------- Encoder forward (one pallas_call) ----------------
def encoder_forward(params, x):
    Bx, Lx, Dx = x.shape
    # PrefixEncoder.get_prompt -> per-layer past_value (NLAYERS, P, D); identical across batch.
    pv = params["prefix"].reshape(P, NLAYERS, Dx).transpose(1, 0, 2)

    out_flat, attn_flat = pl.pallas_call(
        _encoder_kernel,
        out_shape=(jax.ShapeDtypeStruct((Bx, 1, OUT_FLAT), x.dtype),
                   jax.ShapeDtypeStruct((Bx, NLAYERS, ATTN_FLAT), jnp.float32)),
        grid=(Bx,),
        in_specs=[
            pl.BlockSpec((1, Lx, Dx), lambda i: (i, 0, 0)),              # x (per batch row)
            pl.BlockSpec((NLAYERS, P, Dx), lambda i: (0, 0, 0)),         # prefix past_value
            pl.BlockSpec((NLAYERS, 3, Dx, Dx), lambda i: (0, 0, 0, 0)),  # Wq/Wk/Wv stacked
            pl.BlockSpec((NLAYERS, 3, 1, Dx), lambda i: (0, 0, 0, 0)),   # bq/bk/bv stacked
            pl.BlockSpec((NLAYERS, Dx, Dx), lambda i: (0, 0, 0)),        # Wo
            pl.BlockSpec((NLAYERS, 1, Dx), lambda i: (0, 0, 0)),         # bo
            pl.BlockSpec((NLAYERS, Dx, DFF), lambda i: (0, 0, 0)),       # conv1 (k=1, no bias)
            pl.BlockSpec((NLAYERS, DFF, Dx), lambda i: (0, 0, 0)),       # conv2 (k=1, no bias)
            pl.BlockSpec((1, Dx), lambda i: (0, 0)),                     # LN gamma
            pl.BlockSpec((1, Dx), lambda i: (0, 0)),                     # LN beta
        ],
        out_specs=(pl.BlockSpec((1, 1, OUT_FLAT), lambda i: (i, 0, 0)),
                   pl.BlockSpec((1, NLAYERS, ATTN_FLAT), lambda i: (i, 0, 0))),
        compiler_params=pltpu.CompilerParams(dimension_semantics=("parallel",)),
    )(x, pv, params["wqkv"], params["bqkv"], params["wo"], params["bo"],
      params["w1"], params["w2"], params["gamma"], params["beta"])

    out = out_flat.reshape(Bx, Lx, Dx)
    # attn rows were written (L, H, LK) row-major; restore (B, H, L, LK) per layer outside
    # the kernel (cheap XLA reshape/transpose on a tiny HBM array).
    a = attn_flat.reshape(Bx, NLAYERS, Lx, H, LK)
    attns = [jnp.transpose(a[:, l], (0, 2, 1, 3)) for l in range(NLAYERS)]
    return out, attns


# ---------------- parameters (deterministic synthetic init) ----------------
def init_params(key):
    keys = iter(jax.random.split(key, NLAYERS * 6 + 1))

    wqkv, bqkv, wo, bo, w1, w2 = [], [], [], [], [], []
    for _ in range(NLAYERS):
        wq = jax.random.normal(next(keys), (D, D), DTYPE) * 0.02   # query_projection
        wk = jax.random.normal(next(keys), (D, D), DTYPE) * 0.02   # key_projection
        wv = jax.random.normal(next(keys), (D, D), DTYPE) * 0.02   # value_projection
        wo_ = jax.random.normal(next(keys), (D, D), DTYPE) * 0.02  # out_projection
        w1_ = jax.random.normal(next(keys), (D, DFF), DTYPE) * 0.02   # conv1 (k=1, bias=False)
        w2_ = jax.random.normal(next(keys), (DFF, D), DTYPE) * 0.02   # conv2 (k=1, bias=False)
        wqkv.append(jnp.stack([wq, wk, wv], axis=0))                  # (3, D, D)
        bqkv.append(jnp.zeros((3, 1, D), DTYPE))
        wo.append(wo_)
        bo.append(jnp.zeros((1, D), DTYPE))
        w1.append(w1_)
        w2.append(w2_)

    prefix_emb = jax.random.normal(next(keys), (P, NLAYERS * D), DTYPE) * 0.02  # PrefixEncoder

    return {
        "wqkv": jnp.stack(wqkv),        # (NLAYERS, 3, D, D)
        "bqkv": jnp.stack(bqkv),        # (NLAYERS, 3, 1, D)
        "wo": jnp.stack(wo),            # (NLAYERS, D, D)
        "bo": jnp.stack(bo),            # (NLAYERS, 1, D)
        "w1": jnp.stack(w1),            # (NLAYERS, D, DFF)
        "w2": jnp.stack(w2),            # (NLAYERS, DFF, D)
        "prefix": prefix_emb,           # (P, NLAYERS * D)
        "gamma": jnp.ones((1, D), DTYPE),   # my_Layernorm LayerNorm weight
        "beta": jnp.zeros((1, D), DTYPE),   # my_Layernorm LayerNorm bias
    }


# ---------------- main ----------------
if __name__ == "__main__":
    key = jax.random.PRNGKey(0)
    pkey, xkey = jax.random.split(key)
    params = init_params(pkey)
    x = jax.random.normal(xkey, (B, L, D), DTYPE)

    fwd = jax.jit(functools.partial(encoder_forward, params))
    out, attns = fwd(x)
    out = jax.block_until_ready(out)
    for a in attns:
        jax.block_until_ready(a)

    assert out.shape == (B, L, D)
    assert len(attns) == NLAYERS and attns[0].shape == (B, H, L, LK)
    assert bool(jnp.all(jnp.isfinite(out)))
    for a in attns:
        assert bool(jnp.all(jnp.isfinite(a)))
    print("KERNEL_OK")
</pallas_src>

<mosaic_0001>
module attributes {stable_mosaic.version = 11 : i64} {
  func.func @_encoder_kernel(%arg0: i32, %arg1: memref<1x8x32xf32, #tpu.memory_space<vmem>>, %arg2: memref<2x4x32xf32, #tpu.memory_space<vmem>>, %arg3: memref<2x3x32x32xf32, #tpu.memory_space<vmem>>, %arg4: memref<2x3x1x32xf32, #tpu.memory_space<vmem>>, %arg5: memref<2x32x32xf32, #tpu.memory_space<vmem>>, %arg6: memref<2x1x32xf32, #tpu.memory_space<vmem>>, %arg7: memref<2x32x64xf32, #tpu.memory_space<vmem>>, %arg8: memref<2x64x32xf32, #tpu.memory_space<vmem>>, %arg9: memref<1x32xf32, #tpu.memory_space<vmem>>, %arg10: memref<1x32xf32, #tpu.memory_space<vmem>>, %arg11: memref<1x1x256xf32, #tpu.memory_space<vmem>>, %arg12: memref<1x2x384xf32, #tpu.memory_space<vmem>>) attributes {dimension_semantics = [#tpu.dimension_semantics<parallel>], iteration_bounds = array<i64: 2>, scalar_prefetch = 0 : i64, scratch_operands = 0 : i64, tpu.core_type = #tpu.core_type<tc>, window_params = [{transform_indices = @transform_0, window_bounds = array<i64: 1, 8, 32>}, {pipeline_mode = #tpu.pipeline_mode<synchronous>, transform_indices = @transform_1, window_bounds = array<i64: 2, 4, 32>}, {pipeline_mode = #tpu.pipeline_mode<synchronous>, transform_indices = @transform_2, window_bounds = array<i64: 2, 3, 32, 32>}, {pipeline_mode = #tpu.pipeline_mode<synchronous>, transform_indices = @transform_3, window_bounds = array<i64: 2, 3, 1, 32>}, {pipeline_mode = #tpu.pipeline_mode<synchronous>, transform_indices = @transform_4, window_bounds = array<i64: 2, 32, 32>}, {pipeline_mode = #tpu.pipeline_mode<synchronous>, transform_indices = @transform_5, window_bounds = array<i64: 2, 1, 32>}, {pipeline_mode = #tpu.pipeline_mode<synchronous>, transform_indices = @transform_6, window_bounds = array<i64: 2, 32, 64>}, {pipeline_mode = #tpu.pipeline_mode<synchronous>, transform_indices = @transform_7, window_bounds = array<i64: 2, 64, 32>}, {pipeline_mode = #tpu.pipeline_mode<synchronous>, transform_indices = @transform_8, window_bounds = array<i64: 1, 32>}, {pipeline_mode = #tpu.pipeline_mode<synchronous>, transform_indices = @transform_9, window_bounds = array<i64: 1, 32>}, {transform_indices = @transform_10, window_bounds = array<i64: 1, 1, 256>}, {transform_indices = @transform_11, window_bounds = array<i64: 1, 2, 384>}]} {
    %c0 = arith.constant 0 : index
    %c0_0 = arith.constant 0 : index
    %c0_1 = arith.constant 0 : index
    %0 = vector.load %arg1[%c0, %c0_0, %c0_1] : memref<1x8x32xf32, #tpu.memory_space<vmem>>, vector<1x8x32xf32>
    %1 = vector.shape_cast %0 : vector<1x8x32xf32> to vector<8x32xf32>
    %c0_2 = arith.constant 0 : index
    %c0_3 = arith.constant 0 : index
    %c0_4 = arith.constant 0 : index
    %2 = vector.load %arg2[%c0_2, %c0_3, %c0_4] : memref<2x4x32xf32, #tpu.memory_space<vmem>>, vector<1x4x32xf32>
    %3 = vector.shape_cast %2 : vector<1x4x32xf32> to vector<4x32xf32>
    %4 = tpu.concatenate %3, %1 in 0 : vector<4x32xf32>, vector<8x32xf32> -> vector<12x32xf32>
    %c0_5 = arith.constant 0 : index
    %c0_6 = arith.constant 0 : index
    %c0_7 = arith.constant 0 : index
    %c0_8 = arith.constant 0 : index
    %5 = vector.load %arg3[%c0_5, %c0_6, %c0_7, %c0_8] : memref<2x3x32x32xf32, #tpu.memory_space<vmem>>, vector<1x1x32x32xf32>
    %6 = vector.shape_cast %5 : vector<1x1x32x32xf32> to vector<32x32xf32>
    %cst = arith.constant dense<0.000000e+00> : vector<8x32xf32>
    %7 = tpu.matmul %1, %6, %cst {dimension_numbers = #tpu.dot_dimension_numbers<[1], [0], [0], [1], [0, 0, 1, 1], [], []>} : vector<8x32xf32>, vector<32x32xf32>, vector<8x32xf32> -> vector<8x32xf32>
    %c0_9 = arith.constant 0 : index
    %c0_10 = arith.constant 0 : index
    %c0_11 = arith.constant 0 : index
    %c0_12 = arith.constant 0 : index
    %8 = vector.load %arg4[%c0_9, %c0_10, %c0_11, %c0_12] : memref<2x3x1x32xf32, #tpu.memory_space<vmem>>, vector<1x1x1x32xf32>
    %9 = vector.shape_cast %8 : vector<1x1x1x32xf32> to vector<1x32xf32>
    %10 = vector.broadcast %9 : vector<1x32xf32> to vector<8x32xf32>
    %11 = arith.addf %7, %10 : vector<8x32xf32>
    %c0_13 = arith.constant 0 : index
    %c1 = arith.constant 1 : index
    %c0_14 = arith.constant 0 : index
    %c0_15 = arith.constant 0 : index
    %12 = vector.load %arg3[%c0_13, %c1, %c0_14, %c0_15] : memref<2x3x32x32xf32, #tpu.memory_space<vmem>>, vector<1x1x32x32xf32>
    %13 = vector.shape_cast %12 : vector<1x1x32x32xf32> to vector<32x32xf32>
    %cst_16 = arith.constant dense<0.000000e+00> : vector<12x32xf32>
    %14 = tpu.matmul %4, %13, %cst_16 {dimension_numbers = #tpu.dot_dimension_numbers<[1], [0], [0], [1], [0, 0, 1, 1], [], []>} : vector<12x32xf32>, vector<32x32xf32>, vector<12x32xf32> -> vector<12x32xf32>
    %c0_17 = arith.constant 0 : index
    %c1_18 = arith.constant 1 : index
    %c0_19 = arith.constant 0 : index
    %c0_20 = arith.constant 0 : index
    %15 = vector.load %arg4[%c0_17, %c1_18, %c0_19, %c0_20] : memref<2x3x1x32xf32, #tpu.memory_space<vmem>>, vector<1x1x1x32xf32>
    %16 = vector.shape_cast %15 : vector<1x1x1x32xf32> to vector<1x32xf32>
    %17 = vector.broadcast %16 : vector<1x32xf32> to vector<12x32xf32>
    %18 = arith.addf %14, %17 : vector<12x32xf32>
    %c0_21 = arith.constant 0 : index
    %c2 = arith.constant 2 : index
    %c0_22 = arith.constant 0 : index
    %c0_23 = arith.constant 0 : index
    %19 = vector.load %arg3[%c0_21, %c2, %c0_22, %c0_23] : memref<2x3x32x32xf32, #tpu.memory_space<vmem>>, vector<1x1x32x32xf32>
    %20 = vector.shape_cast %19 : vector<1x1x32x32xf32> to vector<32x32xf32>
    %cst_24 = arith.constant dense<0.000000e+00> : vector<12x32xf32>
    %21 = tpu.matmul %4, %20, %cst_24 {dimension_numbers = #tpu.dot_dimension_numbers<[1], [0], [0], [1], [0, 0, 1, 1], [], []>} : vector<12x32xf32>, vector<32x32xf32>, vector<12x32xf32> -> vector<12x32xf32>
    %c0_25 = arith.constant 0 : index
    %c2_26 = arith.constant 2 : index
    %c0_27 = arith.constant 0 : index
    %c0_28 = arith.constant 0 : index
    %22 = vector.load %arg4[%c0_25, %c2_26, %c0_27, %c0_28] : memref<2x3x1x32xf32, #tpu.memory_space<vmem>>, vector<1x1x1x32xf32>
    %23 = vector.shape_cast %22 : vector<1x1x1x32xf32> to vector<1x32xf32>
    %24 = vector.broadcast %23 : vector<1x32xf32> to vector<12x32xf32>
    %25 = arith.addf %21, %24 : vector<12x32xf32>
    %c0_29 = arith.constant 0 : index
    %c0_30 = arith.constant 0 : index
    %c0_31 = arith.constant 0 : index
    %26 = vector.load %arg5[%c0_29, %c0_30, %c0_31] : memref<2x32x32xf32, #tpu.memory_space<vmem>>, vector<1x32x32xf32>
    %27 = vector.shape_cast %26 : vector<1x32x32xf32> to vector<32x32xf32>
    %cst_32 = arith.constant 0.000000e+00 : f32
    %28 = vector.broadcast %cst_32 : f32 to vector<8x32xf32>
    %29 = vector.extract_strided_slice %11 {offsets = [0, 0], sizes = [8, 8], strides = [1, 1]} : vector<8x32xf32> to vector<8x8xf32>
    %30 = vector.extract_strided_slice %18 {offsets = [0, 0], sizes = [12, 8], strides = [1, 1]} : vector<12x32xf32> to vector<12x8xf32>
    %31 = vector.extract_strided_slice %25 {offsets = [0, 0], sizes = [12, 8], strides = [1, 1]} : vector<12x32xf32> to vector<12x8xf32>
    %cst_33 = arith.constant dense<0.000000e+00> : vector<8x12xf32>
    %32 = tpu.matmul %29, %30, %cst_33 {dimension_numbers = #tpu.dot_dimension_numbers<[1], [1], [0], [0], [0, 0, 1, 0], [], []>} : vector<8x8xf32>, vector<12x8xf32>, vector<8x12xf32> -> vector<8x12xf32>
    %cst_34 = arith.constant 0.353553385 : f32
    %33 = vector.broadcast %cst_34 : f32 to vector<8x12xf32>
    %34 = arith.mulf %32, %33 : vector<8x12xf32>
    %cst_35 = arith.constant dense<0xFF800000> : vector<8xf32>
    %35 = vector.multi_reduction <maximumf>, %34, %cst_35 [1] : vector<8x12xf32> to vector<8xf32>
    %36 = vector.shape_cast %35 : vector<8xf32> to vector<8x1xf32>
    %37 = vector.broadcast %36 : vector<8x1xf32> to vector<8x12xf32>
    %38 = arith.subf %34, %37 : vector<8x12xf32>
    %39 = math.exp %38 : vector<8x12xf32>
    %cst_36 = arith.constant dense<0.000000e+00> : vector<8xf32>
    %40 = vector.multi_reduction <add>, %39, %cst_36 [1] : vector<8x12xf32> to vector<8xf32>
    %41 = vector.shape_cast %40 : vector<8xf32> to vector<8x1xf32>
    %42 = vector.broadcast %41 : vector<8x1xf32> to vector<8x12xf32>
    %43 = arith.divf %39, %42 : vector<8x12xf32>
    %cst_37 = arith.constant dense<0.000000e+00> : vector<8x8xf32>
    %44 = tpu.matmul %43, %31, %cst_37 {dimension_numbers = #tpu.dot_dimension_numbers<[1], [0], [0], [1], [0, 0, 1, 1], [], []>} : vector<8x12xf32>, vector<12x8xf32>, vector<8x8xf32> -> vector<8x8xf32>
    %45 = vector.extract_strided_slice %27 {offsets = [0, 0], sizes = [8, 32], strides = [1, 1]} : vector<32x32xf32> to vector<8x32xf32>
    %cst_38 = arith.constant dense<0.000000e+00> : vector<8x32xf32>
    %46 = tpu.matmul %44, %45, %cst_38 {dimension_numbers = #tpu.dot_dimension_numbers<[1], [0], [0], [1], [0, 0, 1, 1], [], []>} : vector<8x8xf32>, vector<8x32xf32>, vector<8x32xf32> -> vector<8x32xf32>
    %47 = arith.addf %28, %46 : vector<8x32xf32>
    %48 = vector.extract_strided_slice %11 {offsets = [0, 8], sizes = [8, 8], strides = [1, 1]} : vector<8x32xf32> to vector<8x8xf32>
    %49 = vector.extract_strided_slice %18 {offsets = [0, 8], sizes = [12, 8], strides = [1, 1]} : vector<12x32xf32> to vector<12x8xf32>
    %50 = vector.extract_strided_slice %25 {offsets = [0, 8], sizes = [12, 8], strides = [1, 1]} : vector<12x32xf32> to vector<12x8xf32>
    %cst_39 = arith.constant dense<0.000000e+00> : vector<8x12xf32>
    %51 = tpu.matmul %48, %49, %cst_39 {dimension_numbers = #tpu.dot_dimension_numbers<[1], [1], [0], [0], [0, 0, 1, 0], [], []>} : vector<8x8xf32>, vector<12x8xf32>, vector<8x12xf32> -> vector<8x12xf32>
    %cst_40 = arith.constant 0.353553385 : f32
    %52 = vector.broadcast %cst_40 : f32 to vector<8x12xf32>
    %53 = arith.mulf %51, %52 : vector<8x12xf32>
    %cst_41 = arith.constant dense<0xFF800000> : vector<8xf32>
    %54 = vector.multi_reduction <maximumf>, %53, %cst_41 [1] : vector<8x12xf32> to vector<8xf32>
    %55 = vector.shape_cast %54 : vector<8xf32> to vector<8x1xf32>
    %56 = vector.broadcast %55 : vector<8x1xf32> to vector<8x12xf32>
    %57 = arith.subf %53, %56 : vector<8x12xf32>
    %58 = math.exp %57 : vector<8x12xf32>
    %cst_42 = arith.constant dense<0.000000e+00> : vector<8xf32>
    %59 = vector.multi_reduction <add>, %58, %cst_42 [1] : vector<8x12xf32> to vector<8xf32>
    %60 = vector.shape_cast %59 : vector<8xf32> to vector<8x1xf32>
    %61 = vector.broadcast %60 : vector<8x1xf32> to vector<8x12xf32>
    %62 = arith.divf %58, %61 : vector<8x12xf32>
    %cst_43 = arith.constant dense<0.000000e+00> : vector<8x8xf32>
    %63 = tpu.matmul %62, %50, %cst_43 {dimension_numbers = #tpu.dot_dimension_numbers<[1], [0], [0], [1], [0, 0, 1, 1], [], []>} : vector<8x12xf32>, vector<12x8xf32>, vector<8x8xf32> -> vector<8x8xf32>
    %64 = vector.extract_strided_slice %27 {offsets = [8, 0], sizes = [8, 32], strides = [1, 1]} : vector<32x32xf32> to vector<8x32xf32>
    %cst_44 = arith.constant dense<0.000000e+00> : vector<8x32xf32>
    %65 = tpu.matmul %63, %64, %cst_44 {dimension_numbers = #tpu.dot_dimension_numbers<[1], [0], [0], [1], [0, 0, 1, 1], [], []>} : vector<8x8xf32>, vector<8x32xf32>, vector<8x32xf32> -> vector<8x32xf32>
    %66 = arith.addf %47, %65 : vector<8x32xf32>
    %67 = vector.extract_strided_slice %11 {offsets = [0, 16], sizes = [8, 8], strides = [1, 1]} : vector<8x32xf32> to vector<8x8xf32>
    %68 = vector.extract_strided_slice %18 {offsets = [0, 16], sizes = [12, 8], strides = [1, 1]} : vector<12x32xf32> to vector<12x8xf32>
    %69 = vector.extract_strided_slice %25 {offsets = [0, 16], sizes = [12, 8], strides = [1, 1]} : vector<12x32xf32> to vector<12x8xf32>
    %cst_45 = arith.constant dense<0.000000e+00> : vector<8x12xf32>
    %70 = tpu.matmul %67, %68, %cst_45 {dimension_numbers = #tpu.dot_dimension_numbers<[1], [1], [0], [0], [0, 0, 1, 0], [], []>} : vector<8x8xf32>, vector<12x8xf32>, vector<8x12xf32> -> vector<8x12xf32>
    %cst_46 = arith.constant 0.353553385 : f32
    %71 = vector.broadcast %cst_46 : f32 to vector<8x12xf32>
    %72 = arith.mulf %70, %71 : vector<8x12xf32>
    %cst_47 = arith.constant dense<0xFF800000> : vector<8xf32>
    %73 = vector.multi_reduction <maximumf>, %72, %cst_47 [1] : vector<8x12xf32> to vector<8xf32>
    %74 = vector.shape_cast %73 : vector<8xf32> to vector<8x1xf32>
    %75 = vector.broadcast %74 : vector<8x1xf32> to vector<8x12xf32>
    %76 = arith.subf %72, %75 : vector<8x12xf32>
    %77 = math.exp %76 : vector<8x12xf32>
    %cst_48 = arith.constant dense<0.000000e+00> : vector<8xf32>
    %78 = vector.multi_reduction <add>, %77, %cst_48 [1] : vector<8x12xf32> to vector<8xf32>
    %79 = vector.shape_cast %78 : vector<8xf32> to vector<8x1xf32>
    %80 = vector.broadcast %79 : vector<8x1xf32> to vector<8x12xf32>
    %81 = arith.divf %77, %80 : vector<8x12xf32>
    %cst_49 = arith.constant dense<0.000000e+00> : vector<8x8xf32>
    %82 = tpu.matmul %81, %69, %cst_49 {dimension_numbers = #tpu.dot_dimension_numbers<[1], [0], [0], [1], [0, 0, 1, 1], [], []>} : vector<8x12xf32>, vector<12x8xf32>, vector<8x8xf32> -> vector<8x8xf32>
    %83 = vector.extract_strided_slice %27 {offsets = [16, 0], sizes = [8, 32], strides = [1, 1]} : vector<32x32xf32> to vector<8x32xf32>
    %cst_50 = arith.constant dense<0.000000e+00> : vector<8x32xf32>
    %84 = tpu.matmul %82, %83, %cst_50 {dimension_numbers = #tpu.dot_dimension_numbers<[1], [0], [0], [1], [0, 0, 1, 1], [], []>} : vector<8x8xf32>, vector<8x32xf32>, vector<8x32xf32> -> vector<8x32xf32>
    %85 = arith.addf %66, %84 : vector<8x32xf32>
    %86 = vector.extract_strided_slice %11 {offsets = [0, 24], sizes = [8, 8], strides = [1, 1]} : vector<8x32xf32> to vector<8x8xf32>
    %87 = vector.extract_strided_slice %18 {offsets = [0, 24], sizes = [12, 8], strides = [1, 1]} : vector<12x32xf32> to vector<12x8xf32>
    %88 = vector.extract_strided_slice %25 {offsets = [0, 24], sizes = [12, 8], strides = [1, 1]} : vector<12x32xf32> to vector<12x8xf32>
    %cst_51 = arith.constant dense<0.000000e+00> : vector<8x12xf32>
    %89 = tpu.matmul %86, %87, %cst_51 {dimension_numbers = #tpu.dot_dimension_numbers<[1], [1], [0], [0], [0, 0, 1, 0], [], []>} : vector<8x8xf32>, vector<12x8xf32>, vector<8x12xf32> -> vector<8x12xf32>
    %cst_52 = arith.constant 0.353553385 : f32
    %90 = vector.broadcast %cst_52 : f32 to vector<8x12xf32>
    %91 = arith.mulf %89, %90 : vector<8x12xf32>
    %cst_53 = arith.constant dense<0xFF800000> : vector<8xf32>
    %92 = vector.multi_reduction <maximumf>, %91, %cst_53 [1] : vector<8x12xf32> to vector<8xf32>
    %93 = vector.shape_cast %92 : vector<8xf32> to vector<8x1xf32>
    %94 = vector.broadcast %93 : vector<8x1xf32> to vector<8x12xf32>
    %95 = arith.subf %91, %94 : vector<8x12xf32>
    %96 = math.exp %95 : vector<8x12xf32>
    %cst_54 = arith.constant dense<0.000000e+00> : vector<8xf32>
    %97 = vector.multi_reduction <add>, %96, %cst_54 [1] : vector<8x12xf32> to vector<8xf32>
    %98 = vector.shape_cast %97 : vector<8xf32> to vector<8x1xf32>
    %99 = vector.broadcast %98 : vector<8x1xf32> to vector<8x12xf32>
    %100 = arith.divf %96, %99 : vector<8x12xf32>
    %cst_55 = arith.constant dense<0.000000e+00> : vector<8x8xf32>
    %101 = tpu.matmul %100, %88, %cst_55 {dimension_numbers = #tpu.dot_dimension_numbers<[1], [0], [0], [1], [0, 0, 1, 1], [], []>} : vector<8x12xf32>, vector<12x8xf32>, vector<8x8xf32> -> vector<8x8xf32>
    %102 = vector.extract_strided_slice %27 {offsets = [24, 0], sizes = [8, 32], strides = [1, 1]} : vector<32x32xf32> to vector<8x32xf32>
    %cst_56 = arith.constant dense<0.000000e+00> : vector<8x32xf32>
    %103 = tpu.matmul %101, %102, %cst_56 {dimension_numbers = #tpu.dot_dimension_numbers<[1], [0], [0], [1], [0, 0, 1, 1], [], []>} : vector<8x8xf32>, vector<8x32xf32>, vector<8x32xf32> -> vector<8x32xf32>
    %104 = arith.addf %85, %103 : vector<8x32xf32>
    %105 = arith.addf %1, %104 : vector<8x32xf32>
    %c0_57 = arith.constant 0 : index
    %c0_58 = arith.constant 0 : index
    %c0_59 = arith.constant 0 : index
    %106 = vector.load %arg6[%c0_57, %c0_58, %c0_59] : memref<2x1x32xf32, #tpu.memory_space<vmem>>, vector<1x1x32xf32>
    %107 = vector.shape_cast %106 : vector<1x1x32xf32> to vector<1x32xf32>
    %108 = vector.broadcast %107 : vector<1x32xf32> to vector<8x32xf32>
    %109 = arith.addf %105, %108 : vector<8x32xf32>
    %110 = vector.extract_strided_slice %109 {offsets = [0, 0], sizes = [1, 32], strides = [1, 1]} : vector<8x32xf32> to vector<1x32xf32>
    %111 = vector.shape_cast %110 : vector<1x32xf32> to vector<1x32xf32>
    %112 = vector.broadcast %111 : vector<1x32xf32> to vector<2x32xf32>
    %113 = vector.extract_strided_slice %109 {offsets = [7, 0], sizes = [1, 32], strides = [1, 1]} : vector<8x32xf32> to vector<1x32xf32>
    %114 = vector.shape_cast %113 : vector<1x32xf32> to vector<1x32xf32>
    %115 = vector.broadcast %114 : vector<1x32xf32> to vector<2x32xf32>
    %116 = tpu.concatenate %112, %109, %115 in 0 : vector<2x32xf32>, vector<8x32xf32>, vector<2x32xf32> -> vector<12x32xf32>
    %117 = vector.extract_strided_slice %116 {offsets = [0, 0], sizes = [8, 32], strides = [1, 1]} : vector<12x32xf32> to vector<8x32xf32>
    %118 = vector.extract_strided_slice %116 {offsets = [1, 0], sizes = [8, 32], strides = [1, 1]} : vector<12x32xf32> to vector<8x32xf32>
    %119 = arith.addf %117, %118 : vector<8x32xf32>
    %120 = vector.extract_strided_slice %116 {offsets = [2, 0], sizes = [8, 32], strides = [1, 1]} : vector<12x32xf32> to vector<8x32xf32>
    %121 = arith.addf %119, %120 : vector<8x32xf32>
    %122 = vector.extract_strided_slice %116 {offsets = [3, 0], sizes = [8, 32], strides = [1, 1]} : vector<12x32xf32> to vector<8x32xf32>
    %123 = arith.addf %121, %122 : vector<8x32xf32>
    %124 = vector.extract_strided_slice %116 {offsets = [4, 0], sizes = [8, 32], strides = [1, 1]} : vector<12x32xf32> to vector<8x32xf32>
    %125 = arith.addf %123, %124 : vector<8x32xf32>
    %cst_60 = arith.constant 2.000000e-01 : f32
    %126 = vector.broadcast %cst_60 : f32 to vector<8x32xf32>
    %127 = arith.mulf %125, %126 : vector<8x32xf32>
    %128 = arith.subf %109, %127 : vector<8x32xf32>
    %c0_61 = arith.constant 0 : index
    %c0_62 = arith.constant 0 : index
    %c0_63 = arith.constant 0 : index
    %129 = vector.load %arg7[%c0_61, %c0_62, %c0_63] : memref<2x32x64xf32, #tpu.memory_space<vmem>>, vector<1x32x64xf32>
    %130 = vector.shape_cast %129 : vector<1x32x64xf32> to vector<32x64xf32>
    %cst_64 = arith.constant dense<0.000000e+00> : vector<8x64xf32>
    %131 = tpu.matmul %128, %130, %cst_64 {dimension_numbers = #tpu.dot_dimension_numbers<[1], [0], [0], [1], [0, 0, 1, 1], [], []>} : vector<8x32xf32>, vector<32x64xf32>, vector<8x64xf32> -> vector<8x64xf32>
    %cst_65 = arith.constant 0.000000e+00 : f32
    %132 = vector.broadcast %cst_65 : f32 to vector<8x64xf32>
    %133 = arith.maximumf %131, %132 : vector<8x64xf32>
    %c0_66 = arith.constant 0 : index
    %c0_67 = arith.constant 0 : index
    %c0_68 = arith.constant 0 : index
    %134 = vector.load %arg8[%c0_66, %c0_67, %c0_68] : memref<2x64x32xf32, #tpu.memory_space<vmem>>, vector<1x64x32xf32>
    %135 = vector.shape_cast %134 : vector<1x64x32xf32> to vector<64x32xf32>
    %cst_69 = arith.constant dense<0.000000e+00> : vector<8x32xf32>
    %136 = tpu.matmul %133, %135, %cst_69 {dimension_numbers = #tpu.dot_dimension_numbers<[1], [0], [0], [1], [0, 0, 1, 1], [], []>} : vector<8x64xf32>, vector<64x32xf32>, vector<8x32xf32> -> vector<8x32xf32>
    %137 = arith.addf %128, %136 : vector<8x32xf32>
    %138 = vector.extract_strided_slice %137 {offsets = [0, 0], sizes = [1, 32], strides = [1, 1]} : vector<8x32xf32> to vector<1x32xf32>
    %139 = vector.shape_cast %138 : vector<1x32xf32> to vector<1x32xf32>
    %140 = vector.broadcast %139 : vector<1x32xf32> to vector<2x32xf32>
    %141 = vector.extract_strided_slice %137 {offsets = [7, 0], sizes = [1, 32], strides = [1, 1]} : vector<8x32xf32> to vector<1x32xf32>
    %142 = vector.shape_cast %141 : vector<1x32xf32> to vector<1x32xf32>
    %143 = vector.broadcast %142 : vector<1x32xf32> to vector<2x32xf32>
    %144 = tpu.concatenate %140, %137, %143 in 0 : vector<2x32xf32>, vector<8x32xf32>, vector<2x32xf32> -> vector<12x32xf32>
    %145 = vector.extract_strided_slice %144 {offsets = [0, 0], sizes = [8, 32], strides = [1, 1]} : vector<12x32xf32> to vector<8x32xf32>
    %146 = vector.extract_strided_slice %144 {offsets = [1, 0], sizes = [8, 32], strides = [1, 1]} : vector<12x32xf32> to vector<8x32xf32>
    %147 = arith.addf %145, %146 : vector<8x32xf32>
    %148 = vector.extract_strided_slice %144 {offsets = [2, 0], sizes = [8, 32], strides = [1, 1]} : vector<12x32xf32> to vector<8x32xf32>
    %149 = arith.addf %147, %148 : vector<8x32xf32>
    %150 = vector.extract_strided_slice %144 {offsets = [3, 0], sizes = [8, 32], strides = [1, 1]} : vector<12x32xf32> to vector<8x32xf32>
    %151 = arith.addf %149, %150 : vector<8x32xf32>
    %152 = vector.extract_strided_slice %144 {offsets = [4, 0], sizes = [8, 32], strides = [1, 1]} : vector<12x32xf32> to vector<8x32xf32>
    %153 = arith.addf %151, %152 : vector<8x32xf32>
    %cst_70 = arith.constant 2.000000e-01 : f32
    %154 = vector.broadcast %cst_70 : f32 to vector<8x32xf32>
    %155 = arith.mulf %153, %154 : vector<8x32xf32>
    %156 = arith.subf %137, %155 : vector<8x32xf32>
    %157 = tpu.concatenate %43, %62, %81, %100 in 1 : vector<8x12xf32>, vector<8x12xf32>, vector<8x12xf32>, vector<8x12xf32> -> vector<8x48xf32>
    %158 = vector.extract_strided_slice %157 {offsets = [0, 0], sizes = [1, 48], strides = [1, 1]} : vector<8x48xf32> to vector<1x48xf32>
    %159 = vector.extract_strided_slice %157 {offsets = [1, 0], sizes = [1, 48], strides = [1, 1]} : vector<8x48xf32> to vector<1x48xf32>
    %160 = vector.extract_strided_slice %157 {offsets = [2, 0], sizes = [1, 48], strides = [1, 1]} : vector<8x48xf32> to vector<1x48xf32>
    %161 = vector.extract_strided_slice %157 {offsets = [3, 0], sizes = [1, 48], strides = [1, 1]} : vector<8x48xf32> to vector<1x48xf32>
    %162 = vector.extract_strided_slice %157 {offsets = [4, 0], sizes = [1, 48], strides = [1, 1]} : vector<8x48xf32> to vector<1x48xf32>
    %163 = vector.extract_strided_slice %157 {offsets = [5, 0], sizes = [1, 48], strides = [1, 1]} : vector<8x48xf32> to vector<1x48xf32>
    %164 = vector.extract_strided_slice %157 {offsets = [6, 0], sizes = [1, 48], strides = [1, 1]} : vector<8x48xf32> to vector<1x48xf32>
    %165 = vector.extract_strided_slice %157 {offsets = [7, 0], sizes = [1, 48], strides = [1, 1]} : vector<8x48xf32> to vector<1x48xf32>
    %166 = tpu.concatenate %158, %159, %160, %161, %162, %163, %164, %165 in 1 : vector<1x48xf32>, vector<1x48xf32>, vector<1x48xf32>, vector<1x48xf32>, vector<1x48xf32>, vector<1x48xf32>, vector<1x48xf32>, vector<1x48xf32> -> vector<1x384xf32>
    %c0_71 = arith.constant 0 : index
    %c0_72 = arith.constant 0 : index
    %c0_73 = arith.constant 0 : index
    %167 = vector.load %arg12[%c0_71, %c0_72, %c0_73] : memref<1x2x384xf32, #tpu.memory_space<vmem>>, vector<1x1x384xf32>
    %168 = vector.shape_cast %167 : vector<1x1x384xf32> to vector<1x384xf32>
    %169 = vector.shape_cast %166 : vector<1x384xf32> to vector<1x1x384xf32>
    tpu.vector_store %arg12[%c0_71, %c0_72, %c0_73], %169 {strides = array<i32>} : memref<1x2x384xf32, #tpu.memory_space<vmem>>, vector<1x1x384xf32>,
    %c1_74 = arith.constant 1 : index
    %c0_75 = arith.constant 0 : index
    %c0_76 = arith.constant 0 : index
    %170 = vector.load %arg2[%c1_74, %c0_75, %c0_76] : memref<2x4x32xf32, #tpu.memory_space<vmem>>, vector<1x4x32xf32>
    %171 = vector.shape_cast %170 : vector<1x4x32xf32> to vector<4x32xf32>
    %172 = tpu.concatenate %171, %156 in 0 : vector<4x32xf32>, vector<8x32xf32> -> vector<12x32xf32>
    %c1_77 = arith.constant 1 : index
    %c0_78 = arith.constant 0 : index
    %c0_79 = arith.constant 0 : index
    %c0_80 = arith.constant 0 : index
    %173 = vector.load %arg3[%c1_77, %c0_78, %c0_79, %c0_80] : memref<2x3x32x32xf32, #tpu.memory_space<vmem>>, vector<1x1x32x32xf32>
    %174 = vector.shape_cast %173 : vector<1x1x32x32xf32> to vector<32x32xf32>
    %cst_81 = arith.constant dense<0.000000e+00> : vector<8x32xf32>
    %175 = tpu.matmul %156, %174, %cst_81 {dimension_numbers = #tpu.dot_dimension_numbers<[1], [0], [0], [1], [0, 0, 1, 1], [], []>} : vector<8x32xf32>, vector<32x32xf32>, vector<8x32xf32> -> vector<8x32xf32>
    %c1_82 = arith.constant 1 : index
    %c0_83 = arith.constant 0 : index
    %c0_84 = arith.constant 0 : index
    %c0_85 = arith.constant 0 : index
    %176 = vector.load %arg4[%c1_82, %c0_83, %c0_84, %c0_85] : memref<2x3x1x32xf32, #tpu.memory_space<vmem>>, vector<1x1x1x32xf32>
    %177 = vector.shape_cast %176 : vector<1x1x1x32xf32> to vector<1x32xf32>
    %178 = vector.broadcast %177 : vector<1x32xf32> to vector<8x32xf32>
    %179 = arith.addf %175, %178 : vector<8x32xf32>
    %c1_86 = arith.constant 1 : index
    %c1_87 = arith.constant 1 : index
    %c0_88 = arith.constant 0 : index
    %c0_89 = arith.constant 0 : index
    %180 = vector.load %arg3[%c1_86, %c1_87, %c0_88, %c0_89] : memref<2x3x32x32xf32, #tpu.memory_space<vmem>>, vector<1x1x32x32xf32>
    %181 = vector.shape_cast %180 : vector<1x1x32x32xf32> to vector<32x32xf32>
    %cst_90 = arith.constant dense<0.000000e+00> : vector<12x32xf32>
    %182 = tpu.matmul %172, %181, %cst_90 {dimension_numbers = #tpu.dot_dimension_numbers<[1], [0], [0], [1], [0, 0, 1, 1], [], []>} : vector<12x32xf32>, vector<32x32xf32>, vector<12x32xf32> -> vector<12x32xf32>
    %c1_91 = arith.constant 1 : index
    %c1_92 = arith.constant 1 : index
    %c0_93 = arith.constant 0 : index
    %c0_94 = arith.constant 0 : index
    %183 = vector.load %arg4[%c1_91, %c1_92, %c0_93, %c0_94] : memref<2x3x1x32xf32, #tpu.memory_space<vmem>>, vector<1x1x1x32xf32>
    %184 = vector.shape_cast %183 : vector<1x1x1x32xf32> to vector<1x32xf32>
    %185 = vector.broadcast %184 : vector<1x32xf32> to vector<12x32xf32>
    %186 = arith.addf %182, %185 : vector<12x32xf32>
    %c1_95 = arith.constant 1 : index
    %c2_96 = arith.constant 2 : index
    %c0_97 = arith.constant 0 : index
    %c0_98 = arith.constant 0 : index
    %187 = vector.load %arg3[%c1_95, %c2_96, %c0_97, %c0_98] : memref<2x3x32x32xf32, #tpu.memory_space<vmem>>, vector<1x1x32x32xf32>
    %188 = vector.shape_cast %187 : vector<1x1x32x32xf32> to vector<32x32xf32>
    %cst_99 = arith.constant dense<0.000000e+00> : vector<12x32xf32>
    %189 = tpu.matmul %172, %188, %cst_99 {dimension_numbers = #tpu.dot_dimension_numbers<[1], [0], [0], [1], [0, 0, 1, 1], [], []>} : vector<12x32xf32>, vector<32x32xf32>, vector<12x32xf32> -> vector<12x32xf32>
    %c1_100 = arith.constant 1 : index
    %c2_101 = arith.constant 2 : index
    %c0_102 = arith.constant 0 : index
    %c0_103 = arith.constant 0 : index
    %190 = vector.load %arg4[%c1_100, %c2_101, %c0_102, %c0_103] : memref<2x3x1x32xf32, #tpu.memory_space<vmem>>, vector<1x1x1x32xf32>
    %191 = vector.shape_cast %190 : vector<1x1x1x32xf32> to vector<1x32xf32>
    %192 = vector.broadcast %191 : vector<1x32xf32> to vector<12x32xf32>
    %193 = arith.addf %189, %192 : vector<12x32xf32>
    %c1_104 = arith.constant 1 : index
    %c0_105 = arith.constant 0 : index
    %c0_106 = arith.constant 0 : index
    %194 = vector.load %arg5[%c1_104, %c0_105, %c0_106] : memref<2x32x32xf32, #tpu.memory_space<vmem>>, vector<1x32x32xf32>
    %195 = vector.shape_cast %194 : vector<1x32x32xf32> to vector<32x32xf32>
    %cst_107 = arith.constant 0.000000e+00 : f32
    %196 = vector.broadcast %cst_107 : f32 to vector<8x32xf32>
    %197 = vector.extract_strided_slice %179 {offsets = [0, 0], sizes = [8, 8], strides = [1, 1]} : vector<8x32xf32> to vector<8x8xf32>
    %198 = vector.extract_strided_slice %186 {offsets = [0, 0], sizes = [12, 8], strides = [1, 1]} : vector<12x32xf32> to vector<12x8xf32>
    %199 = vector.extract_strided_slice %193 {offsets = [0, 0], sizes = [12, 8], strides = [1, 1]} : vector<12x32xf32> to vector<12x8xf32>
    %cst_108 = arith.constant dense<0.000000e+00> : vector<8x12xf32>
    %200 = tpu.matmul %197, %198, %cst_108 {dimension_numbers = #tpu.dot_dimension_numbers<[1], [1], [0], [0], [0, 0, 1, 0], [], []>} : vector<8x8xf32>, vector<12x8xf32>, vector<8x12xf32> -> vector<8x12xf32>
    %cst_109 = arith.constant 0.353553385 : f32
    %201 = vector.broadcast %cst_109 : f32 to vector<8x12xf32>
    %202 = arith.mulf %200, %201 : vector<8x12xf32>
    %cst_110 = arith.constant dense<0xFF800000> : vector<8xf32>
    %203 = vector.multi_reduction <maximumf>, %202, %cst_110 [1] : vector<8x12xf32> to vector<8xf32>
    %204 = vector.shape_cast %203 : vector<8xf32> to vector<8x1xf32>
    %205 = vector.broadcast %204 : vector<8x1xf32> to vector<8x12xf32>
    %206 = arith.subf %202, %205 : vector<8x12xf32>
    %207 = math.exp %206 : vector<8x12xf32>
    %cst_111 = arith.constant dense<0.000000e+00> : vector<8xf32>
    %208 = vector.multi_reduction <add>, %207, %cst_111 [1] : vector<8x12xf32> to vector<8xf32>
    %209 = vector.shape_cast %208 : vector<8xf32> to vector<8x1xf32>
    %210 = vector.broadcast %209 : vector<8x1xf32> to vector<8x12xf32>
    %211 = arith.divf %207, %210 : vector<8x12xf32>
    %cst_112 = arith.constant dense<0.000000e+00> : vector<8x8xf32>
    %212 = tpu.matmul %211, %199, %cst_112 {dimension_numbers = #tpu.dot_dimension_numbers<[1], [0], [0], [1], [0, 0, 1, 1], [], []>} : vector<8x12xf32>, vector<12x8xf32>, vector<8x8xf32> -> vector<8x8xf32>
    %213 = vector.extract_strided_slice %195 {offsets = [0, 0], sizes = [8, 32], strides = [1, 1]} : vector<32x32xf32> to vector<8x32xf32>
    %cst_113 = arith.constant dense<0.000000e+00> : vector<8x32xf32>
    %214 = tpu.matmul %212, %213, %cst_113 {dimension_numbers = #tpu.dot_dimension_numbers<[1], [0], [0], [1], [0, 0, 1, 1], [], []>} : vector<8x8xf32>, vector<8x32xf32>, vector<8x32xf32> -> vector<8x32xf32>
    %215 = arith.addf %196, %214 : vector<8x32xf32>
    %216 = vector.extract_strided_slice %179 {offsets = [0, 8], sizes = [8, 8], strides = [1, 1]} : vector<8x32xf32> to vector<8x8xf32>
    %217 = vector.extract_strided_slice %186 {offsets = [0, 8], sizes = [12, 8], strides = [1, 1]} : vector<12x32xf32> to vector<12x8xf32>
    %218 = vector.extract_strided_slice %193 {offsets = [0, 8], sizes = [12, 8], strides = [1, 1]} : vector<12x32xf32> to vector<12x8xf32>
    %cst_114 = arith.constant dense<0.000000e+00> : vector<8x12xf32>
    %219 = tpu.matmul %216, %217, %cst_114 {dimension_numbers = #tpu.dot_dimension_numbers<[1], [1], [0], [0], [0, 0, 1, 0], [], []>} : vector<8x8xf32>, vector<12x8xf32>, vector<8x12xf32> -> vector<8x12xf32>
    %cst_115 = arith.constant 0.353553385 : f32
    %220 = vector.broadcast %cst_115 : f32 to vector<8x12xf32>
    %221 = arith.mulf %219, %220 : vector<8x12xf32>
    %cst_116 = arith.constant dense<0xFF800000> : vector<8xf32>
    %222 = vector.multi_reduction <maximumf>, %221, %cst_116 [1] : vector<8x12xf32> to vector<8xf32>
    %223 = vector.shape_cast %222 : vector<8xf32> to vector<8x1xf32>
    %224 = vector.broadcast %223 : vector<8x1xf32> to vector<8x12xf32>
    %225 = arith.subf %221, %224 : vector<8x12xf32>
    %226 = math.exp %225 : vector<8x12xf32>
    %cst_117 = arith.constant dense<0.000000e+00> : vector<8xf32>
    %227 = vector.multi_reduction <add>, %226, %cst_117 [1] : vector<8x12xf32> to vector<8xf32>
    %228 = vector.shape_cast %227 : vector<8xf32> to vector<8x1xf32>
    %229 = vector.broadcast %228 : vector<8x1xf32> to vector<8x12xf32>
    %230 = arith.divf %226, %229 : vector<8x12xf32>
    %cst_118 = arith.constant dense<0.000000e+00> : vector<8x8xf32>
    %231 = tpu.matmul %230, %218, %cst_118 {dimension_numbers = #tpu.dot_dimension_numbers<[1], [0], [0], [1], [0, 0, 1, 1], [], []>} : vector<8x12xf32>, vector<12x8xf32>, vector<8x8xf32> -> vector<8x8xf32>
    %232 = vector.extract_strided_slice %195 {offsets = [8, 0], sizes = [8, 32], strides = [1, 1]} : vector<32x32xf32> to vector<8x32xf32>
    %cst_119 = arith.constant dense<0.000000e+00> : vector<8x32xf32>
    %233 = tpu.matmul %231, %232, %cst_119 {dimension_numbers = #tpu.dot_dimension_numbers<[1], [0], [0], [1], [0, 0, 1, 1], [], []>} : vector<8x8xf32>, vector<8x32xf32>, vector<8x32xf32> -> vector<8x32xf32>
    %234 = arith.addf %215, %233 : vector<8x32xf32>
    %235 = vector.extract_strided_slice %179 {offsets = [0, 16], sizes = [8, 8], strides = [1, 1]} : vector<8x32xf32> to vector<8x8xf32>
    %236 = vector.extract_strided_slice %186 {offsets = [0, 16], sizes = [12, 8], strides = [1, 1]} : vector<12x32xf32> to vector<12x8xf32>
    %237 = vector.extract_strided_slice %193 {offsets = [0, 16], sizes = [12, 8], strides = [1, 1]} : vector<12x32xf32> to vector<12x8xf32>
    %cst_120 = arith.constant dense<0.000000e+00> : vector<8x12xf32>
    %238 = tpu.matmul %235, %236, %cst_120 {dimension_numbers = #tpu.dot_dimension_numbers<[1], [1], [0], [0], [0, 0, 1, 0], [], []>} : vector<8x8xf32>, vector<12x8xf32>, vector<8x12xf32> -> vector<8x12xf32>
    %cst_121 = arith.constant 0.353553385 : f32
    %239 = vector.broadcast %cst_121 : f32 to vector<8x12xf32>
    %240 = arith.mulf %238, %239 : vector<8x12xf32>
    %cst_122 = arith.constant dense<0xFF800000> : vector<8xf32>
    %241 = vector.multi_reduction <maximumf>, %240, %cst_122 [1] : vector<8x12xf32> to vector<8xf32>
    %242 = vector.shape_cast %241 : vector<8xf32> to vector<8x1xf32>
    %243 = vector.broadcast %242 : vector<8x1xf32> to vector<8x12xf32>
    %244 = arith.subf %240, %243 : vector<8x12xf32>
    %245 = math.exp %244 : vector<8x12xf32>
    %cst_123 = arith.constant dense<0.000000e+00> : vector<8xf32>
    %246 = vector.multi_reduction <add>, %245, %cst_123 [1] : vector<8x12xf32> to vector<8xf32>
    %247 = vector.shape_cast %246 : vector<8xf32> to vector<8x1xf32>
    %248 = vector.broadcast %247 : vector<8x1xf32> to vector<8x12xf32>
    %249 = arith.divf %245, %248 : vector<8x12xf32>
    %cst_124 = arith.constant dense<0.000000e+00> : vector<8x8xf32>
    %250 = tpu.matmul %249, %237, %cst_124 {dimension_numbers = #tpu.dot_dimension_numbers<[1], [0], [0], [1], [0, 0, 1, 1], [], []>} : vector<8x12xf32>, vector<12x8xf32>, vector<8x8xf32> -> vector<8x8xf32>
    %251 = vector.extract_strided_slice %195 {offsets = [16, 0], sizes = [8, 32], strides = [1, 1]} : vector<32x32xf32> to vector<8x32xf32>
    %cst_125 = arith.constant dense<0.000000e+00> : vector<8x32xf32>
    %252 = tpu.matmul %250, %251, %cst_125 {dimension_numbers = #tpu.dot_dimension_numbers<[1], [0], [0], [1], [0, 0, 1, 1], [], []>} : vector<8x8xf32>, vector<8x32xf32>, vector<8x32xf32> -> vector<8x32xf32>
    %253 = arith.addf %234, %252 : vector<8x32xf32>
    %254 = vector.extract_strided_slice %179 {offsets = [0, 24], sizes = [8, 8], strides = [1, 1]} : vector<8x32xf32> to vector<8x8xf32>
    %255 = vector.extract_strided_slice %186 {offsets = [0, 24], sizes = [12, 8], strides = [1, 1]} : vector<12x32xf32> to vector<12x8xf32>
    %256 = vector.extract_strided_slice %193 {offsets = [0, 24], sizes = [12, 8], strides = [1, 1]} : vector<12x32xf32> to vector<12x8xf32>
    %cst_126 = arith.constant dense<0.000000e+00> : vector<8x12xf32>
    %257 = tpu.matmul %254, %255, %cst_126 {dimension_numbers = #tpu.dot_dimension_numbers<[1], [1], [0], [0], [0, 0, 1, 0], [], []>} : vector<8x8xf32>, vector<12x8xf32>, vector<8x12xf32> -> vector<8x12xf32>
    %cst_127 = arith.constant 0.353553385 : f32
    %258 = vector.broadcast %cst_127 : f32 to vector<8x12xf32>
    %259 = arith.mulf %257, %258 : vector<8x12xf32>
    %cst_128 = arith.constant dense<0xFF800000> : vector<8xf32>
    %260 = vector.multi_reduction <maximumf>, %259, %cst_128 [1] : vector<8x12xf32> to vector<8xf32>
    %261 = vector.shape_cast %260 : vector<8xf32> to vector<8x1xf32>
    %262 = vector.broadcast %261 : vector<8x1xf32> to vector<8x12xf32>
    %263 = arith.subf %259, %262 : vector<8x12xf32>
    %264 = math.exp %263 : vector<8x12xf32>
    %cst_129 = arith.constant dense<0.000000e+00> : vector<8xf32>
    %265 = vector.multi_reduction <add>, %264, %cst_129 [1] : vector<8x12xf32> to vector<8xf32>
    %266 = vector.shape_cast %265 : vector<8xf32> to vector<8x1xf32>
    %267 = vector.broadcast %266 : vector<8x1xf32> to vector<8x12xf32>
    %268 = arith.divf %264, %267 : vector<8x12xf32>
    %cst_130 = arith.constant dense<0.000000e+00> : vector<8x8xf32>
    %269 = tpu.matmul %268, %256, %cst_130 {dimension_numbers = #tpu.dot_dimension_numbers<[1], [0], [0], [1], [0, 0, 1, 1], [], []>} : vector<8x12xf32>, vector<12x8xf32>, vector<8x8xf32> -> vector<8x8xf32>
    %270 = vector.extract_strided_slice %195 {offsets = [24, 0], sizes = [8, 32], strides = [1, 1]} : vector<32x32xf32> to vector<8x32xf32>
    %cst_131 = arith.constant dense<0.000000e+00> : vector<8x32xf32>
    %271 = tpu.matmul %269, %270, %cst_131 {dimension_numbers = #tpu.dot_dimension_numbers<[1], [0], [0], [1], [0, 0, 1, 1], [], []>} : vector<8x8xf32>, vector<8x32xf32>, vector<8x32xf32> -> vector<8x32xf32>
    %272 = arith.addf %253, %271 : vector<8x32xf32>
    %273 = arith.addf %156, %272 : vector<8x32xf32>
    %c1_132 = arith.constant 1 : index
    %c0_133 = arith.constant 0 : index
    %c0_134 = arith.constant 0 : index
    %274 = vector.load %arg6[%c1_132, %c0_133, %c0_134] : memref<2x1x32xf32, #tpu.memory_space<vmem>>, vector<1x1x32xf32>
    %275 = vector.shape_cast %274 : vector<1x1x32xf32> to vector<1x32xf32>
    %276 = vector.broadcast %275 : vector<1x32xf32> to vector<8x32xf32>
    %277 = arith.addf %273, %276 : vector<8x32xf32>
    %278 = vector.extract_strided_slice %277 {offsets = [0, 0], sizes = [1, 32], strides = [1, 1]} : vector<8x32xf32> to vector<1x32xf32>
    %279 = vector.shape_cast %278 : vector<1x32xf32> to vector<1x32xf32>
    %280 = vector.broadcast %279 : vector<1x32xf32> to vector<2x32xf32>
    %281 = vector.extract_strided_slice %277 {offsets = [7, 0], sizes = [1, 32], strides = [1, 1]} : vector<8x32xf32> to vector<1x32xf32>
    %282 = vector.shape_cast %281 : vector<1x32xf32> to vector<1x32xf32>
    %283 = vector.broadcast %282 : vector<1x32xf32> to vector<2x32xf32>
    %284 = tpu.concatenate %280, %277, %283 in 0 : vector<2x32xf32>, vector<8x32xf32>, vector<2x32xf32> -> vector<12x32xf32>
    %285 = vector.extract_strided_slice %284 {offsets = [0, 0], sizes = [8, 32], strides = [1, 1]} : vector<12x32xf32> to vector<8x32xf32>
    %286 = vector.extract_strided_slice %284 {offsets = [1, 0], sizes = [8, 32], strides = [1, 1]} : vector<12x32xf32> to vector<8x32xf32>
    %287 = arith.addf %285, %286 : vector<8x32xf32>
    %288 = vector.extract_strided_slice %284 {offsets = [2, 0], sizes = [8, 32], strides = [1, 1]} : vector<12x32xf32> to vector<8x32xf32>
    %289 = arith.addf %287, %288 : vector<8x32xf32>
    %290 = vector.extract_strided_slice %284 {offsets = [3, 0], sizes = [8, 32], strides = [1, 1]} : vector<12x32xf32> to vector<8x32xf32>
    %291 = arith.addf %289, %290 : vector<8x32xf32>
    %292 = vector.extract_strided_slice %284 {offsets = [4, 0], sizes = [8, 32], strides = [1, 1]} : vector<12x32xf32> to vector<8x32xf32>
    %293 = arith.addf %291, %292 : vector<8x32xf32>
    %cst_135 = arith.constant 2.000000e-01 : f32
    %294 = vector.broadcast %cst_135 : f32 to vector<8x32xf32>
    %295 = arith.mulf %293, %294 : vector<8x32xf32>
    %296 = arith.subf %277, %295 : vector<8x32xf32>
    %c1_136 = arith.constant 1 : index
    %c0_137 = arith.constant 0 : index
    %c0_138 = arith.constant 0 : index
    %297 = vector.load %arg7[%c1_136, %c0_137, %c0_138] : memref<2x32x64xf32, #tpu.memory_space<vmem>>, vector<1x32x64xf32>
    %298 = vector.shape_cast %297 : vector<1x32x64xf32> to vector<32x64xf32>
    %cst_139 = arith.constant dense<0.000000e+00> : vector<8x64xf32>
    %299 = tpu.matmul %296, %298, %cst_139 {dimension_numbers = #tpu.dot_dimension_numbers<[1], [0], [0], [1], [0, 0, 1, 1], [], []>} : vector<8x32xf32>, vector<32x64xf32>, vector<8x64xf32> -> vector<8x64xf32>
    %cst_140 = arith.constant 0.000000e+00 : f32
    %300 = vector.broadcast %cst_140 : f32 to vector<8x64xf32>
    %301 = arith.maximumf %299, %300 : vector<8x64xf32>
    %c1_141 = arith.constant 1 : index
    %c0_142 = arith.constant 0 : index
    %c0_143 = arith.constant 0 : index
    %302 = vector.load %arg8[%c1_141, %c0_142, %c0_143] : memref<2x64x32xf32, #tpu.memory_space<vmem>>, vector<1x64x32xf32>
    %303 = vector.shape_cast %302 : vector<1x64x32xf32> to vector<64x32xf32>
    %cst_144 = arith.constant dense<0.000000e+00> : vector<8x32xf32>
    %304 = tpu.matmul %301, %303, %cst_144 {dimension_numbers = #tpu.dot_dimension_numbers<[1], [0], [0], [1], [0, 0, 1, 1], [], []>} : vector<8x64xf32>, vector<64x32xf32>, vector<8x32xf32> -> vector<8x32xf32>
    %305 = arith.addf %296, %304 : vector<8x32xf32>
    %306 = vector.extract_strided_slice %305 {offsets = [0, 0], sizes = [1, 32], strides = [1, 1]} : vector<8x32xf32> to vector<1x32xf32>
    %307 = vector.shape_cast %306 : vector<1x32xf32> to vector<1x32xf32>
    %308 = vector.broadcast %307 : vector<1x32xf32> to vector<2x32xf32>
    %309 = vector.extract_strided_slice %305 {offsets = [7, 0], sizes = [1, 32], strides = [1, 1]} : vector<8x32xf32> to vector<1x32xf32>
    %310 = vector.shape_cast %309 : vector<1x32xf32> to vector<1x32xf32>
    %311 = vector.broadcast %310 : vector<1x32xf32> to vector<2x32xf32>
    %312 = tpu.concatenate %308, %305, %311 in 0 : vector<2x32xf32>, vector<8x32xf32>, vector<2x32xf32> -> vector<12x32xf32>
    %313 = vector.extract_strided_slice %312 {offsets = [0, 0], sizes = [8, 32], strides = [1, 1]} : vector<12x32xf32> to vector<8x32xf32>
    %314 = vector.extract_strided_slice %312 {offsets = [1, 0], sizes = [8, 32], strides = [1, 1]} : vector<12x32xf32> to vector<8x32xf32>
    %315 = arith.addf %313, %314 : vector<8x32xf32>
    %316 = vector.extract_strided_slice %312 {offsets = [2, 0], sizes = [8, 32], strides = [1, 1]} : vector<12x32xf32> to vector<8x32xf32>
    %317 = arith.addf %315, %316 : vector<8x32xf32>
    %318 = vector.extract_strided_slice %312 {offsets = [3, 0], sizes = [8, 32], strides = [1, 1]} : vector<12x32xf32> to vector<8x32xf32>
    %319 = arith.addf %317, %318 : vector<8x32xf32>
    %320 = vector.extract_strided_slice %312 {offsets = [4, 0], sizes = [8, 32], strides = [1, 1]} : vector<12x32xf32> to vector<8x32xf32>
    %321 = arith.addf %319, %320 : vector<8x32xf32>
    %cst_145 = arith.constant 2.000000e-01 : f32
    %322 = vector.broadcast %cst_145 : f32 to vector<8x32xf32>
    %323 = arith.mulf %321, %322 : vector<8x32xf32>
    %324 = arith.subf %305, %323 : vector<8x32xf32>
    %325 = tpu.concatenate %211, %230, %249, %268 in 1 : vector<8x12xf32>, vector<8x12xf32>, vector<8x12xf32>, vector<8x12xf32> -> vector<8x48xf32>
    %326 = vector.extract_strided_slice %325 {offsets = [0, 0], sizes = [1, 48], strides = [1, 1]} : vector<8x48xf32> to vector<1x48xf32>
    %327 = vector.extract_strided_slice %325 {offsets = [1, 0], sizes = [1, 48], strides = [1, 1]} : vector<8x48xf32> to vector<1x48xf32>
    %328 = vector.extract_strided_slice %325 {offsets = [2, 0], sizes = [1, 48], strides = [1, 1]} : vector<8x48xf32> to vector<1x48xf32>
    %329 = vector.extract_strided_slice %325 {offsets = [3, 0], sizes = [1, 48], strides = [1, 1]} : vector<8x48xf32> to vector<1x48xf32>
    %330 = vector.extract_strided_slice %325 {offsets = [4, 0], sizes = [1, 48], strides = [1, 1]} : vector<8x48xf32> to vector<1x48xf32>
    %331 = vector.extract_strided_slice %325 {offsets = [5, 0], sizes = [1, 48], strides = [1, 1]} : vector<8x48xf32> to vector<1x48xf32>
    %332 = vector.extract_strided_slice %325 {offsets = [6, 0], sizes = [1, 48], strides = [1, 1]} : vector<8x48xf32> to vector<1x48xf32>
    %333 = vector.extract_strided_slice %325 {offsets = [7, 0], sizes = [1, 48], strides = [1, 1]} : vector<8x48xf32> to vector<1x48xf32>
    %334 = tpu.concatenate %326, %327, %328, %329, %330, %331, %332, %333 in 1 : vector<1x48xf32>, vector<1x48xf32>, vector<1x48xf32>, vector<1x48xf32>, vector<1x48xf32>, vector<1x48xf32>, vector<1x48xf32>, vector<1x48xf32> -> vector<1x384xf32>
    %c0_146 = arith.constant 0 : index
    %c1_147 = arith.constant 1 : index
    %c0_148 = arith.constant 0 : index
    %335 = vector.load %arg12[%c0_146, %c1_147, %c0_148] : memref<1x2x384xf32, #tpu.memory_space<vmem>>, vector<1x1x384xf32>
    %336 = vector.shape_cast %335 : vector<1x1x384xf32> to vector<1x384xf32>
    %337 = vector.shape_cast %334 : vector<1x384xf32> to vector<1x1x384xf32>
    tpu.vector_store %arg12[%c0_146, %c1_147, %c0_148], %337 {strides = array<i32>} : memref<1x2x384xf32, #tpu.memory_space<vmem>>, vector<1x1x384xf32>,
    %cst_149 = arith.constant dense<0.000000e+00> : vector<8xf32>
    %338 = vector.multi_reduction <add>, %324, %cst_149 [1] : vector<8x32xf32> to vector<8xf32>
    %339 = vector.shape_cast %338 : vector<8xf32> to vector<8x1xf32>
    %cst_150 = arith.constant 3.200000e+01 : f32
    %340 = vector.broadcast %cst_150 : f32 to vector<8x1xf32>
    %341 = arith.divf %339, %340 : vector<8x1xf32>
    %342 = vector.broadcast %341 : vector<8x1xf32> to vector<8x32xf32>
    %343 = arith.subf %324, %342 : vector<8x32xf32>
    %344 = arith.mulf %343, %343 : vector<8x32xf32>
    %cst_151 = arith.constant dense<0.000000e+00> : vector<8xf32>
    %345 = vector.multi_reduction <add>, %344, %cst_151 [1] : vector<8x32xf32> to vector<8xf32>
    %346 = vector.shape_cast %345 : vector<8xf32> to vector<8x1xf32>
    %cst_152 = arith.constant 3.200000e+01 : f32
    %347 = vector.broadcast %cst_152 : f32 to vector<8x1xf32>
    %348 = arith.divf %346, %347 : vector<8x1xf32>
    %349 = vector.broadcast %341 : vector<8x1xf32> to vector<8x32xf32>
    %350 = arith.subf %324, %349 : vector<8x32xf32>
    %cst_153 = arith.constant 9.99999974E-6 : f32
    %351 = vector.broadcast %cst_153 : f32 to vector<8x1xf32>
    %352 = arith.addf %348, %351 : vector<8x1xf32>
    %353 = math.rsqrt %352 : vector<8x1xf32>
    %354 = vector.broadcast %353 : vector<8x1xf32> to vector<8x32xf32>
    %355 = arith.mulf %350, %354 : vector<8x32xf32>
    %c0_154 = arith.constant 0 : index
    %c0_155 = arith.constant 0 : index
    %356 = vector.load %arg9[%c0_154, %c0_155] : memref<1x32xf32, #tpu.memory_space<vmem>>, vector<1x32xf32>
    %357 = vector.broadcast %356 : vector<1x32xf32> to vector<8x32xf32>
    %358 = arith.mulf %355, %357 : vector<8x32xf32>
    %c0_156 = arith.constant 0 : index
    %c0_157 = arith.constant 0 : index
    %359 = vector.load %arg10[%c0_156, %c0_157] : memref<1x32xf32, #tpu.memory_space<vmem>>, vector<1x32xf32>
    %360 = vector.broadcast %359 : vector<1x32xf32> to vector<8x32xf32>
    %361 = arith.addf %358, %360 : vector<8x32xf32>
    %cst_158 = arith.constant dense<0.000000e+00> : vector<32xf32>
    %362 = vector.multi_reduction <add>, %361, %cst_158 [0] : vector<8x32xf32> to vector<32xf32>
    %363 = vector.shape_cast %362 : vector<32xf32> to vector<1x32xf32>
    %cst_159 = arith.constant 8.000000e+00 : f32
    %364 = vector.broadcast %cst_159 : f32 to vector<1x32xf32>
    %365 = arith.divf %363, %364 : vector<1x32xf32>
    %366 = vector.broadcast %365 : vector<1x32xf32> to vector<8x32xf32>
    %367 = arith.subf %361, %366 : vector<8x32xf32>
    %368 = vector.extract_strided_slice %367 {offsets = [0, 0], sizes = [1, 32], strides = [1, 1]} : vector<8x32xf32> to vector<1x32xf32>
    %369 = vector.extract_strided_slice %367 {offsets = [1, 0], sizes = [1, 32], strides = [1, 1]} : vector<8x32xf32> to vector<1x32xf32>
    %370 = vector.extract_strided_slice %367 {offsets = [2, 0], sizes = [1, 32], strides = [1, 1]} : vector<8x32xf32> to vector<1x32xf32>
    %371 = vector.extract_strided_slice %367 {offsets = [3, 0], sizes = [1, 32], strides = [1, 1]} : vector<8x32xf32> to vector<1x32xf32>
    %372 = vector.extract_strided_slice %367 {offsets = [4, 0], sizes = [1, 32], strides = [1, 1]} : vector<8x32xf32> to vector<1x32xf32>
    %373 = vector.extract_strided_slice %367 {offsets = [5, 0], sizes = [1, 32], strides = [1, 1]} : vector<8x32xf32> to vector<1x32xf32>
    %374 = vector.extract_strided_slice %367 {offsets = [6, 0], sizes = [1, 32], strides = [1, 1]} : vector<8x32xf32> to vector<1x32xf32>
    %375 = vector.extract_strided_slice %367 {offsets = [7, 0], sizes = [1, 32], strides = [1, 1]} : vector<8x32xf32> to vector<1x32xf32>
    %376 = tpu.concatenate %368, %369, %370, %371, %372, %373, %374, %375 in 1 : vector<1x32xf32>, vector<1x32xf32>, vector<1x32xf32>, vector<1x32xf32>, vector<1x32xf32>, vector<1x32xf32>, vector<1x32xf32>, vector<1x32xf32> -> vector<1x256xf32>
    %c0_160 = arith.constant 0 : index
    %c0_161 = arith.constant 0 : index
    %c0_162 = arith.constant 0 : index
    %377 = vector.load %arg11[%c0_160, %c0_161, %c0_162] : memref<1x1x256xf32, #tpu.memory_space<vmem>>, vector<1x1x256xf32>
    %378 = vector.shape_cast %377 : vector<1x1x256xf32> to vector<1x256xf32>
    %379 = vector.shape_cast %376 : vector<1x256xf32> to vector<1x1x256xf32>
    tpu.vector_store %arg11[%c0_160, %c0_161, %c0_162], %379 {strides = array<i32>} : memref<1x1x256xf32, #tpu.memory_space<vmem>>, vector<1x1x256xf32>,
    return
  }
  func.func @transform_0(%arg0: i32) -> (i32, i32, i32) {
    %c0_i32 = arith.constant 0 : i32
    %c0_i32_0 = arith.constant 0 : i32
    %c0_i32_1 = arith.constant 0 : i32
    return %arg0, %c0_i32, %c0_i32_0 : i32, i32, i32
  }
  func.func @transform_1(%arg0: i32) -> (i32, i32, i32) {
    %c0_i32 = arith.constant 0 : i32
    %c0_i32_0 = arith.constant 0 : i32
    %c0_i32_1 = arith.constant 0 : i32
    %c0_i32_2 = arith.constant 0 : i32
    return %c0_i32, %c0_i32_0, %c0_i32_1 : i32, i32, i32
  }
  func.func @transform_2(%arg0: i32) -> (i32, i32, i32, i32) {
    %c0_i32 = arith.constant 0 : i32
    %c0_i32_0 = arith.constant 0 : i32
    %c0_i32_1 = arith.constant 0 : i32
    %c0_i32_2 = arith.constant 0 : i32
    %c0_i32_3 = arith.constant 0 : i32
    return %c0_i32, %c0_i32_0, %c0_i32_1, %c0_i32_2 : i32, i32, i32, i32
  }
  func.func @transform_3(%arg0: i32) -> (i32, i32, i32, i32) {
    %c0_i32 = arith.constant 0 : i32
    %c0_i32_0 = arith.constant 0 : i32
    %c0_i32_1 = arith.constant 0 : i32
    %c0_i32_2 = arith.constant 0 : i32
    %c0_i32_3 = arith.constant 0 : i32
    return %c0_i32, %c0_i32_0, %c0_i32_1, %c0_i32_2 : i32, i32, i32, i32
  }
  func.func @transform_4(%arg0: i32) -> (i32, i32, i32) {
    %c0_i32 = arith.constant 0 : i32
    %c0_i32_0 = arith.constant 0 : i32
    %c0_i32_1 = arith.constant 0 : i32
    %c0_i32_2 = arith.constant 0 : i32
    return %c0_i32, %c0_i32_0, %c0_i32_1 : i32, i32, i32
  }
  func.func @transform_5(%arg0: i32) -> (i32, i32, i32) {
    %c0_i32 = arith.constant 0 : i32
    %c0_i32_0 = arith.constant 0 : i32
    %c0_i32_1 = arith.constant 0 : i32
    %c0_i32_2 = arith.constant 0 : i32
    return %c0_i32, %c0_i32_0, %c0_i32_1 : i32, i32, i32
  }
  func.func @transform_6(%arg0: i32) -> (i32, i32, i32) {
    %c0_i32 = arith.constant 0 : i32
    %c0_i32_0 = arith.constant 0 : i32
    %c0_i32_1 = arith.constant 0 : i32
    %c0_i32_2 = arith.constant 0 : i32
    return %c0_i32, %c0_i32_0, %c0_i32_1 : i32, i32, i32
  }
  func.func @transform_7(%arg0: i32) -> (i32, i32, i32) {
    %c0_i32 = arith.constant 0 : i32
    %c0_i32_0 = arith.constant 0 : i32
    %c0_i32_1 = arith.constant 0 : i32
    %c0_i32_2 = arith.constant 0 : i32
    return %c0_i32, %c0_i32_0, %c0_i32_1 : i32, i32, i32
  }
  func.func @transform_8(%arg0: i32) -> (i32, i32) {
    %c0_i32 = arith.constant 0 : i32
    %c0_i32_0 = arith.constant 0 : i32
    %c0_i32_1 = arith.constant 0 : i32
    return %c0_i32, %c0_i32_0 : i32, i32
  }
  func.func @transform_9(%arg0: i32) -> (i32, i32) {
    %c0_i32 = arith.constant 0 : i32
    %c0_i32_0 = arith.constant 0 : i32
    %c0_i32_1 = arith.constant 0 : i32
    return %c0_i32, %c0_i32_0 : i32, i32
  }
  func.func @transform_10(%arg0: i32) -> (i32, i32, i32) {
    %c0_i32 = arith.constant 0 : i32
    %c0_i32_0 = arith.constant 0 : i32
    %c0_i32_1 = arith.constant 0 : i32
    return %arg0, %c0_i32, %c0_i32_0 : i32, i32, i32
  }
  func.func @transform_11(%arg0: i32) -> (i32, i32, i32) {
    %c0_i32 = arith.constant 0 : i32
    %c0_i32_0 = arith.constant 0 : i32
    %c0_i32_1 = arith.constant 0 : i32
    return %arg0, %c0_i32, %c0_i32_0 : i32, i32, i32
  }
}

</mosaic_0001>

<llo_original>
// kernel: encoder_forward.1
$region0: #{encoder_forward.1}
  #allocation0 [shape = 'u32[]', space=smem, size = 0x4, offset = 0x4, fixed_abs, tag = 'smem constant byte address 0x4 - core index']
  #allocation1 [shape = 'u32[144,128]{1,0:T(1,128)}', space=vmem, size = 0x12000, scoped, tag = 'internal scratch']
  %s0 = inlined_call_operand.vmem [shape: f32[2,8,32], index: 0, kind: input, shape index: {}]
  %s1 = inlined_call_operand.vmem [shape: f32[2,4,32], index: 1, kind: input, shape index: {}]
  %s2 = inlined_call_operand.hbm [shape: f32[2,3,32,32], index: 2, kind: input, shape index: {}]
  %s3 = inlined_call_operand.vmem [shape: f32[2,3,1,32], index: 3, kind: input, shape index: {}]
  %s4 = inlined_call_operand.hbm [shape: f32[2,32,32], index: 4, kind: input, shape index: {}]
  %s5 = inlined_call_operand.vmem [shape: f32[2,1,32], index: 5, kind: input, shape index: {}]
  %s6 = inlined_call_operand.hbm [shape: f32[2,32,64], index: 6, kind: input, shape index: {}]
  %s7 = inlined_call_operand.hbm [shape: f32[2,64,32], index: 7, kind: input, shape index: {}]
  %s8 = inlined_call_operand.vmem [shape: f32[1,32], index: 8, kind: input, shape index: {}]
  %s9 = inlined_call_operand.vmem [shape: f32[1,32], index: 9, kind: input, shape index: {}]
  %s10 = inlined_call_operand.vmem [shape: f32[2,1,256], index: 10, kind: output, shape index: {0}]
  %s11 = inlined_call_operand.vmem [shape: f32[2,2,384], index: 11, kind: output, shape index: {1}]
  %12 = xla_tuple %s10, %s11
  %s13 = sld [smem:[#allocation0]]
  $region97: #{encoder_forward.1} parent=0
    _
  %s15 = ssub.s32 1, %s13
  %s16 = scalar_select 0, %s15, %s13
  $region1: #{encoder_forward.1} parent=0
    #allocation2 [shape = 'u8[98304]{0}', space=vmem, size = 0x18000, scoped, tag = 'input window, operand 2, single buffered']
    #allocation3 [shape = 's32[2]{0}', space=sflag, size = 0x8, scoped, tag = 'scoped memory for encoder_forward.1']
    #allocation4 [shape = 'u8[32768]{0}', space=vmem, size = 0x8000, scoped, tag = 'input window, operand 4, single buffered']
    #allocation5 [shape = 's32[1]{0}', space=sflag, size = 0x4, scoped, tag = 'scoped memory for encoder_forward.1']
    #allocation6 [shape = 'u8[32768]{0}', space=vmem, size = 0x8000, scoped, tag = 'input window, operand 6, single buffered']
    #allocation7 [shape = 'u8[65536]{0}', space=vmem, size = 0x10000, scoped, tag = 'input window, operand 7, single buffered']
    #allocation8 [shape = 's32[1]{0}', space=sflag, size = 0x4, scoped, tag = 'scoped memory for encoder_forward.1']
    %17 = vsyncpa [#allocation3], 0
    %18 = vsyncpa [#allocation5], 0
    %19 = vsyncpa [#allocation8], 0
    loop: start=0, step=1, limit=4
    $region2: #{encoder_forward.1} parent=1 // loop_pre_header
      _
    $region3: #{encoder_forward.1} parent=1 // loop_header
      %s21 = sphi 0, %s25
      %p22 = scmp.ge.s32.totalorder %s21, 4
      %s31 = sphi 0, %s33
      %s34 = sphi 0, %s31
      %s35 = sphi 0, %s34
      %s51 = sphi 0, %s35
      %s55 = sphi 0, %s55
      %s57 = sphi 0, %s55
      %s58 = sphi 0, %s57
      %s72 = sphi 0, %s58
      %s76 = sphi 0, %s76
      %s78 = sphi 0, %s76
      %s79 = sphi 0, %s78
      %s93 = sphi 0, %s79
      %s97 = sphi 0, %s97
      %s99 = sphi 0, %s97
      %s100 = sphi 0, %s99
      %s114 = sphi 0, %s100
      %s118 = sphi 0, %s118
      %s120 = sphi 0, %s118
      %s121 = sphi 0, %s120
      %s135 = sphi 0, %s121
      %s139 = sphi 0, %s139
      %s141 = sphi 0, %s139
      %s142 = sphi 0, %s141
      %s156 = sphi 0, %s142
      %s160 = sphi 0, %s160
      %s162 = sphi 0, %s160
      %s163 = sphi 0, %s162
      %s177 = sphi 0, %s163
      %s181 = sphi 0, %s181
      %s183 = sphi 0, %s181
      %s184 = sphi 0, %s183
      %s198 = sphi 0, %s184
      %s202 = sphi 0, %s202
      %s204 = sphi 0, %s202
      %s205 = sphi 0, %s204
      %s219 = sphi 0, %s205
      %s223 = sphi 0, %s223
      %s225 = sphi 0, %s223
      %s226 = sphi 0, %s225
      %s240 = sphi 0, %s226
      %s246 = sphi 0, %s248
      %s249 = sphi 0, %s246
      %s250 = sphi 0, %s249
      %s266 = sphi 0, %s250
      %s272 = sphi 0, %s274
      %s275 = sphi 0, %s272
      %s276 = sphi 0, %s275
      %s292 = sphi 0, %s276
    $region4: #{encoder_forward.1} parent=1 // loop_header_branch
      %24 = sbr.rel (%p22) target = $region8
    $region5: #{encoder_forward.1} parent=1 // loop_body
      %s26 = ssub.s32 %s21, 1
      %s27 = ssub.s32 %s21, 2
      %s28 = sadd.s32 %s21, 1
      %s29 = ssub.s32 %s21, %s28
      %p30 = scmp.eq.s32.totalorder %s29, 0
      %s32 = sadd.s32 %s31, 1
      %s33 = scalar_select %p30, %s31, %s32
      %p36 = pneg %p30
      %p37 = scmp.eq.s32.totalorder %s21, 1
      %p38 = por %p36, %p37
      %p39 = scmp.ne.s32.totalorder %s31, %s34
      %p40 = scmp.eq.s32.totalorder %s21, 0
      %p41 = por %p39, %p40
      %p42 = scmp.ne.s32.totalorder %s31, %s34
      %p43 = scmp.eq.s32.totalorder %s26, 1
      %p44 = por %p42, %p43
      %p45 = scmp.ne.s32.totalorder %s34, %s35
      %p46 = scmp.eq.s32.totalorder %s26, 0
      %p47 = por %p45, %p46
      %p48 = scmp.ne.s32.totalorder %s34, %s35
      %p49 = scmp.eq.s32.totalorder %s27, 1
      %p50 = por %p48, %p49
      %p52 = scmp.ne.s32.totalorder %s35, %s51
      %p53 = scmp.eq.s32.totalorder %s27, 0
      %p54 = por %p52, %p53
      %s56 = sadd.s32 %s55, 1
      %p59 = scmp.eq.s32.totalorder %s21, 1
      %p60 = scmp.ne.s32.totalorder %s55, %s57
      %p61 = scmp.eq.s32.totalorder %s21, 0
      %p62 = por %p60, %p61
      %p63 = scmp.ne.s32.totalorder %s55, %s57
      %p64 = scmp.eq.s32.totalorder %s26, 1
      %p65 = por %p63, %p64
      %p66 = scmp.ne.s32.totalorder %s57, %s58
      %p67 = scmp.eq.s32.totalorder %s26, 0
      %p68 = por %p66, %p67
      %p69 = scmp.ne.s32.totalorder %s57, %s58
      %p70 = scmp.eq.s32.totalorder %s27, 1
      %p71 = por %p69, %p70
      %p73 = scmp.ne.s32.totalorder %s58, %s72
      %p74 = scmp.eq.s32.totalorder %s27, 0
      %p75 = por %p73, %p74
      %s77 = sadd.s32 %s76, 1
      %p80 = scmp.eq.s32.totalorder %s21, 1
      %p81 = scmp.ne.s32.totalorder %s76, %s78
      %p82 = scmp.eq.s32.totalorder %s21, 0
      %p83 = por %p81, %p82
      %p84 = scmp.ne.s32.totalorder %s76, %s78
      %p85 = scmp.eq.s32.totalorder %s26, 1
      %p86 = por %p84, %p85
      %p87 = scmp.ne.s32.totalorder %s78, %s79
      %p88 = scmp.eq.s32.totalorder %s26, 0
      %p89 = por %p87, %p88
      %p90 = scmp.ne.s32.totalorder %s78, %s79
      %p91 = scmp.eq.s32.totalorder %s27, 1
      %p92 = por %p90, %p91
      %p94 = scmp.ne.s32.totalorder %s79, %s93
      %p95 = scmp.eq.s32.totalorder %s27, 0
      %p96 = por %p94, %p95
      %s98 = sadd.s32 %s97, 1
      %p101 = scmp.eq.s32.totalorder %s21, 1
      %p102 = scmp.ne.s32.totalorder %s97, %s99
      %p103 = scmp.eq.s32.totalorder %s21, 0
      %p104 = por %p102, %p103
      %p105 = scmp.ne.s32.totalorder %s97, %s99
      %p106 = scmp.eq.s32.totalorder %s26, 1
      %p107 = por %p105, %p106
      %p108 = scmp.ne.s32.totalorder %s99, %s100
      %p109 = scmp.eq.s32.totalorder %s26, 0
      %p110 = por %p108, %p109
      %p111 = scmp.ne.s32.totalorder %s99, %s100
      %p112 = scmp.eq.s32.totalorder %s27, 1
      %p113 = por %p111, %p112
      %p115 = scmp.ne.s32.totalorder %s100, %s114
      %p116 = scmp.eq.s32.totalorder %s27, 0
      %p117 = por %p115, %p116
      %s119 = sadd.s32 %s118, 1
      %p122 = scmp.eq.s32.totalorder %s21, 1
      %p123 = scmp.ne.s32.totalorder %s118, %s120
      %p124 = scmp.eq.s32.totalorder %s21, 0
      %p125 = por %p123, %p124
      %p126 = scmp.ne.s32.totalorder %s118, %s120
      %p127 = scmp.eq.s32.totalorder %s26, 1
      %p128 = por %p126, %p127
      %p129 = scmp.ne.s32.totalorder %s120, %s121
      %p130 = scmp.eq.s32.totalorder %s26, 0
      %p131 = por %p129, %p130
      %p132 = scmp.ne.s32.totalorder %s120, %s121
      %p133 = scmp.eq.s32.totalorder %s27, 1
      %p134 = por %p132, %p133
      %p136 = scmp.ne.s32.totalorder %s121, %s135
      %p137 = scmp.eq.s32.totalorder %s27, 0
      %p138 = por %p136, %p137
      %s140 = sadd.s32 %s139, 1
      %p143 = scmp.eq.s32.totalorder %s21, 1
      %p144 = scmp.ne.s32.totalorder %s139, %s141
      %p145 = scmp.eq.s32.totalorder %s21, 0
      %p146 = por %p144, %p145
      %p147 = scmp.ne.s32.totalorder %s139, %s141
      %p148 = scmp.eq.s32.totalorder %s26, 1
      %p149 = por %p147, %p148
      %p150 = scmp.ne.s32.totalorder %s141, %s142
      %p151 = scmp.eq.s32.totalorder %s26, 0
      %p152 = por %p150, %p151
      %p153 = scmp.ne.s32.totalorder %s141, %s142
      %p154 = scmp.eq.s32.totalorder %s27, 1
      %p155 = por %p153, %p154
      %p157 = scmp.ne.s32.totalorder %s142, %s156
      %p158 = scmp.eq.s32.totalorder %s27, 0
      %p159 = por %p157, %p158
      %s161 = sadd.s32 %s160, 1
      %p164 = scmp.eq.s32.totalorder %s21, 1
      %p165 = scmp.ne.s32.totalorder %s160, %s162
      %p166 = scmp.eq.s32.totalorder %s21, 0
      %p167 = por %p165, %p166
      %p168 = scmp.ne.s32.totalorder %s160, %s162
      %p169 = scmp.eq.s32.totalorder %s26, 1
      %p170 = por %p168, %p169
      %p171 = scmp.ne.s32.totalorder %s162, %s163
      %p172 = scmp.eq.s32.totalorder %s26, 0
      %p173 = por %p171, %p172
      %p174 = scmp.ne.s32.totalorder %s162, %s163
      %p175 = scmp.eq.s32.totalorder %s27, 1
      %p176 = por %p174, %p175
      %p178 = scmp.ne.s32.totalorder %s163, %s177
      %p179 = scmp.eq.s32.totalorder %s27, 0
      %p180 = por %p178, %p179
      %s182 = sadd.s32 %s181, 1
      %p185 = scmp.eq.s32.totalorder %s21, 1
      %p186 = scmp.ne.s32.totalorder %s181, %s183
      %p187 = scmp.eq.s32.totalorder %s21, 0
      %p188 = por %p186, %p187
      %p189 = scmp.ne.s32.totalorder %s181, %s183
      %p190 = scmp.eq.s32.totalorder %s26, 1
      %p191 = por %p189, %p190
      %p192 = scmp.ne.s32.totalorder %s183, %s184
      %p193 = scmp.eq.s32.totalorder %s26, 0
      %p194 = por %p192, %p193
      %p195 = scmp.ne.s32.totalorder %s183, %s184
      %p196 = scmp.eq.s32.totalorder %s27, 1
      %p197 = por %p195, %p196
      %p199 = scmp.ne.s32.totalorder %s184, %s198
      %p200 = scmp.eq.s32.totalorder %s27, 0
      %p201 = por %p199, %p200
      %s203 = sadd.s32 %s202, 1
      %p206 = scmp.eq.s32.totalorder %s21, 1
      %p207 = scmp.ne.s32.totalorder %s202, %s204
      %p208 = scmp.eq.s32.totalorder %s21, 0
      %p209 = por %p207, %p208
      %p210 = scmp.ne.s32.totalorder %s202, %s204
      %p211 = scmp.eq.s32.totalorder %s26, 1
      %p212 = por %p210, %p211
      %p213 = scmp.ne.s32.totalorder %s204, %s205
      %p214 = scmp.eq.s32.totalorder %s26, 0
      %p215 = por %p213, %p214
      %p216 = scmp.ne.s32.totalorder %s204, %s205
      %p217 = scmp.eq.s32.totalorder %s27, 1
      %p218 = por %p216, %p217
      %p220 = scmp.ne.s32.totalorder %s205, %s219
      %p221 = scmp.eq.s32.totalorder %s27, 0
      %p222 = por %p220, %p221
      %s224 = sadd.s32 %s223, 1
      %p227 = scmp.eq.s32.totalorder %s21, 1
      %p228 = scmp.ne.s32.totalorder %s223, %s225
      %p229 = scmp.eq.s32.totalorder %s21, 0
      %p230 = por %p228, %p229
      %p231 = scmp.ne.s32.totalorder %s223, %s225
      %p232 = scmp.eq.s32.totalorder %s26, 1
      %p233 = por %p231, %p232
      %p234 = scmp.ne.s32.totalorder %s225, %s226
      %p235 = scmp.eq.s32.totalorder %s26, 0
      %p236 = por %p234, %p235
      %p237 = scmp.ne.s32.totalorder %s225, %s226
      %p238 = scmp.eq.s32.totalorder %s27, 1
      %p239 = por %p237, %p238
      %p241 = scmp.ne.s32.totalorder %s226, %s240
      %p242 = scmp.eq.s32.totalorder %s27, 0
      %p243 = por %p241, %p242
      %s244 = ssub.s32 %s21, %s28
      %p245 = scmp.eq.s32.totalorder %s244, 0
      %s247 = sadd.s32 %s246, 1
      %s248 = scalar_select %p245, %s246, %s247
      %p251 = pneg %p245
      %p252 = scmp.eq.s32.totalorder %s21, 1
      %p253 = por %p251, %p252
      %p254 = scmp.ne.s32.totalorder %s246, %s249
      %p255 = scmp.eq.s32.totalorder %s21, 0
      %p256 = por %p254, %p255
      %p257 = scmp.ne.s32.totalorder %s246, %s249
      %p258 = scmp.eq.s32.totalorder %s26, 1
      %p259 = por %p257, %p258
      %p260 = scmp.ne.s32.totalorder %s249, %s250
      %p261 = scmp.eq.s32.totalorder %s26, 0
      %p262 = por %p260, %p261
      %p263 = scmp.ne.s32.totalorder %s249, %s250
      %p264 = scmp.eq.s32.totalorder %s27, 1
      %p265 = por %p263, %p264
      %p267 = scmp.ne.s32.totalorder %s250, %s266
      %p268 = scmp.eq.s32.totalorder %s27, 0
      %p269 = por %p267, %p268
      %s270 = ssub.s32 %s21, %s28
      %p271 = scmp.eq.s32.totalorder %s270, 0
      %s273 = sadd.s32 %s272, 1
      %s274 = scalar_select %p271, %s272, %s273
      %p277 = pneg %p271
      %p278 = scmp.eq.s32.totalorder %s21, 1
      %p279 = por %p277, %p278
      %p280 = scmp.ne.s32.totalorder %s272, %s275
      %p281 = scmp.eq.s32.totalorder %s21, 0
      %p282 = por %p280, %p281
      %p283 = scmp.ne.s32.totalorder %s272, %s275
      %p284 = scmp.eq.s32.totalorder %s26, 1
      %p285 = por %p283, %p284
      %p286 = scmp.ne.s32.totalorder %s275, %s276
      %p287 = scmp.eq.s32.totalorder %s26, 0
      %p288 = por %p286, %p287
      %p289 = scmp.ne.s32.totalorder %s275, %s276
      %p290 = scmp.eq.s32.totalorder %s27, 1
      %p291 = por %p289, %p290
      %p293 = scmp.ne.s32.totalorder %s276, %s292
      %p294 = scmp.eq.s32.totalorder %s27, 0
      %p295 = por %p293, %p294
      %p296 = scmp.le.s32.totalorder 1, %s21
      %p297 = scmp.lt.s32.totalorder %s21, 3
      %p298 = pnand %p296, %p297
      %p299 = pneg %p298
      // Predicated region
      $region9: #{encoder_forward.1} parent=5 // pred_check
        _
      $region10: #{encoder_forward.1} parent=5 // pred_check_branch
        %301 = sbr.rel (%p298) target = $region12
      $region11: #{encoder_forward.1} parent=5 // pred_region
        %s302 = ssub.s32 %s21, 1
        // Predicated region
        $region13: #{encoder_forward.1} parent=11 // pred_check
          %p303 = pneg %p68
        $region14: #{encoder_forward.1} parent=11 // pred_check_branch
          %305 = sbr.rel (%p303) target = $region16
        $region15: #{encoder_forward.1} parent=11 // pred_region
          _
        $region16: #{encoder_forward.1} parent=11 // pred_fallthru
          _
        // Predicated region
        $region17: #{encoder_forward.1} parent=11 // pred_check
          %p306 = pneg %p89
        $region18: #{encoder_forward.1} parent=11 // pred_check_branch
          %308 = sbr.rel (%p306) target = $region20
        $region19: #{encoder_forward.1} parent=11 // pred_region
          %s310 = ssub.s32 3072, 3072
          %311 = vsyncadd [#allocation3], %s310
          %s312 = sshll.u32 [#allocation2], 4
          %s313 = int_to_ptr.vmem [resolvable:$true] %s312
          %318 = dma.hbm_to_vmem [thread:$0]  %s2, 3072, %s313, [#allocation3], 128, 128, 8
        $region20: #{encoder_forward.1} parent=11 // pred_fallthru
          _
        // Predicated region
        $region21: #{encoder_forward.1} parent=11 // pred_check
          %p319 = pneg %p110
        $region22: #{encoder_forward.1} parent=11 // pred_check_branch
          %321 = sbr.rel (%p319) target = $region24
        $region23: #{encoder_forward.1} parent=11 // pred_region
          _
        $region24: #{encoder_forward.1} parent=11 // pred_fallthru
          _
        // Predicated region
        $region25: #{encoder_forward.1} parent=11 // pred_check
          %p322 = pneg %p131
        $region26: #{encoder_forward.1} parent=11 // pred_check_branch
          %324 = sbr.rel (%p322) target = $region28
        $region27: #{encoder_forward.1} parent=11 // pred_region
          %s326 = ssub.s32 1024, 1024
          %327 = vsyncadd [#allocation5], %s326
          %s328 = sshll.u32 [#allocation4], 4
          %s329 = int_to_ptr.vmem [resolvable:$true] %s328
          %334 = dma.hbm_to_vmem [thread:$0]  %s4, 1024, %s329, [#allocation5], 128, 128, 8
        $region28: #{encoder_forward.1} parent=11 // pred_fallthru
          _
        // Predicated region
        $region29: #{encoder_forward.1} parent=11 // pred_check
          %p335 = pneg %p152
        $region30: #{encoder_forward.1} parent=11 // pred_check_branch
          %337 = sbr.rel (%p335) target = $region32
        $region31: #{encoder_forward.1} parent=11 // pred_region
          _
        $region32: #{encoder_forward.1} parent=11 // pred_fallthru
          _
        // Predicated region
        $region33: #{encoder_forward.1} parent=11 // pred_check
          %p338 = pneg %p173
        $region34: #{encoder_forward.1} parent=11 // pred_check_branch
          %340 = sbr.rel (%p338) target = $region36
        $region35: #{encoder_forward.1} parent=11 // pred_region
          %s342 = ssub.s32 1024, 1024
          %343 = vsyncadd [#allocation5], %s342
          %s344 = sshll.u32 [#allocation6], 4
          %s345 = int_to_ptr.vmem [resolvable:$true] %s344
          %350 = dma.hbm_to_vmem [thread:$0]  %s6, 1024, %s345, [#allocation5], 128, 128, 8
        $region36: #{encoder_forward.1} parent=11 // pred_fallthru
          _
        // Predicated region
        $region37: #{encoder_forward.1} parent=11 // pred_check
          %p351 = pneg %p194
        $region38: #{encoder_forward.1} parent=11 // pred_check_branch
          %353 = sbr.rel (%p351) target = $region40
        $region39: #{encoder_forward.1} parent=11 // pred_region
          %s355 = ssub.s32 2048, 2048
          %356 = vsyncadd [#allocation8], %s355
          %s357 = sshll.u32 [#allocation7], 4
          %s358 = int_to_ptr.vmem [resolvable:$true] %s357
          %363 = dma.hbm_to_vmem [thread:$0]  %s7, 2048, %s358, [#allocation8], 128, 128, 8
        $region40: #{encoder_forward.1} parent=11 // pred_fallthru
          _
        // Predicated region
        $region41: #{encoder_forward.1} parent=11 // pred_check
          %p364 = pneg %p215
        $region42: #{encoder_forward.1} parent=11 // pred_check_branch
          %366 = sbr.rel (%p364) target = $region44
        $region43: #{encoder_forward.1} parent=11 // pred_region
          _
        $region44: #{encoder_forward.1} parent=11 // pred_fallthru
          _
        // Predicated region
        $region45: #{encoder_forward.1} parent=11 // pred_check
          %p367 = pneg %p236
        $region46: #{encoder_forward.1} parent=11 // pred_check_branch
          %369 = sbr.rel (%p367) target = $region48
        $region47: #{encoder_forward.1} parent=11 // pred_region
          _
        $region48: #{encoder_forward.1} parent=11 // pred_fallthru
          _
      $region12: #{encoder_forward.1} parent=5 // pred_fallthru
        _
      %p370 = scmp.lt.s32.totalorder %s21, 2
      // Predicated region
      $region49: #{encoder_forward.1} parent=5 // pred_check
        %p371 = pneg %p370
      $region50: #{encoder_forward.1} parent=5 // pred_check_branch
        %373 = sbr.rel (%p371) target = $region52
      $region51: #{encoder_forward.1} parent=5 // pred_region
        // Predicated region
        $region53: #{encoder_forward.1} parent=51 // pred_check
          %p374 = pneg %p41
        $region54: #{encoder_forward.1} parent=51 // pred_check_branch
          %376 = sbr.rel (%p374) target = $region56
        $region55: #{encoder_forward.1} parent=51 // pred_region
          %p377 = scmp.lt.s32.totalorder %s21, 1
          %s378 = scalar_select %p377, %s21, 1
          %s379 = smul.addr %s378, 8
          %s380 = scalar_lea.vmem %s0, %s379
        $region56: #{encoder_forward.1} parent=51 // pred_fallthru
          _
      $region52: #{encoder_forward.1} parent=5 // pred_fallthru
        _
      %p381 = scmp.le.s32.totalorder 1, %s21
      %p382 = scmp.lt.s32.totalorder %s21, 3
      %p383 = pnand %p381, %p382
      %p384 = pneg %p383
      // Predicated region
      $region57: #{encoder_forward.1} parent=5 // pred_check
        _
      $region58: #{encoder_forward.1} parent=5 // pred_check_branch
        %386 = sbr.rel (%p383) target = $region60
      $region59: #{encoder_forward.1} parent=5 // pred_region
        %s387 = ssub.s32 %s21, 1
        // Predicated region
        $region61: #{encoder_forward.1} parent=59 // pred_check
          %p388 = pneg %p89
        $region62: #{encoder_forward.1} parent=59 // pred_check_branch
          %390 = sbr.rel (%p388) target = $region64
        $region63: #{encoder_forward.1} parent=59 // pred_region
          %391 = dma.done [#allocation3], 3072
        $region64: #{encoder_forward.1} parent=59 // pred_fallthru
          _
        // Predicated region
        $region65: #{encoder_forward.1} parent=59 // pred_check
          %p392 = pneg %p131
        $region66: #{encoder_forward.1} parent=59 // pred_check_branch
          %394 = sbr.rel (%p392) target = $region68
        $region67: #{encoder_forward.1} parent=59 // pred_region
          %395 = dma.done [#allocation5], 1024
        $region68: #{encoder_forward.1} parent=59 // pred_fallthru
          _
        // Predicated region
        $region69: #{encoder_forward.1} parent=59 // pred_check
          %p396 = pneg %p173
        $region70: #{encoder_forward.1} parent=59 // pred_check_branch
          %398 = sbr.rel (%p396) target = $region72
        $region71: #{encoder_forward.1} parent=59 // pred_region
          %399 = dma.done [#allocation5], 1024
        $region72: #{encoder_forward.1} parent=59 // pred_fallthru
          _
        // Predicated region
        $region73: #{encoder_forward.1} parent=59 // pred_check
          %p400 = pneg %p194
        $region74: #{encoder_forward.1} parent=59 // pred_check_branch
          %402 = sbr.rel (%p400) target = $region76
        $region75: #{encoder_forward.1} parent=59 // pred_region
          %403 = dma.done [#allocation8], 2048
        $region76: #{encoder_forward.1} parent=59 // pred_fallthru
          _
        %p404 = scmp.lt.s32.totalorder %s26, 1
        %s405 = scalar_select %p404, %s26, 1
        %s406 = smul.addr %s405, 8
        %s407 = scalar_lea.vmem %s0, %s406
        %p408 = pneg %p47
        %p409 = pneg %p44
        %p410 = pneg %p68
        %p411 = pneg %p65
        %p412 = pneg %p89
        %p413 = pneg %p86
        %p414 = pneg %p110
        %p415 = pneg %p107
        %p416 = pneg %p131
        %p417 = pneg %p128
        %p418 = pneg %p152
        %p419 = pneg %p149
        %p420 = pneg %p173
        %p421 = pneg %p170
        %p422 = pneg %p194
        %p423 = pneg %p191
        %p424 = pneg %p215
        %p425 = pneg %p212
        %p426 = pneg %p236
        %p427 = pneg %p233
        %p428 = pneg %p262
        %p429 = pneg %p259
        %p430 = scmp.lt.s32.totalorder %s26, 1
        %s431 = scalar_select %p430, %s26, 1
        %s432 = smul.addr %s431, 2
        %s433 = scalar_lea.vmem %s10, %s432
        %p434 = pneg %p288
        %p435 = pneg %p285
        %p436 = scmp.lt.s32.totalorder %s26, 1
        %s437 = scalar_select %p436, %s26, 1
        %s438 = smul.addr %s437, 3
        %s439 = smul.addr %s438, 2
        %s440 = scalar_lea.vmem %s11, %s439
        %p441 = scmp.lt.s32.totalorder %s26, 1
        %s442 = scalar_select %p441, %s26, 1
        %s443 = smul.addr %s442, 8
        %s444 = scalar_lea.vmem %s0, %s443
        %p445 = scmp.lt.s32.totalorder %s26, 1
        %s446 = scalar_select %p445, %s26, 1
        %s447 = smul.addr %s446, 2
        %s448 = scalar_lea.vmem %s10, %s447
        %p449 = scmp.lt.s32.totalorder %s26, 1
        %s450 = scalar_select %p449, %s26, 1
        %s451 = smul.addr %s450, 3
        %s452 = smul.addr %s451, 2
        %s453 = scalar_lea.vmem %s11, %s452
        %v454 = vld [vmem:[%s444] sm:$0xff]
        %v455 = vld [vmem:[%s1] sm:$0xf]
        %v457 = vrot.slane %v454, 4
        %vm459 = vcmask 1043456
        %v460 = vsel %vm459, %v455, %v457
        %v461 = vld [vmem:[#allocation2] sm:$0xff]
        %v462 = vld [vmem:[#allocation2 + $0x8] sm:$0xff]
        %v463 = vld [vmem:[#allocation2 + $0x10] sm:$0xff]
        %v464 = vld [vmem:[#allocation2 + $0x18] sm:$0xff]
        %v465 = vld [vmem:[%s3] sm:$0x1]
        %v467 = vlaneseq
        %v468 = vshrl.u32 %v467, 7
        %v469 = vsub.s32 0, %v468
        %v470 = vrot.slane %v465, %v469
        %vm472 = vcmask 261120
        %v473 = vsel %vm472, %v454, 0
        %475 = vmatprep.subr.mxu0 0.0
        %476 = vmatpush1.msra.mxu0 %v461
        %477 = vmatprep.subr.mxu0 0.0
        %478 = vmatpush1.msra.mxu0 %v462
        %479 = vmatprep.subr.mxu0 0.0
        %480 = vmatpush1.msra.mxu0 %v463
        %481 = vmatprep.subr.mxu0 0.0
        %482 = vmatpush1.msra.mxu0 %v464
        %483 = vmatprep.subr.mxu0 0.0
        %484 = vmatpush1.msra.mxu0 0.0
        %485 = vmatprep.subr.mxu0 0.0
        %486 = vmatpush1.msra.mxu0 0.0
        %487 = vmatprep.subr.mxu0 0.0
        %488 = vmatpush1.msra.mxu0 0.0
        %489 = vmatprep.subr.mxu0 0.0
        %490 = vmatpush1.msra.mxu0 0.0
        %491 = vmatprep.subr.mxu0 0.0
        %492 = vmatpush1.msra.mxu0 0.0
        %493 = vmatprep.subr.mxu0 0.0
        %494 = vmatpush1.msra.mxu0 0.0
        %495 = vmatprep.subr.mxu0 0.0
        %496 = vmatpush1.msra.mxu0 0.0
        %497 = vmatprep.subr.mxu0 0.0
        %498 = vmatpush1.msra.mxu0 0.0
        %499 = vmatprep.subr.mxu0 0.0
        %500 = vmatpush1.msra.mxu0 0.0
        %501 = vmatprep.subr.mxu0 0.0
        %502 = vmatpush1.msra.mxu0 0.0
        %503 = vmatprep.subr.mxu0 0.0
        %504 = vmatpush1.msra.mxu0 0.0
        %505 = vmatprep.subr.mxu0 0.0
        %506 = vmatpush1.msra.mxu0 0.0
        %507 = vmatprep.subr.mxu0 0.0
        %508 = vmatpush1.msra.mxu0 0.0
        %509 = vmatprep.subr.mxu0 0.0
        %510 = vmatpush1.msra.mxu0 0.0
        %511 = vmatprep.subr.mxu0 0.0
        %512 = vmatpush1.msra.mxu0 0.0
        %513 = vmatprep.subr.mxu0 0.0
        %514 = vmatpush1.msra.mxu0 0.0
        %515 = vmatprep.subr.mxu0 0.0
        %516 = vmatpush1.msra.mxu0 0.0
        %517 = vmatprep.subr.mxu0 0.0
        %518 = vmatpush1.msra.mxu0 0.0
        %519 = vmatprep.subr.mxu0 0.0
        %520 = vmatpush1.msra.mxu0 0.0
        %521 = vmatprep.subr.mxu0 0.0
        %522 = vmatpush1.msra.mxu0 0.0
        %523 = vmatprep.subr.mxu0 0.0
        %524 = vmatpush1.msra.mxu0 0.0
        %525 = vmatprep.subr.mxu0 0.0
        %526 = vmatpush1.msra.mxu0 0.0
        %527 = vmatprep.subr.mxu0 0.0
        %528 = vmatpush1.msra.mxu0 0.0
        %529 = vmatprep.subr.mxu0 0.0
        %530 = vmatpush1.msra.mxu0 0.0
        %531 = vmatprep.subr.mxu0 0.0
        %532 = vmatpush1.msra.mxu0 0.0
        %533 = vmatprep.subr.mxu0 0.0
        %534 = vmatpush1.msra.mxu0 0.0
        %535 = vmatprep.subr.mxu0 0.0
        %536 = vmatpush1.msra.mxu0 0.0
        %537 = vmatprep.subr.mxu0 0.0
        %538 = vmatpush1.msra.mxu0 0.0
        %539 = vmatprep.mubr.f32.mxu0 0.0
        %540 = vmatmul.mubr.f32.gmra.mrb[0].mxu0 %v473
        %v541 = vpop.f32.mrb[0].mxu0
        %v542 = vadd.f32 %v470, %v541
        %v543 = vpop.f32.mrb[0].mxu0
        %544 = vdwg.mxu0
        %s545 = scalar_lea.vmem [#allocation2], 32
        %v546 = vld [vmem:[%s545] sm:$0xff]
        %v547 = vld [vmem:[%s545 + $0x8] sm:$0xff]
        %v548 = vld [vmem:[%s545 + $0x10] sm:$0xff]
        %v549 = vld [vmem:[%s545 + $0x18] sm:$0xff]
        %s550 = scalar_lea.vmem %s3, 1
        %v551 = vld [vmem:[%s550] sm:$0x1]
        %v553 = vlaneseq
        %v554 = vshrl.u32 %v553, 7
        %v555 = vsub.s32 0, %v554
        %v556 = vrot.slane %v551, %v555
        %v559 = vsel %vm472, %v460, 0
        %v561 = vsel %vm472, %v457, 0
        %563 = vmatprep.subr.mxu0 0.0
        %564 = vmatpush1.msra.mxu0 %v546
        %565 = vmatprep.subr.mxu0 0.0
        %566 = vmatpush1.msra.mxu0 %v547
        %567 = vmatprep.subr.mxu0 0.0
        %568 = vmatpush1.msra.mxu0 %v548
        %569 = vmatprep.subr.mxu0 0.0
        %570 = vmatpush1.msra.mxu0 %v549
        %571 = vmatprep.subr.mxu0 0.0
        %572 = vmatpush1.msra.mxu0 0.0
        %573 = vmatprep.subr.mxu0 0.0
        %574 = vmatpush1.msra.mxu0 0.0
        %575 = vmatprep.subr.mxu0 0.0
        %576 = vmatpush1.msra.mxu0 0.0
        %577 = vmatprep.subr.mxu0 0.0
        %578 = vmatpush1.msra.mxu0 0.0
        %579 = vmatprep.subr.mxu0 0.0
        %580 = vmatpush1.msra.mxu0 0.0
        %581 = vmatprep.subr.mxu0 0.0
        %582 = vmatpush1.msra.mxu0 0.0
        %583 = vmatprep.subr.mxu0 0.0
        %584 = vmatpush1.msra.mxu0 0.0
        %585 = vmatprep.subr.mxu0 0.0
        %586 = vmatpush1.msra.mxu0 0.0
        %587 = vmatprep.subr.mxu0 0.0
        %588 = vmatpush1.msra.mxu0 0.0
        %589 = vmatprep.subr.mxu0 0.0
        %590 = vmatpush1.msra.mxu0 0.0
        %591 = vmatprep.subr.mxu0 0.0
        %592 = vmatpush1.msra.mxu0 0.0
        %593 = vmatprep.subr.mxu0 0.0
        %594 = vmatpush1.msra.mxu0 0.0
        %595 = vmatprep.subr.mxu0 0.0
        %596 = vmatpush1.msra.mxu0 0.0
        %597 = vmatprep.subr.mxu0 0.0
        %598 = vmatpush1.msra.mxu0 0.0
        %599 = vmatprep.subr.mxu0 0.0
        %600 = vmatpush1.msra.mxu0 0.0
        %601 = vmatprep.subr.mxu0 0.0
        %602 = vmatpush1.msra.mxu0 0.0
        %603 = vmatprep.subr.mxu0 0.0
        %604 = vmatpush1.msra.mxu0 0.0
        %605 = vmatprep.subr.mxu0 0.0
        %606 = vmatpush1.msra.mxu0 0.0
        %607 = vmatprep.subr.mxu0 0.0
        %608 = vmatpush1.msra.mxu0 0.0
        %609 = vmatprep.subr.mxu0 0.0
        %610 = vmatpush1.msra.mxu0 0.0
        %611 = vmatprep.subr.mxu0 0.0
        %612 = vmatpush1.msra.mxu0 0.0
        %613 = vmatprep.subr.mxu0 0.0
        %614 = vmatpush1.msra.mxu0 0.0
        %615 = vmatprep.subr.mxu0 0.0
        %616 = vmatpush1.msra.mxu0 0.0
        %617 = vmatprep.subr.mxu0 0.0
        %618 = vmatpush1.msra.mxu0 0.0
        %619 = vmatprep.subr.mxu0 0.0
        %620 = vmatpush1.msra.mxu0 0.0
        %621 = vmatprep.subr.mxu0 0.0
        %622 = vmatpush1.msra.mxu0 0.0
        %623 = vmatprep.subr.mxu0 0.0
        %624 = vmatpush1.msra.mxu0 0.0
        %625 = vmatprep.subr.mxu0 0.0
        %626 = vmatpush1.msra.mxu0 0.0
        %627 = vmatprep.mubr.f32.mxu0 0.0
        %628 = vmatmul.mubr.f32.gmra.mrb[0].mxu0 %v559
        %v629 = vpop.f32.mrb[0].mxu0
        %v630 = vadd.f32 %v556, %v629
        %v631 = vpop.f32.mrb[0].mxu0
        %632 = vmatprep.mubr.f32.mxu0 0.0
        %633 = vmatmul.mubr.f32.gmra.mrb[0].mxu0 %v561
        %v634 = vpop.f32.mrb[0].mxu0
        %v635 = vadd.f32 %v556, %v634
        %v636 = vpop.f32.mrb[0].mxu0
        %637 = vdwg.mxu0
        %s638 = scalar_lea.vmem [#allocation2], 64
        %v639 = vld [vmem:[%s638] sm:$0xff]
        %v640 = vld [vmem:[%s638 + $0x8] sm:$0xff]
        %v641 = vld [vmem:[%s638 + $0x10] sm:$0xff]
        %v642 = vld [vmem:[%s638 + $0x18] sm:$0xff]
        %s643 = scalar_lea.vmem %s3, 2
        %v644 = vld [vmem:[%s643] sm:$0x1]
        %v646 = vlaneseq
        %v647 = vshrl.u32 %v646, 7
        %v648 = vsub.s32 0, %v647
        %v649 = vrot.slane %v644, %v648
        %651 = vmatprep.subr.mxu0 0.0
        %652 = vmatpush1.msra.mxu0 %v639
        %653 = vmatprep.subr.mxu0 0.0
        %654 = vmatpush1.msra.mxu0 %v640
        %655 = vmatprep.subr.mxu0 0.0
        %656 = vmatpush1.msra.mxu0 %v641
        %657 = vmatprep.subr.mxu0 0.0
        %658 = vmatpush1.msra.mxu0 %v642
        %659 = vmatprep.subr.mxu0 0.0
        %660 = vmatpush1.msra.mxu0 0.0
        %661 = vmatprep.subr.mxu0 0.0
        %662 = vmatpush1.msra.mxu0 0.0
        %663 = vmatprep.subr.mxu0 0.0
        %664 = vmatpush1.msra.mxu0 0.0
        %665 = vmatprep.subr.mxu0 0.0
        %666 = vmatpush1.msra.mxu0 0.0
        %667 = vmatprep.subr.mxu0 0.0
        %668 = vmatpush1.msra.mxu0 0.0
        %669 = vmatprep.subr.mxu0 0.0
        %670 = vmatpush1.msra.mxu0 0.0
        %671 = vmatprep.subr.mxu0 0.0
        %672 = vmatpush1.msra.mxu0 0.0
        %673 = vmatprep.subr.mxu0 0.0
        %674 = vmatpush1.msra.mxu0 0.0
        %675 = vmatprep.subr.mxu0 0.0
        %676 = vmatpush1.msra.mxu0 0.0
        %677 = vmatprep.subr.mxu0 0.0
        %678 = vmatpush1.msra.mxu0 0.0
        %679 = vmatprep.subr.mxu0 0.0
        %680 = vmatpush1.msra.mxu0 0.0
        %681 = vmatprep.subr.mxu0 0.0
        %682 = vmatpush1.msra.mxu0 0.0
        %683 = vmatprep.subr.mxu0 0.0
        %684 = vmatpush1.msra.mxu0 0.0
        %685 = vmatprep.subr.mxu0 0.0
        %686 = vmatpush1.msra.mxu0 0.0
        %687 = vmatprep.subr.mxu0 0.0
        %688 = vmatpush1.msra.mxu0 0.0
        %689 = vmatprep.subr.mxu0 0.0
        %690 = vmatpush1.msra.mxu0 0.0
        %691 = vmatprep.subr.mxu0 0.0
        %692 = vmatpush1.msra.mxu0 0.0
        %693 = vmatprep.subr.mxu0 0.0
        %694 = vmatpush1.msra.mxu0 0.0
        %695 = vmatprep.subr.mxu0 0.0
        %696 = vmatpush1.msra.mxu0 0.0
        %697 = vmatprep.subr.mxu0 0.0
        %698 = vmatpush1.msra.mxu0 0.0
        %699 = vmatprep.subr.mxu0 0.0
        %700 = vmatpush1.msra.mxu0 0.0
        %701 = vmatprep.subr.mxu0 0.0
        %702 = vmatpush1.msra.mxu0 0.0
        %703 = vmatprep.subr.mxu0 0.0
        %704 = vmatpush1.msra.mxu0 0.0
        %705 = vmatprep.subr.mxu0 0.0
        %706 = vmatpush1.msra.mxu0 0.0
        %707 = vmatprep.subr.mxu0 0.0
        %708 = vmatpush1.msra.mxu0 0.0
        %709 = vmatprep.subr.mxu0 0.0
        %710 = vmatpush1.msra.mxu0 0.0
        %711 = vmatprep.subr.mxu0 0.0
        %712 = vmatpush1.msra.mxu0 0.0
        %713 = vmatprep.subr.mxu0 0.0
        %714 = vmatpush1.msra.mxu0 0.0
        %715 = vmatprep.mubr.f32.mxu0 0.0
        %716 = vmatmul.mubr.f32.gmra.mrb[0].mxu0 %v559
        %v717 = vpop.f32.mrb[0].mxu0
        %v718 = vadd.f32 %v649, %v717
        %v719 = vpop.f32.mrb[0].mxu0
        %720 = vmatprep.mubr.f32.mxu0 0.0
        %721 = vmatmul.mubr.f32.gmra.mrb[0].mxu0 %v561
        %v722 = vpop.f32.mrb[0].mxu0
        %v723 = vadd.f32 %v649, %v722
        %v724 = vpop.f32.mrb[0].mxu0
        %725 = vdwg.mxu0
        %v726 = vld [vmem:[#allocation4] sm:$0xff]
        %v727 = vld [vmem:[#allocation4 + $0x8] sm:$0xff]
        %v728 = vld [vmem:[#allocation4 + $0x10] sm:$0xff]
        %v729 = vld [vmem:[#allocation4 + $0x18] sm:$0xff]
        %vm730 = vcmask 64512
        %v732 = vsel %vm730, %v542, 0
        %v735 = vsel %vm730, %v630, 0
        %v738 = vsel %vm730, %v635, 0
        %740 = vmatprep.subr.mxu0 0.0
        %741 = vmatpush1.xpose.msra.mxu0 %v735
        %742 = vmatprep.subr.mxu0 0.0
        %743 = vmatpush1.xpose.msra.mxu0 %v738
        %744 = vmatprep.subr.mxu0 0.0
        %745 = vmatpush1.xpose.msra.mxu0 0.0
        %746 = vmatprep.subr.mxu0 0.0
        %747 = vmatpush1.xpose.msra.mxu0 0.0
        %748 = vmatprep.subr.mxu0 0.0
        %749 = vmatpush1.xpose.msra.mxu0 0.0
        %750 = vmatprep.subr.mxu0 0.0
        %751 = vmatpush1.xpose.msra.mxu0 0.0
        %752 = vmatprep.subr.mxu0 0.0
        %753 = vmatpush1.xpose.msra.mxu0 0.0
        %754 = vmatprep.subr.mxu0 0.0
        %755 = vmatpush1.xpose.msra.mxu0 0.0
        %756 = vmatprep.subr.mxu0 0.0
        %757 = vmatpush1.xpose.msra.mxu0 0.0
        %758 = vmatprep.subr.mxu0 0.0
        %759 = vmatpush1.xpose.msra.mxu0 0.0
        %760 = vmatprep.subr.mxu0 0.0
        %761 = vmatpush1.xpose.msra.mxu0 0.0
        %762 = vmatprep.subr.mxu0 0.0
        %763 = vmatpush1.xpose.msra.mxu0 0.0
        %764 = vmatprep.subr.mxu0 0.0
        %765 = vmatpush1.xpose.msra.mxu0 0.0
        %766 = vmatprep.subr.mxu0 0.0
        %767 = vmatpush1.xpose.msra.mxu0 0.0
        %768 = vmatprep.subr.mxu0 0.0
        %769 = vmatpush1.xpose.msra.mxu0 0.0
        %770 = vmatprep.subr.mxu0 0.0
        %771 = vmatpush1.xpose.msra.mxu0 0.0
        %772 = vmatprep.subr.mxu0 0.0
        %773 = vmatpush1.xpose.msra.mxu0 0.0
        %774 = vmatprep.subr.mxu0 0.0
        %775 = vmatpush1.xpose.msra.mxu0 0.0
        %776 = vmatprep.subr.mxu0 0.0
        %777 = vmatpush1.xpose.msra.mxu0 0.0
        %778 = vmatprep.subr.mxu0 0.0
        %779 = vmatpush1.xpose.msra.mxu0 0.0
        %780 = vmatprep.subr.mxu0 0.0
        %781 = vmatpush1.xpose.msra.mxu0 0.0
        %782 = vmatprep.subr.mxu0 0.0
        %783 = vmatpush1.xpose.msra.mxu0 0.0
        %784 = vmatprep.subr.mxu0 0.0
        %785 = vmatpush1.xpose.msra.mxu0 0.0
        %786 = vmatprep.subr.mxu0 0.0
        %787 = vmatpush1.xpose.msra.mxu0 0.0
        %788 = vmatprep.subr.mxu0 0.0
        %789 = vmatpush1.xpose.msra.mxu0 0.0
        %790 = vmatprep.subr.mxu0 0.0
        %791 = vmatpush1.xpose.msra.mxu0 0.0
        %792 = vmatprep.subr.mxu0 0.0
        %793 = vmatpush1.xpose.msra.mxu0 0.0
        %794 = vmatprep.subr.mxu0 0.0
        %795 = vmatpush1.xpose.msra.mxu0 0.0
        %796 = vmatprep.subr.mxu0 0.0
        %797 = vmatpush1.xpose.msra.mxu0 0.0
        %798 = vmatprep.subr.mxu0 0.0
        %799 = vmatpush1.xpose.msra.mxu0 0.0
        %800 = vmatprep.subr.mxu0 0.0
        %801 = vmatpush1.xpose.msra.mxu0 0.0
        %802 = vmatprep.subr.mxu0 0.0
        %803 = vmatpush1.xpose.msra.mxu0 0.0
        %804 = vmatprep.mubr.f32.mxu0 0.0
        %805 = vmatmul.mubr.f32.gmra.mrb[0].mxu0 %v732
        %v806 = vpop.f32.mrb[0].mxu0
        %v807 = vadd.f32 0.0, %v806
        %v808 = vpop.f32.mrb[0].mxu0
        %809 = vdwg.mxu0
        %v810 = vmul.f32 %v807, 0.35355338
        %vm811 = vcmask 97280
        %v812 = vsel %vm811, %v810, -inf
        %813 = vmax.xlane.f32.xlu0 %v812
        %v814 = vpop.xlane.xlu0 %813
        %v815 = vsub.f32 %v810, %v814
        %v816 = vmul.f32 %v815, 1.442695
        %v817 = vpow.pop %v816
        %v818 = vsel %vm811, %v817, 0.0
        %819 = vadd.xlane.f32.xlu0 %v818
        %v820 = vpop.xlane.xlu0 %819
        %v821 = vrcp.pop %v820
        %v822 = vmul.f32 %v817, %v821
        %v824 = vsel %vm811, %v822, 0
        %v827 = vsel %vm459, %v723, 0
        %829 = vmatprep.subr.mxu0 0.0
        %830 = vmatpush1.msra.mxu0 %v718
        %831 = vmatprep.subr.mxu0 0.0
        %832 = vmatpush1.msra.mxu0 %v827
        %833 = vmatprep.subr.mxu0 0.0
        %834 = vmatpush1.msra.mxu0 0.0
        %835 = vmatprep.subr.mxu0 0.0
        %836 = vmatpush1.msra.mxu0 0.0
        %837 = vmatprep.subr.mxu0 0.0
        %838 = vmatpush1.msra.mxu0 0.0
        %839 = vmatprep.subr.mxu0 0.0
        %840 = vmatpush1.msra.mxu0 0.0
        %841 = vmatprep.subr.mxu0 0.0
        %842 = vmatpush1.msra.mxu0 0.0
        %843 = vmatprep.subr.mxu0 0.0
        %844 = vmatpush1.msra.mxu0 0.0
        %845 = vmatprep.subr.mxu0 0.0
        %846 = vmatpush1.msra.mxu0 0.0
        %847 = vmatprep.subr.mxu0 0.0
        %848 = vmatpush1.msra.mxu0 0.0
        %849 = vmatprep.subr.mxu0 0.0
        %850 = vmatpush1.msra.mxu0 0.0
        %851 = vmatprep.subr.mxu0 0.0
        %852 = vmatpush1.msra.mxu0 0.0
        %853 = vmatprep.subr.mxu0 0.0
        %854 = vmatpush1.msra.mxu0 0.0
        %855 = vmatprep.subr.mxu0 0.0
        %856 = vmatpush1.msra.mxu0 0.0
        %857 = vmatprep.subr.mxu0 0.0
        %858 = vmatpush1.msra.mxu0 0.0
        %859 = vmatprep.subr.mxu0 0.0
        %860 = vmatpush1.msra.mxu0 0.0
        %861 = vmatprep.subr.mxu0 0.0
        %862 = vmatpush1.msra.mxu0 0.0
        %863 = vmatprep.subr.mxu0 0.0
        %864 = vmatpush1.msra.mxu0 0.0
        %865 = vmatprep.subr.mxu0 0.0
        %866 = vmatpush1.msra.mxu0 0.0
        %867 = vmatprep.subr.mxu0 0.0
        %868 = vmatpush1.msra.mxu0 0.0
        %869 = vmatprep.subr.mxu0 0.0
        %870 = vmatpush1.msra.mxu0 0.0
        %871 = vmatprep.subr.mxu0 0.0
        %872 = vmatpush1.msra.mxu0 0.0
        %873 = vmatprep.subr.mxu0 0.0
        %874 = vmatpush1.msra.mxu0 0.0
        %875 = vmatprep.subr.mxu0 0.0
        %876 = vmatpush1.msra.mxu0 0.0
        %877 = vmatprep.subr.mxu0 0.0
        %878 = vmatpush1.msra.mxu0 0.0
        %879 = vmatprep.subr.mxu0 0.0
        %880 = vmatpush1.msra.mxu0 0.0
        %881 = vmatprep.subr.mxu0 0.0
        %882 = vmatpush1.msra.mxu0 0.0
        %883 = vmatprep.subr.mxu0 0.0
        %884 = vmatpush1.msra.mxu0 0.0
        %885 = vmatprep.subr.mxu0 0.0
        %886 = vmatpush1.msra.mxu0 0.0
        %887 = vmatprep.subr.mxu0 0.0
        %888 = vmatpush1.msra.mxu0 0.0
        %889 = vmatprep.subr.mxu0 0.0
        %890 = vmatpush1.msra.mxu0 0.0
        %891 = vmatprep.subr.mxu0 0.0
        %892 = vmatpush1.msra.mxu0 0.0
        %893 = vmatprep.mubr.f32.mxu0 0.0
        %894 = vmatmul.mubr.f32.gmra.mrb[0].mxu0 %v824
        %v895 = vpop.f32.mrb[0].mxu0
        %v896 = vadd.f32 0.0, %v895
        %v897 = vpop.f32.mrb[0].mxu0
        %898 = vdwg.mxu0
        %899 = vrot.lane.b32.xlu0 %v542, 120
        %v900 = vpop.permute.xlu0 %899
        %901 = vrot.lane.b32.xlu0 %v630, 120
        %v902 = vpop.permute.xlu0 %901
        %903 = vrot.lane.b32.xlu0 %v635, 120
        %v904 = vpop.permute.xlu0 %903
        %v905 = vsel %vm730, %v900, 0
        %v907 = vsel %vm730, %v902, 0
        %v909 = vsel %vm730, %v904, 0
        %911 = vmatprep.subr.mxu0 0.0
        %912 = vmatpush1.xpose.msra.mxu0 %v907
        %913 = vmatprep.subr.mxu0 0.0
        %914 = vmatpush1.xpose.msra.mxu0 %v909
        %915 = vmatprep.subr.mxu0 0.0
        %916 = vmatpush1.xpose.msra.mxu0 0.0
        %917 = vmatprep.subr.mxu0 0.0
        %918 = vmatpush1.xpose.msra.mxu0 0.0
        %919 = vmatprep.subr.mxu0 0.0
        %920 = vmatpush1.xpose.msra.mxu0 0.0
        %921 = vmatprep.subr.mxu0 0.0
        %922 = vmatpush1.xpose.msra.mxu0 0.0
        %923 = vmatprep.subr.mxu0 0.0
        %924 = vmatpush1.xpose.msra.mxu0 0.0
        %925 = vmatprep.subr.mxu0 0.0
        %926 = vmatpush1.xpose.msra.mxu0 0.0
        %927 = vmatprep.subr.mxu0 0.0
        %928 = vmatpush1.xpose.msra.mxu0 0.0
        %929 = vmatprep.subr.mxu0 0.0
        %930 = vmatpush1.xpose.msra.mxu0 0.0
        %931 = vmatprep.subr.mxu0 0.0
        %932 = vmatpush1.xpose.msra.mxu0 0.0
        %933 = vmatprep.subr.mxu0 0.0
        %934 = vmatpush1.xpose.msra.mxu0 0.0
        %935 = vmatprep.subr.mxu0 0.0
        %936 = vmatpush1.xpose.msra.mxu0 0.0
        %937 = vmatprep.subr.mxu0 0.0
        %938 = vmatpush1.xpose.msra.mxu0 0.0
        %939 = vmatprep.subr.mxu0 0.0
        %940 = vmatpush1.xpose.msra.mxu0 0.0
        %941 = vmatprep.subr.mxu0 0.0
        %942 = vmatpush1.xpose.msra.mxu0 0.0
        %943 = vmatprep.subr.mxu0 0.0
        %944 = vmatpush1.xpose.msra.mxu0 0.0
        %945 = vmatprep.subr.mxu0 0.0
        %946 = vmatpush1.xpose.msra.mxu0 0.0
        %947 = vmatprep.subr.mxu0 0.0
        %948 = vmatpush1.xpose.msra.mxu0 0.0
        %949 = vmatprep.subr.mxu0 0.0
        %950 = vmatpush1.xpose.msra.mxu0 0.0
        %951 = vmatprep.subr.mxu0 0.0
        %952 = vmatpush1.xpose.msra.mxu0 0.0
        %953 = vmatprep.subr.mxu0 0.0
        %954 = vmatpush1.xpose.msra.mxu0 0.0
        %955 = vmatprep.subr.mxu0 0.0
        %956 = vmatpush1.xpose.msra.mxu0 0.0
        %957 = vmatprep.subr.mxu0 0.0
        %958 = vmatpush1.xpose.msra.mxu0 0.0
        %959 = vmatprep.subr.mxu0 0.0
        %960 = vmatpush1.xpose.msra.mxu0 0.0
        %961 = vmatprep.subr.mxu0 0.0
        %962 = vmatpush1.xpose.msra.mxu0 0.0
        %963 = vmatprep.subr.mxu0 0.0
        %964 = vmatpush1.xpose.msra.mxu0 0.0
        %965 = vmatprep.subr.mxu0 0.0
        %966 = vmatpush1.xpose.msra.mxu0 0.0
        %967 = vmatprep.subr.mxu0 0.0
        %968 = vmatpush1.xpose.msra.mxu0 0.0
        %969 = vmatprep.subr.mxu0 0.0
        %970 = vmatpush1.xpose.msra.mxu0 0.0
        %971 = vmatprep.subr.mxu0 0.0
        %972 = vmatpush1.xpose.msra.mxu0 0.0
        %973 = vmatprep.subr.mxu0 0.0
        %974 = vmatpush1.xpose.msra.mxu0 0.0
        %975 = vmatprep.mubr.f32.mxu0 0.0
        %976 = vmatmul.mubr.f32.gmra.mrb[0].mxu0 %v905
        %v977 = vpop.f32.mrb[0].mxu0
        %v978 = vadd.f32 0.0, %v977
        %v979 = vpop.f32.mrb[0].mxu0
        %980 = vdwg.mxu0
        %v981 = vmul.f32 %v978, 0.35355338
        %v982 = vsel %vm811, %v981, -inf
        %983 = vmax.xlane.f32.xlu0 %v982
        %v984 = vpop.xlane.xlu0 %983
        %v985 = vsub.f32 %v981, %v984
        %v986 = vmul.f32 %v985, 1.442695
        %v987 = vpow.pop %v986
        %v988 = vsel %vm811, %v987, 0.0
        %989 = vadd.xlane.f32.xlu0 %v988
        %v990 = vpop.xlane.xlu0 %989
        %v991 = vrcp.pop %v990
        %v992 = vmul.f32 %v987, %v991
        %994 = vrot.lane.b32.xlu0 %v718, 120
        %v995 = vpop.permute.xlu0 %994
        %996 = vrot.lane.b32.xlu0 %v723, 120
        %v997 = vpop.permute.xlu0 %996
        %v1000 = vsel %vm811, %v992, 0
        %v1002 = vsel %vm459, %v997, 0
        %1004 = vmatprep.subr.mxu0 0.0
        %1005 = vmatpush1.msra.mxu0 %v995
        %1006 = vmatprep.subr.mxu0 0.0
        %1007 = vmatpush1.msra.mxu0 %v1002
        %1008 = vmatprep.subr.mxu0 0.0
        %1009 = vmatpush1.msra.mxu0 0.0
        %1010 = vmatprep.subr.mxu0 0.0
        %1011 = vmatpush1.msra.mxu0 0.0
        %1012 = vmatprep.subr.mxu0 0.0
        %1013 = vmatpush1.msra.mxu0 0.0
        %1014 = vmatprep.subr.mxu0 0.0
        %1015 = vmatpush1.msra.mxu0 0.0
        %1016 = vmatprep.subr.mxu0 0.0
        %1017 = vmatpush1.msra.mxu0 0.0
        %1018 = vmatprep.subr.mxu0 0.0
        %1019 = vmatpush1.msra.mxu0 0.0
        %1020 = vmatprep.subr.mxu0 0.0
        %1021 = vmatpush1.msra.mxu0 0.0
        %1022 = vmatprep.subr.mxu0 0.0
        %1023 = vmatpush1.msra.mxu0 0.0
        %1024 = vmatprep.subr.mxu0 0.0
        %1025 = vmatpush1.msra.mxu0 0.0
        %1026 = vmatprep.subr.mxu0 0.0
        %1027 = vmatpush1.msra.mxu0 0.0
        %1028 = vmatprep.subr.mxu0 0.0
        %1029 = vmatpush1.msra.mxu0 0.0
        %1030 = vmatprep.subr.mxu0 0.0
        %1031 = vmatpush1.msra.mxu0 0.0
        %1032 = vmatprep.subr.mxu0 0.0
        %1033 = vmatpush1.msra.mxu0 0.0
        %1034 = vmatprep.subr.mxu0 0.0
        %1035 = vmatpush1.msra.mxu0 0.0
        %1036 = vmatprep.subr.mxu0 0.0
        %1037 = vmatpush1.msra.mxu0 0.0
        %1038 = vmatprep.subr.mxu0 0.0
        %1039 = vmatpush1.msra.mxu0 0.0
        %1040 = vmatprep.subr.mxu0 0.0
        %1041 = vmatpush1.msra.mxu0 0.0
        %1042 = vmatprep.subr.mxu0 0.0
        %1043 = vmatpush1.msra.mxu0 0.0
        %1044 = vmatprep.subr.mxu0 0.0
        %1045 = vmatpush1.msra.mxu0 0.0
        %1046 = vmatprep.subr.mxu0 0.0
        %1047 = vmatpush1.msra.mxu0 0.0
        %1048 = vmatprep.subr.mxu0 0.0
        %1049 = vmatpush1.msra.mxu0 0.0
        %1050 = vmatprep.subr.mxu0 0.0
        %1051 = vmatpush1.msra.mxu0 0.0
        %1052 = vmatprep.subr.mxu0 0.0
        %1053 = vmatpush1.msra.mxu0 0.0
        %1054 = vmatprep.subr.mxu0 0.0
        %1055 = vmatpush1.msra.mxu0 0.0
        %1056 = vmatprep.subr.mxu0 0.0
        %1057 = vmatpush1.msra.mxu0 0.0
        %1058 = vmatprep.subr.mxu0 0.0
        %1059 = vmatpush1.msra.mxu0 0.0
        %1060 = vmatprep.subr.mxu0 0.0
        %1061 = vmatpush1.msra.mxu0 0.0
        %1062 = vmatprep.subr.mxu0 0.0
        %1063 = vmatpush1.msra.mxu0 0.0
        %1064 = vmatprep.subr.mxu0 0.0
        %1065 = vmatpush1.msra.mxu0 0.0
        %1066 = vmatprep.subr.mxu0 0.0
        %1067 = vmatpush1.msra.mxu0 0.0
        %1068 = vmatprep.mubr.f32.mxu0 0.0
        %1069 = vmatmul.mubr.f32.gmra.mrb[0].mxu0 %v1000
        %v1070 = vpop.f32.mrb[0].mxu0
        %v1071 = vadd.f32 0.0, %v1070
        %v1072 = vpop.f32.mrb[0].mxu0
        %1073 = vdwg.mxu0
        %v1075 = vsel %vm730, %v1071, 0
        %1077 = vmatprep.subr.mxu0 0.0
        %1078 = vmatpush1.msra.mxu0 %v727
        %1079 = vmatprep.subr.mxu0 0.0
        %1080 = vmatpush1.msra.mxu0 0.0
        %1081 = vmatprep.subr.mxu0 0.0
        %1082 = vmatpush1.msra.mxu0 0.0
        %1083 = vmatprep.subr.mxu0 0.0
        %1084 = vmatpush1.msra.mxu0 0.0
        %1085 = vmatprep.subr.mxu0 0.0
        %1086 = vmatpush1.msra.mxu0 0.0
        %1087 = vmatprep.subr.mxu0 0.0
        %1088 = vmatpush1.msra.mxu0 0.0
        %1089 = vmatprep.subr.mxu0 0.0
        %1090 = vmatpush1.msra.mxu0 0.0
        %1091 = vmatprep.subr.mxu0 0.0
        %1092 = vmatpush1.msra.mxu0 0.0
        %1093 = vmatprep.subr.mxu0 0.0
        %1094 = vmatpush1.msra.mxu0 0.0
        %1095 = vmatprep.subr.mxu0 0.0
        %1096 = vmatpush1.msra.mxu0 0.0
        %1097 = vmatprep.subr.mxu0 0.0
        %1098 = vmatpush1.msra.mxu0 0.0
        %1099 = vmatprep.subr.mxu0 0.0
        %1100 = vmatpush1.msra.mxu0 0.0
        %1101 = vmatprep.subr.mxu0 0.0
        %1102 = vmatpush1.msra.mxu0 0.0
        %1103 = vmatprep.subr.mxu0 0.0
        %1104 = vmatpush1.msra.mxu0 0.0
        %1105 = vmatprep.subr.mxu0 0.0
        %1106 = vmatpush1.msra.mxu0 0.0
        %1107 = vmatprep.subr.mxu0 0.0
        %1108 = vmatpush1.msra.mxu0 0.0
        %1109 = vmatprep.subr.mxu0 0.0
        %1110 = vmatpush1.msra.mxu0 0.0
        %1111 = vmatprep.subr.mxu0 0.0
        %1112 = vmatpush1.msra.mxu0 0.0
        %1113 = vmatprep.subr.mxu0 0.0
        %1114 = vmatpush1.msra.mxu0 0.0
        %1115 = vmatprep.subr.mxu0 0.0
        %1116 = vmatpush1.msra.mxu0 0.0
        %1117 = vmatprep.subr.mxu0 0.0
        %1118 = vmatpush1.msra.mxu0 0.0
        %1119 = vmatprep.subr.mxu0 0.0
        %1120 = vmatpush1.msra.mxu0 0.0
        %1121 = vmatprep.subr.mxu0 0.0
        %1122 = vmatpush1.msra.mxu0 0.0
        %1123 = vmatprep.subr.mxu0 0.0
        %1124 = vmatpush1.msra.mxu0 0.0
        %1125 = vmatprep.subr.mxu0 0.0
        %1126 = vmatpush1.msra.mxu0 0.0
        %1127 = vmatprep.subr.mxu0 0.0
        %1128 = vmatpush1.msra.mxu0 0.0
        %1129 = vmatprep.subr.mxu0 0.0
        %1130 = vmatpush1.msra.mxu0 0.0
        %1131 = vmatprep.subr.mxu0 0.0
        %1132 = vmatpush1.msra.mxu0 0.0
        %1133 = vmatprep.subr.mxu0 0.0
        %1134 = vmatpush1.msra.mxu0 0.0
        %1135 = vmatprep.subr.mxu0 0.0
        %1136 = vmatpush1.msra.mxu0 0.0
        %1137 = vmatprep.subr.mxu0 0.0
        %1138 = vmatpush1.msra.mxu0 0.0
        %1139 = vmatprep.subr.mxu0 0.0
        %1140 = vmatpush1.msra.mxu0 0.0
        %1141 = vmatprep.mubr.f32.mxu0 0.0
        %1142 = vmatmul.mubr.f32.gmra.mrb[0].mxu0 %v1075
        %v1143 = vpop.f32.mrb[0].mxu0
        %v1144 = vadd.f32 0.0, %v1143
        %v1145 = vpop.f32.mrb[0].mxu0
        %1146 = vdwg.mxu0
        %v1148 = vsel %vm730, %v896, 0
        %1150 = vmatprep.subr.mxu0 0.0
        %1151 = vmatpush1.msra.mxu0 %v726
        %1152 = vmatprep.subr.mxu0 0.0
        %1153 = vmatpush1.msra.mxu0 0.0
        %1154 = vmatprep.subr.mxu0 0.0
        %1155 = vmatpush1.msra.mxu0 0.0
        %1156 = vmatprep.subr.mxu0 0.0
        %1157 = vmatpush1.msra.mxu0 0.0
        %1158 = vmatprep.subr.mxu0 0.0
        %1159 = vmatpush1.msra.mxu0 0.0
        %1160 = vmatprep.subr.mxu0 0.0
        %1161 = vmatpush1.msra.mxu0 0.0
        %1162 = vmatprep.subr.mxu0 0.0
        %1163 = vmatpush1.msra.mxu0 0.0
        %1164 = vmatprep.subr.mxu0 0.0
        %1165 = vmatpush1.msra.mxu0 0.0
        %1166 = vmatprep.subr.mxu0 0.0
        %1167 = vmatpush1.msra.mxu0 0.0
        %1168 = vmatprep.subr.mxu0 0.0
        %1169 = vmatpush1.msra.mxu0 0.0
        %1170 = vmatprep.subr.mxu0 0.0
        %1171 = vmatpush1.msra.mxu0 0.0
        %1172 = vmatprep.subr.mxu0 0.0
        %1173 = vmatpush1.msra.mxu0 0.0
        %1174 = vmatprep.subr.mxu0 0.0
        %1175 = vmatpush1.msra.mxu0 0.0
        %1176 = vmatprep.subr.mxu0 0.0
        %1177 = vmatpush1.msra.mxu0 0.0
        %1178 = vmatprep.subr.mxu0 0.0
        %1179 = vmatpush1.msra.mxu0 0.0
        %1180 = vmatprep.subr.mxu0 0.0
        %1181 = vmatpush1.msra.mxu0 0.0
        %1182 = vmatprep.subr.mxu0 0.0
        %1183 = vmatpush1.msra.mxu0 0.0
        %1184 = vmatprep.subr.mxu0 0.0
        %1185 = vmatpush1.msra.mxu0 0.0
        %1186 = vmatprep.subr.mxu0 0.0
        %1187 = vmatpush1.msra.mxu0 0.0
        %1188 = vmatprep.subr.mxu0 0.0
        %1189 = vmatpush1.msra.mxu0 0.0
        %1190 = vmatprep.subr.mxu0 0.0
        %1191 = vmatpush1.msra.mxu0 0.0
        %1192 = vmatprep.subr.mxu0 0.0
        %1193 = vmatpush1.msra.mxu0 0.0
        %1194 = vmatprep.subr.mxu0 0.0
        %1195 = vmatpush1.msra.mxu0 0.0
        %1196 = vmatprep.subr.mxu0 0.0
        %1197 = vmatpush1.msra.mxu0 0.0
        %1198 = vmatprep.subr.mxu0 0.0
        %1199 = vmatpush1.msra.mxu0 0.0
        %1200 = vmatprep.subr.mxu0 0.0
        %1201 = vmatpush1.msra.mxu0 0.0
        %1202 = vmatprep.subr.mxu0 0.0
        %1203 = vmatpush1.msra.mxu0 0.0
        %1204 = vmatprep.subr.mxu0 0.0
        %1205 = vmatpush1.msra.mxu0 0.0
        %1206 = vmatprep.subr.mxu0 0.0
        %1207 = vmatpush1.msra.mxu0 0.0
        %1208 = vmatprep.subr.mxu0 0.0
        %1209 = vmatpush1.msra.mxu0 0.0
        %1210 = vmatprep.subr.mxu0 0.0
        %1211 = vmatpush1.msra.mxu0 0.0
        %1212 = vmatprep.subr.mxu0 0.0
        %1213 = vmatpush1.msra.mxu0 0.0
        %1214 = vmatprep.mubr.f32.mxu0 0.0
        %1215 = vmatmul.mubr.f32.gmra.mrb[0].mxu0 %v1148
        %v1216 = vpop.f32.mrb[0].mxu0
        %v1217 = vadd.f32 %v1144, %v1216
        %v1218 = vpop.f32.mrb[0].mxu0
        %1219 = vdwg.mxu0
        %1220 = vrot.lane.b32.xlu0 %v542, 112
        %v1221 = vpop.permute.xlu0 %1220
        %1222 = vrot.lane.b32.xlu0 %v630, 112
        %v1223 = vpop.permute.xlu0 %1222
        %1224 = vrot.lane.b32.xlu0 %v635, 112
        %v1225 = vpop.permute.xlu0 %1224
        %v1226 = vsel %vm730, %v1221, 0
        %v1228 = vsel %vm730, %v1223, 0
        %v1230 = vsel %vm730, %v1225, 0
        %1232 = vmatprep.subr.mxu0 0.0
        %1233 = vmatpush1.xpose.msra.mxu0 %v1228
        %1234 = vmatprep.subr.mxu0 0.0
        %1235 = vmatpush1.xpose.msra.mxu0 %v1230
        %1236 = vmatprep.subr.mxu0 0.0
        %1237 = vmatpush1.xpose.msra.mxu0 0.0
        %1238 = vmatprep.subr.mxu0 0.0
        %1239 = vmatpush1.xpose.msra.mxu0 0.0
        %1240 = vmatprep.subr.mxu0 0.0
        %1241 = vmatpush1.xpose.msra.mxu0 0.0
        %1242 = vmatprep.subr.mxu0 0.0
        %1243 = vmatpush1.xpose.msra.mxu0 0.0
        %1244 = vmatprep.subr.mxu0 0.0
        %1245 = vmatpush1.xpose.msra.mxu0 0.0
        %1246 = vmatprep.subr.mxu0 0.0
        %1247 = vmatpush1.xpose.msra.mxu0 0.0
        %1248 = vmatprep.subr.mxu0 0.0
        %1249 = vmatpush1.xpose.msra.mxu0 0.0
        %1250 = vmatprep.subr.mxu0 0.0
        %1251 = vmatpush1.xpose.msra.mxu0 0.0
        %1252 = vmatprep.subr.mxu0 0.0
        %1253 = vmatpush1.xpose.msra.mxu0 0.0
        %1254 = vmatprep.subr.mxu0 0.0
        %1255 = vmatpush1.xpose.msra.mxu0 0.0
        %1256 = vmatprep.subr.mxu0 0.0
        %1257 = vmatpush1.xpose.msra.mxu0 0.0
        %1258 = vmatprep.subr.mxu0 0.0
        %1259 = vmatpush1.xpose.msra.mxu0 0.0
        %1260 = vmatprep.subr.mxu0 0.0
        %1261 = vmatpush1.xpose.msra.mxu0 0.0
        %1262 = vmatprep.subr.mxu0 0.0
        %1263 = vmatpush1.xpose.msra.mxu0 0.0
        %1264 = vmatprep.subr.mxu0 0.0
        %1265 = vmatpush1.xpose.msra.mxu0 0.0
        %1266 = vmatprep.subr.mxu0 0.0
        %1267 = vmatpush1.xpose.msra.mxu0 0.0
        %1268 = vmatprep.subr.mxu0 0.0
        %1269 = vmatpush1.xpose.msra.mxu0 0.0
        %1270 = vmatprep.subr.mxu0 0.0
        %1271 = vmatpush1.xpose.msra.mxu0 0.0
        %1272 = vmatprep.subr.mxu0 0.0
        %1273 = vmatpush1.xpose.msra.mxu0 0.0
        %1274 = vmatprep.subr.mxu0 0.0
        %1275 = vmatpush1.xpose.msra.mxu0 0.0
        %1276 = vmatprep.subr.mxu0 0.0
        %1277 = vmatpush1.xpose.msra.mxu0 0.0
        %1278 = vmatprep.subr.mxu0 0.0
        %1279 = vmatpush1.xpose.msra.mxu0 0.0
        %1280 = vmatprep.subr.mxu0 0.0
        %1281 = vmatpush1.xpose.msra.mxu0 0.0
        %1282 = vmatprep.subr.mxu0 0.0
        %1283 = vmatpush1.xpose.msra.mxu0 0.0
        %1284 = vmatprep.subr.mxu0 0.0
        %1285 = vmatpush1.xpose.msra.mxu0 0.0
        %1286 = vmatprep.subr.mxu0 0.0
        %1287 = vmatpush1.xpose.msra.mxu0 0.0
        %1288 = vmatprep.subr.mxu0 0.0
        %1289 = vmatpush1.xpose.msra.mxu0 0.0
        %1290 = vmatprep.subr.mxu0 0.0
        %1291 = vmatpush1.xpose.msra.mxu0 0.0
        %1292 = vmatprep.subr.mxu0 0.0
        %1293 = vmatpush1.xpose.msra.mxu0 0.0
        %1294 = vmatprep.subr.mxu0 0.0
        %1295 = vmatpush1.xpose.msra.mxu0 0.0
        %1296 = vmatprep.mubr.f32.mxu0 0.0
        %1297 = vmatmul.mubr.f32.gmra.mrb[0].mxu0 %v1226
        %v1298 = vpop.f32.mrb[0].mxu0
        %v1299 = vadd.f32 0.0, %v1298
        %v1300 = vpop.f32.mrb[0].mxu0
        %1301 = vdwg.mxu0
        %v1302 = vmul.f32 %v1299, 0.35355338
        %v1303 = vsel %vm811, %v1302, -inf
        %1304 = vmax.xlane.f32.xlu0 %v1303
        %v1305 = vpop.xlane.xlu0 %1304
        %v1306 = vsub.f32 %v1302, %v1305
        %v1307 = vmul.f32 %v1306, 1.442695
        %v1308 = vpow.pop %v1307
        %v1309 = vsel %vm811, %v1308, 0.0
        %1310 = vadd.xlane.f32.xlu0 %v1309
        %v1311 = vpop.xlane.xlu0 %1310
        %v1312 = vrcp.pop %v1311
        %v1313 = vmul.f32 %v1308, %v1312
        %1314 = vrot.lane.b32.xlu0 %v718, 112
        %v1315 = vpop.permute.xlu0 %1314
        %1316 = vrot.lane.b32.xlu0 %v723, 112
        %v1317 = vpop.permute.xlu0 %1316
        %v1320 = vsel %vm811, %v1313, 0
        %v1322 = vsel %vm459, %v1317, 0
        %1324 = vmatprep.subr.mxu0 0.0
        %1325 = vmatpush1.msra.mxu0 %v1315
        %1326 = vmatprep.subr.mxu0 0.0
        %1327 = vmatpush1.msra.mxu0 %v1322
        %1328 = vmatprep.subr.mxu0 0.0
        %1329 = vmatpush1.msra.mxu0 0.0
        %1330 = vmatprep.subr.mxu0 0.0
        %1331 = vmatpush1.msra.mxu0 0.0
        %1332 = vmatprep.subr.mxu0 0.0
        %1333 = vmatpush1.msra.mxu0 0.0
        %1334 = vmatprep.subr.mxu0 0.0
        %1335 = vmatpush1.msra.mxu0 0.0
        %1336 = vmatprep.subr.mxu0 0.0
        %1337 = vmatpush1.msra.mxu0 0.0
        %1338 = vmatprep.subr.mxu0 0.0
        %1339 = vmatpush1.msra.mxu0 0.0
        %1340 = vmatprep.subr.mxu0 0.0
        %1341 = vmatpush1.msra.mxu0 0.0
        %1342 = vmatprep.subr.mxu0 0.0
        %1343 = vmatpush1.msra.mxu0 0.0
        %1344 = vmatprep.subr.mxu0 0.0
        %1345 = vmatpush1.msra.mxu0 0.0
        %1346 = vmatprep.subr.mxu0 0.0
        %1347 = vmatpush1.msra.mxu0 0.0
        %1348 = vmatprep.subr.mxu0 0.0
        %1349 = vmatpush1.msra.mxu0 0.0
        %1350 = vmatprep.subr.mxu0 0.0
        %1351 = vmatpush1.msra.mxu0 0.0
        %1352 = vmatprep.subr.mxu0 0.0
        %1353 = vmatpush1.msra.mxu0 0.0
        %1354 = vmatprep.subr.mxu0 0.0
        %1355 = vmatpush1.msra.mxu0 0.0
        %1356 = vmatprep.subr.mxu0 0.0
        %1357 = vmatpush1.msra.mxu0 0.0
        %1358 = vmatprep.subr.mxu0 0.0
        %1359 = vmatpush1.msra.mxu0 0.0
        %1360 = vmatprep.subr.mxu0 0.0
        %1361 = vmatpush1.msra.mxu0 0.0
        %1362 = vmatprep.subr.mxu0 0.0
        %1363 = vmatpush1.msra.mxu0 0.0
        %1364 = vmatprep.subr.mxu0 0.0
        %1365 = vmatpush1.msra.mxu0 0.0
        %1366 = vmatprep.subr.mxu0 0.0
        %1367 = vmatpush1.msra.mxu0 0.0
        %1368 = vmatprep.subr.mxu0 0.0
        %1369 = vmatpush1.msra.mxu0 0.0
        %1370 = vmatprep.subr.mxu0 0.0
        %1371 = vmatpush1.msra.mxu0 0.0
        %1372 = vmatprep.subr.mxu0 0.0
        %1373 = vmatpush1.msra.mxu0 0.0
        %1374 = vmatprep.subr.mxu0 0.0
        %1375 = vmatpush1.msra.mxu0 0.0
        %1376 = vmatprep.subr.mxu0 0.0
        %1377 = vmatpush1.msra.mxu0 0.0
        %1378 = vmatprep.subr.mxu0 0.0
        %1379 = vmatpush1.msra.mxu0 0.0
        %1380 = vmatprep.subr.mxu0 0.0
        %1381 = vmatpush1.msra.mxu0 0.0
        %1382 = vmatprep.subr.mxu0 0.0
        %1383 = vmatpush1.msra.mxu0 0.0
        %1384 = vmatprep.subr.mxu0 0.0
        %1385 = vmatpush1.msra.mxu0 0.0
        %1386 = vmatprep.subr.mxu0 0.0
        %1387 = vmatpush1.msra.mxu0 0.0
        %1388 = vmatprep.mubr.f32.mxu0 0.0
        %1389 = vmatmul.mubr.f32.gmra.mrb[0].mxu0 %v1320
        %v1390 = vpop.f32.mrb[0].mxu0
        %v1391 = vadd.f32 0.0, %v1390
        %v1392 = vpop.f32.mrb[0].mxu0
        %1393 = vdwg.mxu0
        %v1395 = vsel %vm730, %v1391, 0
        %1397 = vmatprep.subr.mxu0 0.0
        %1398 = vmatpush1.msra.mxu0 %v728
        %1399 = vmatprep.subr.mxu0 0.0
        %1400 = vmatpush1.msra.mxu0 0.0
        %1401 = vmatprep.subr.mxu0 0.0
        %1402 = vmatpush1.msra.mxu0 0.0
        %1403 = vmatprep.subr.mxu0 0.0
        %1404 = vmatpush1.msra.mxu0 0.0
        %1405 = vmatprep.subr.mxu0 0.0
        %1406 = vmatpush1.msra.mxu0 0.0
        %1407 = vmatprep.subr.mxu0 0.0
        %1408 = vmatpush1.msra.mxu0 0.0
        %1409 = vmatprep.subr.mxu0 0.0
        %1410 = vmatpush1.msra.mxu0 0.0
        %1411 = vmatprep.subr.mxu0 0.0
        %1412 = vmatpush1.msra.mxu0 0.0
        %1413 = vmatprep.subr.mxu0 0.0
        %1414 = vmatpush1.msra.mxu0 0.0
        %1415 = vmatprep.subr.mxu0 0.0
        %1416 = vmatpush1.msra.mxu0 0.0
        %1417 = vmatprep.subr.mxu0 0.0
        %1418 = vmatpush1.msra.mxu0 0.0
        %1419 = vmatprep.subr.mxu0 0.0
        %1420 = vmatpush1.msra.mxu0 0.0
        %1421 = vmatprep.subr.mxu0 0.0
        %1422 = vmatpush1.msra.mxu0 0.0
        %1423 = vmatprep.subr.mxu0 0.0
        %1424 = vmatpush1.msra.mxu0 0.0
        %1425 = vmatprep.subr.mxu0 0.0
        %1426 = vmatpush1.msra.mxu0 0.0
        %1427 = vmatprep.subr.mxu0 0.0
        %1428 = vmatpush1.msra.mxu0 0.0
        %1429 = vmatprep.subr.mxu0 0.0
        %1430 = vmatpush1.msra.mxu0 0.0
        %1431 = vmatprep.subr.mxu0 0.0
        %1432 = vmatpush1.msra.mxu0 0.0
        %1433 = vmatprep.subr.mxu0 0.0
        %1434 = vmatpush1.msra.mxu0 0.0
        %1435 = vmatprep.subr.mxu0 0.0
        %1436 = vmatpush1.msra.mxu0 0.0
        %1437 = vmatprep.subr.mxu0 0.0
        %1438 = vmatpush1.msra.mxu0 0.0
        %1439 = vmatprep.subr.mxu0 0.0
        %1440 = vmatpush1.msra.mxu0 0.0
        %1441 = vmatprep.subr.mxu0 0.0
        %1442 = vmatpush1.msra.mxu0 0.0
        %1443 = vmatprep.subr.mxu0 0.0
        %1444 = vmatpush1.msra.mxu0 0.0
        %1445 = vmatprep.subr.mxu0 0.0
        %1446 = vmatpush1.msra.mxu0 0.0
        %1447 = vmatprep.subr.mxu0 0.0
        %1448 = vmatpush1.msra.mxu0 0.0
        %1449 = vmatprep.subr.mxu0 0.0
        %1450 = vmatpush1.msra.mxu0 0.0
        %1451 = vmatprep.subr.mxu0 0.0
        %1452 = vmatpush1.msra.mxu0 0.0
        %1453 = vmatprep.subr.mxu0 0.0
        %1454 = vmatpush1.msra.mxu0 0.0
        %1455 = vmatprep.subr.mxu0 0.0
        %1456 = vmatpush1.msra.mxu0 0.0
        %1457 = vmatprep.subr.mxu0 0.0
        %1458 = vmatpush1.msra.mxu0 0.0
        %1459 = vmatprep.subr.mxu0 0.0
        %1460 = vmatpush1.msra.mxu0 0.0
        %1461 = vmatprep.mubr.f32.mxu0 0.0
        %1462 = vmatmul.mubr.f32.gmra.mrb[0].mxu0 %v1395
        %v1463 = vpop.f32.mrb[0].mxu0
        %v1464 = vadd.f32 0.0, %v1463
        %v1465 = vpop.f32.mrb[0].mxu0
        %1466 = vdwg.mxu0
        %v1467 = vadd.f32 %v1217, %v1464
        %1468 = vrot.lane.b32.xlu0 %v542, 104
        %v1469 = vpop.permute.xlu0 %1468
        %1470 = vrot.lane.b32.xlu0 %v630, 104
        %v1471 = vpop.permute.xlu0 %1470
        %1472 = vrot.lane.b32.xlu0 %v635, 104
        %v1473 = vpop.permute.xlu0 %1472
        %v1474 = vsel %vm730, %v1469, 0
        %v1476 = vsel %vm730, %v1471, 0
        %v1478 = vsel %vm730, %v1473, 0
        %1480 = vmatprep.subr.mxu0 0.0
        %1481 = vmatpush1.xpose.msra.mxu0 %v1476
        %1482 = vmatprep.subr.mxu0 0.0
        %1483 = vmatpush1.xpose.msra.mxu0 %v1478
        %1484 = vmatprep.subr.mxu0 0.0
        %1485 = vmatpush1.xpose.msra.mxu0 0.0
        %1486 = vmatprep.subr.mxu0 0.0
        %1487 = vmatpush1.xpose.msra.mxu0 0.0
        %1488 = vmatprep.subr.mxu0 0.0
        %1489 = vmatpush1.xpose.msra.mxu0 0.0
        %1490 = vmatprep.subr.mxu0 0.0
        %1491 = vmatpush1.xpose.msra.mxu0 0.0
        %1492 = vmatprep.subr.mxu0 0.0
        %1493 = vmatpush1.xpose.msra.mxu0 0.0
        %1494 = vmatprep.subr.mxu0 0.0
        %1495 = vmatpush1.xpose.msra.mxu0 0.0
        %1496 = vmatprep.subr.mxu0 0.0
        %1497 = vmatpush1.xpose.msra.mxu0 0.0
        %1498 = vmatprep.subr.mxu0 0.0
        %1499 = vmatpush1.xpose.msra.mxu0 0.0
        %1500 = vmatprep.subr.mxu0 0.0
        %1501 = vmatpush1.xpose.msra.mxu0 0.0
        %1502 = vmatprep.subr.mxu0 0.0
        %1503 = vmatpush1.xpose.msra.mxu0 0.0
        %1504 = vmatprep.subr.mxu0 0.0
        %1505 = vmatpush1.xpose.msra.mxu0 0.0
        %1506 = vmatprep.subr.mxu0 0.0
        %1507 = vmatpush1.xpose.msra.mxu0 0.0
        %1508 = vmatprep.subr.mxu0 0.0
        %1509 = vmatpush1.xpose.msra.mxu0 0.0
        %1510 = vmatprep.subr.mxu0 0.0
        %1511 = vmatpush1.xpose.msra.mxu0 0.0
        %1512 = vmatprep.subr.mxu0 0.0
        %1513 = vmatpush1.xpose.msra.mxu0 0.0
        %1514 = vmatprep.subr.mxu0 0.0
        %1515 = vmatpush1.xpose.msra.mxu0 0.0
        %1516 = vmatprep.subr.mxu0 0.0
        %1517 = vmatpush1.xpose.msra.mxu0 0.0
        %1518 = vmatprep.subr.mxu0 0.0
        %1519 = vmatpush1.xpose.msra.mxu0 0.0
        %1520 = vmatprep.subr.mxu0 0.0
        %1521 = vmatpush1.xpose.msra.mxu0 0.0
        %1522 = vmatprep.subr.mxu0 0.0
        %1523 = vmatpush1.xpose.msra.mxu0 0.0
        %1524 = vmatprep.subr.mxu0 0.0
        %1525 = vmatpush1.xpose.msra.mxu0 0.0
        %1526 = vmatprep.subr.mxu0 0.0
        %1527 = vmatpush1.xpose.msra.mxu0 0.0
        %1528 = vmatprep.subr.mxu0 0.0
        %1529 = vmatpush1.xpose.msra.mxu0 0.0
        %1530 = vmatprep.subr.mxu0 0.0
        %1531 = vmatpush1.xpose.msra.mxu0 0.0
        %1532 = vmatprep.subr.mxu0 0.0
        %1533 = vmatpush1.xpose.msra.mxu0 0.0
        %1534 = vmatprep.subr.mxu0 0.0
        %1535 = vmatpush1.xpose.msra.mxu0 0.0
        %1536 = vmatprep.subr.mxu0 0.0
        %1537 = vmatpush1.xpose.msra.mxu0 0.0
        %1538 = vmatprep.subr.mxu0 0.0
        %1539 = vmatpush1.xpose.msra.mxu0 0.0
        %1540 = vmatprep.subr.mxu0 0.0
        %1541 = vmatpush1.xpose.msra.mxu0 0.0
        %1542 = vmatprep.subr.mxu0 0.0
        %1543 = vmatpush1.xpose.msra.mxu0 0.0
        %1544 = vmatprep.mubr.f32.mxu0 0.0
        %1545 = vmatmul.mubr.f32.gmra.mrb[0].mxu0 %v1474
        %v1546 = vpop.f32.mrb[0].mxu0
        %v1547 = vadd.f32 0.0, %v1546
        %v1548 = vpop.f32.mrb[0].mxu0
        %1549 = vdwg.mxu0
        %v1550 = vmul.f32 %v1547, 0.35355338
        %v1551 = vsel %vm811, %v1550, -inf
        %1552 = vmax.xlane.f32.xlu0 %v1551
        %v1553 = vpop.xlane.xlu0 %1552
        %v1554 = vsub.f32 %v1550, %v1553
        %v1555 = vmul.f32 %v1554, 1.442695
        %v1556 = vpow.pop %v1555
        %v1557 = vsel %vm811, %v1556, 0.0
        %1558 = vadd.xlane.f32.xlu0 %v1557
        %v1559 = vpop.xlane.xlu0 %1558
        %v1560 = vrcp.pop %v1559
        %v1561 = vmul.f32 %v1556, %v1560
        %1562 = vrot.lane.b32.xlu0 %v718, 104
        %v1563 = vpop.permute.xlu0 %1562
        %1564 = vrot.lane.b32.xlu0 %v723, 104
        %v1565 = vpop.permute.xlu0 %1564
        %v1568 = vsel %vm811, %v1561, 0
        %v1570 = vsel %vm459, %v1565, 0
        %1572 = vmatprep.subr.mxu0 0.0
        %1573 = vmatpush1.msra.mxu0 %v1563
        %1574 = vmatprep.subr.mxu0 0.0
        %1575 = vmatpush1.msra.mxu0 %v1570
        %1576 = vmatprep.subr.mxu0 0.0
        %1577 = vmatpush1.msra.mxu0 0.0
        %1578 = vmatprep.subr.mxu0 0.0
        %1579 = vmatpush1.msra.mxu0 0.0
        %1580 = vmatprep.subr.mxu0 0.0
        %1581 = vmatpush1.msra.mxu0 0.0
        %1582 = vmatprep.subr.mxu0 0.0
        %1583 = vmatpush1.msra.mxu0 0.0
        %1584 = vmatprep.subr.mxu0 0.0
        %1585 = vmatpush1.msra.mxu0 0.0
        %1586 = vmatprep.subr.mxu0 0.0
        %1587 = vmatpush1.msra.mxu0 0.0
        %1588 = vmatprep.subr.mxu0 0.0
        %1589 = vmatpush1.msra.mxu0 0.0
        %1590 = vmatprep.subr.mxu0 0.0
        %1591 = vmatpush1.msra.mxu0 0.0
        %1592 = vmatprep.subr.mxu0 0.0
        %1593 = vmatpush1.msra.mxu0 0.0
        %1594 = vmatprep.subr.mxu0 0.0
        %1595 = vmatpush1.msra.mxu0 0.0
        %1596 = vmatprep.subr.mxu0 0.0
        %1597 = vmatpush1.msra.mxu0 0.0
        %1598 = vmatprep.subr.mxu0 0.0
        %1599 = vmatpush1.msra.mxu0 0.0
        %1600 = vmatprep.subr.mxu0 0.0
        %1601 = vmatpush1.msra.mxu0 0.0
        %1602 = vmatprep.subr.mxu0 0.0
        %1603 = vmatpush1.msra.mxu0 0.0
        %1604 = vmatprep.subr.mxu0 0.0
        %1605 = vmatpush1.msra.mxu0 0.0
        %1606 = vmatprep.subr.mxu0 0.0
        %1607 = vmatpush1.msra.mxu0 0.0
        %1608 = vmatprep.subr.mxu0 0.0
        %1609 = vmatpush1.msra.mxu0 0.0
        %1610 = vmatprep.subr.mxu0 0.0
        %1611 = vmatpush1.msra.mxu0 0.0
        %1612 = vmatprep.subr.mxu0 0.0
        %1613 = vmatpush1.msra.mxu0 0.0
        %1614 = vmatprep.subr.mxu0 0.0
        %1615 = vmatpush1.msra.mxu0 0.0
        %1616 = vmatprep.subr.mxu0 0.0
        %1617 = vmatpush1.msra.mxu0 0.0
        %1618 = vmatprep.subr.mxu0 0.0
        %1619 = vmatpush1.msra.mxu0 0.0
        %1620 = vmatprep.subr.mxu0 0.0
        %1621 = vmatpush1.msra.mxu0 0.0
        %1622 = vmatprep.subr.mxu0 0.0
        %1623 = vmatpush1.msra.mxu0 0.0
        %1624 = vmatprep.subr.mxu0 0.0
        %1625 = vmatpush1.msra.mxu0 0.0
        %1626 = vmatprep.subr.mxu0 0.0
        %1627 = vmatpush1.msra.mxu0 0.0
        %1628 = vmatprep.subr.mxu0 0.0
        %1629 = vmatpush1.msra.mxu0 0.0
        %1630 = vmatprep.subr.mxu0 0.0
        %1631 = vmatpush1.msra.mxu0 0.0
        %1632 = vmatprep.subr.mxu0 0.0
        %1633 = vmatpush1.msra.mxu0 0.0
        %1634 = vmatprep.subr.mxu0 0.0
        %1635 = vmatpush1.msra.mxu0 0.0
        %1636 = vmatprep.mubr.f32.mxu0 0.0
        %1637 = vmatmul.mubr.f32.gmra.mrb[0].mxu0 %v1568
        %v1638 = vpop.f32.mrb[0].mxu0
        %v1639 = vadd.f32 0.0, %v1638
        %v1640 = vpop.f32.mrb[0].mxu0
        %1641 = vdwg.mxu0
        %v1643 = vsel %vm730, %v1639, 0
        %1645 = vmatprep.subr.mxu0 0.0
        %1646 = vmatpush1.msra.mxu0 %v729
        %1647 = vmatprep.subr.mxu0 0.0
        %1648 = vmatpush1.msra.mxu0 0.0
        %1649 = vmatprep.subr.mxu0 0.0
        %1650 = vmatpush1.msra.mxu0 0.0
        %1651 = vmatprep.subr.mxu0 0.0
        %1652 = vmatpush1.msra.mxu0 0.0
        %1653 = vmatprep.subr.mxu0 0.0
        %1654 = vmatpush1.msra.mxu0 0.0
        %1655 = vmatprep.subr.mxu0 0.0
        %1656 = vmatpush1.msra.mxu0 0.0
        %1657 = vmatprep.subr.mxu0 0.0
        %1658 = vmatpush1.msra.mxu0 0.0
        %1659 = vmatprep.subr.mxu0 0.0
        %1660 = vmatpush1.msra.mxu0 0.0
        %1661 = vmatprep.subr.mxu0 0.0
        %1662 = vmatpush1.msra.mxu0 0.0
        %1663 = vmatprep.subr.mxu0 0.0
        %1664 = vmatpush1.msra.mxu0 0.0
        %1665 = vmatprep.subr.mxu0 0.0
        %1666 = vmatpush1.msra.mxu0 0.0
        %1667 = vmatprep.subr.mxu0 0.0
        %1668 = vmatpush1.msra.mxu0 0.0
        %1669 = vmatprep.subr.mxu0 0.0
        %1670 = vmatpush1.msra.mxu0 0.0
        %1671 = vmatprep.subr.mxu0 0.0
        %1672 = vmatpush1.msra.mxu0 0.0
        %1673 = vmatprep.subr.mxu0 0.0
        %1674 = vmatpush1.msra.mxu0 0.0
        %1675 = vmatprep.subr.mxu0 0.0
        %1676 = vmatpush1.msra.mxu0 0.0
        %1677 = vmatprep.subr.mxu0 0.0
        %1678 = vmatpush1.msra.mxu0 0.0
        %1679 = vmatprep.subr.mxu0 0.0
        %1680 = vmatpush1.msra.mxu0 0.0
        %1681 = vmatprep.subr.mxu0 0.0
        %1682 = vmatpush1.msra.mxu0 0.0
        %1683 = vmatprep.subr.mxu0 0.0
        %1684 = vmatpush1.msra.mxu0 0.0
        %1685 = vmatprep.subr.mxu0 0.0
        %1686 = vmatpush1.msra.mxu0 0.0
        %1687 = vmatprep.subr.mxu0 0.0
        %1688 = vmatpush1.msra.mxu0 0.0
        %1689 = vmatprep.subr.mxu0 0.0
        %1690 = vmatpush1.msra.mxu0 0.0
        %1691 = vmatprep.subr.mxu0 0.0
        %1692 = vmatpush1.msra.mxu0 0.0
        %1693 = vmatprep.subr.mxu0 0.0
        %1694 = vmatpush1.msra.mxu0 0.0
        %1695 = vmatprep.subr.mxu0 0.0
        %1696 = vmatpush1.msra.mxu0 0.0
        %1697 = vmatprep.subr.mxu0 0.0
        %1698 = vmatpush1.msra.mxu0 0.0
        %1699 = vmatprep.subr.mxu0 0.0
        %1700 = vmatpush1.msra.mxu0 0.0
        %1701 = vmatprep.subr.mxu0 0.0
        %1702 = vmatpush1.msra.mxu0 0.0
        %1703 = vmatprep.subr.mxu0 0.0
        %1704 = vmatpush1.msra.mxu0 0.0
        %1705 = vmatprep.subr.mxu0 0.0
        %1706 = vmatpush1.msra.mxu0 0.0
        %1707 = vmatprep.subr.mxu0 0.0
        %1708 = vmatpush1.msra.mxu0 0.0
        %1709 = vmatprep.mubr.f32.mxu0 0.0
        %1710 = vmatmul.mubr.f32.gmra.mrb[0].mxu0 %v1643
        %v1711 = vpop.f32.mrb[0].mxu0
        %v1712 = vadd.f32 0.0, %v1711
        %v1713 = vpop.f32.mrb[0].mxu0
        %1714 = vdwg.mxu0
        %v1715 = vadd.f32 %v1467, %v1712
        %v1716 = vadd.f32 %v454, %v1715
        %v1717 = vld [vmem:[%s5] sm:$0x1]
        %v1719 = vlaneseq
        %v1720 = vshrl.u32 %v1719, 7
        %v1721 = vsub.s32 0, %v1720
        %v1722 = vrot.slane %v1717, %v1721
        %v1724 = vadd.f32 %v1716, %v1722
        %v1725 = vlaneseq
        %v1726 = vshrl.u32 %v1725, 7
        %v1727 = vsub.s32 0, %v1726
        %v1728 = vrot.slane %v1724, %v1727
        %v1729 = vlaneseq
        %v1730 = vshrl.u32 %v1729, 7
        %v1731 = vsub.s32 7, %v1730
        %v1732 = vrot.slane %v1724, %v1731
        %v1734 = vrot.slane %v1724, 6
        %vm1736 = vcmask 1041408
        %v1737 = vsel %vm1736, %v1728, %v1734
        %v1738 = vsel %vm1736, %v1734, %v1732
        %vm1741 = vcmask 1046528
        %v1742 = vrot.slane %v1737, 1
        %v1743 = vrot.slane %v1738, 1
        %v1744 = vsel %vm1741, %v1742, %v1743
        %v1746 = vadd.f32 %v1737, %v1744
        %vm1747 = vcmask 1045504
        %v1748 = vrot.slane %v1737, 2
        %v1749 = vrot.slane %v1738, 2
        %v1750 = vsel %vm1747, %v1748, %v1749
        %v1752 = vadd.f32 %v1746, %v1750
        %vm1753 = vcmask 1044480
        %v1754 = vrot.slane %v1737, 3
        %v1755 = vrot.slane %v1738, 3
        %v1756 = vsel %vm1753, %v1754, %v1755
        %v1758 = vadd.f32 %v1752, %v1756
        %v1759 = vrot.slane %v1737, 4
        %v1760 = vrot.slane %v1738, 4
        %v1761 = vsel %vm459, %v1759, %v1760
        %v1763 = vadd.f32 %v1758, %v1761
        %v1764 = vmul.f32 %v1763, 0.2
        %v1765 = vsub.f32 %v1724, %v1764
        %v1766 = vld [vmem:[#allocation6] sm:$0xff]
        %v1767 = vld [vmem:[#allocation6 + $0x8] sm:$0xff]
        %v1768 = vld [vmem:[#allocation6 + $0x10] sm:$0xff]
        %v1769 = vld [vmem:[#allocation6 + $0x18] sm:$0xff]
        %v1771 = vsel %vm472, %v1765, 0
        %1773 = vmatprep.subr.mxu0 0.0
        %1774 = vmatpush1.msra.mxu0 %v1766
        %1775 = vmatprep.subr.mxu0 0.0
        %1776 = vmatpush1.msra.mxu0 %v1767
        %1777 = vmatprep.subr.mxu0 0.0
        %1778 = vmatpush1.msra.mxu0 %v1768
        %1779 = vmatprep.subr.mxu0 0.0
        %1780 = vmatpush1.msra.mxu0 %v1769
        %1781 = vmatprep.subr.mxu0 0.0
        %1782 = vmatpush1.msra.mxu0 0.0
        %1783 = vmatprep.subr.mxu0 0.0
        %1784 = vmatpush1.msra.mxu0 0.0
        %1785 = vmatprep.subr.mxu0 0.0
        %1786 = vmatpush1.msra.mxu0 0.0
        %1787 = vmatprep.subr.mxu0 0.0
        %1788 = vmatpush1.msra.mxu0 0.0
        %1789 = vmatprep.subr.mxu0 0.0
        %1790 = vmatpush1.msra.mxu0 0.0
        %1791 = vmatprep.subr.mxu0 0.0
        %1792 = vmatpush1.msra.mxu0 0.0
        %1793 = vmatprep.subr.mxu0 0.0
        %1794 = vmatpush1.msra.mxu0 0.0
        %1795 = vmatprep.subr.mxu0 0.0
        %1796 = vmatpush1.msra.mxu0 0.0
        %1797 = vmatprep.subr.mxu0 0.0
        %1798 = vmatpush1.msra.mxu0 0.0
        %1799 = vmatprep.subr.mxu0 0.0
        %1800 = vmatpush1.msra.mxu0 0.0
        %1801 = vmatprep.subr.mxu0 0.0
        %1802 = vmatpush1.msra.mxu0 0.0
        %1803 = vmatprep.subr.mxu0 0.0
        %1804 = vmatpush1.msra.mxu0 0.0
        %1805 = vmatprep.subr.mxu0 0.0
        %1806 = vmatpush1.msra.mxu0 0.0
        %1807 = vmatprep.subr.mxu0 0.0
        %1808 = vmatpush1.msra.mxu0 0.0
        %1809 = vmatprep.subr.mxu0 0.0
        %1810 = vmatpush1.msra.mxu0 0.0
        %1811 = vmatprep.subr.mxu0 0.0
        %1812 = vmatpush1.msra.mxu0 0.0
        %1813 = vmatprep.subr.mxu0 0.0
        %1814 = vmatpush1.msra.mxu0 0.0
        %1815 = vmatprep.subr.mxu0 0.0
        %1816 = vmatpush1.msra.mxu0 0.0
        %1817 = vmatprep.subr.mxu0 0.0
        %1818 = vmatpush1.msra.mxu0 0.0
        %1819 = vmatprep.subr.mxu0 0.0
        %1820 = vmatpush1.msra.mxu0 0.0
        %1821 = vmatprep.subr.mxu0 0.0
        %1822 = vmatpush1.msra.mxu0 0.0
        %1823 = vmatprep.subr.mxu0 0.0
        %1824 = vmatpush1.msra.mxu0 0.0
        %1825 = vmatprep.subr.mxu0 0.0
        %1826 = vmatpush1.msra.mxu0 0.0
        %1827 = vmatprep.subr.mxu0 0.0
        %1828 = vmatpush1.msra.mxu0 0.0
        %1829 = vmatprep.subr.mxu0 0.0
        %1830 = vmatpush1.msra.mxu0 0.0
        %1831 = vmatprep.subr.mxu0 0.0
        %1832 = vmatpush1.msra.mxu0 0.0
        %1833 = vmatprep.subr.mxu0 0.0
        %1834 = vmatpush1.msra.mxu0 0.0
        %1835 = vmatprep.subr.mxu0 0.0
        %1836 = vmatpush1.msra.mxu0 0.0
        %1837 = vmatprep.mubr.f32.mxu0 0.0
        %1838 = vmatmul.mubr.f32.gmra.mrb[0].mxu0 %v1771
        %v1839 = vpop.f32.mrb[0].mxu0
        %v1840 = vadd.f32 0.0, %v1839
        %v1841 = vpop.f32.mrb[0].mxu0
        %1842 = vdwg.mxu0
        %v1843 = vmax.f32 %v1840, 0.0
        %v1844 = vld [vmem:[#allocation7] sm:$0xff]
        %v1845 = vld [vmem:[#allocation7 + $0x8] sm:$0xff]
        %v1846 = vld [vmem:[#allocation7 + $0x10] sm:$0xff]
        %v1847 = vld [vmem:[#allocation7 + $0x18] sm:$0xff]
        %v1848 = vld [vmem:[#allocation7 + $0x20] sm:$0xff]
        %v1849 = vld [vmem:[#allocation7 + $0x28] sm:$0xff]
        %v1850 = vld [vmem:[#allocation7 + $0x30] sm:$0xff]
        %v1851 = vld [vmem:[#allocation7 + $0x38] sm:$0xff]
        %vm1852 = vcmask 523264
        %v1854 = vsel %vm1852, %v1843, 0
        %1856 = vmatprep.subr.mxu0 0.0
        %1857 = vmatpush1.msra.mxu0 %v1844
        %1858 = vmatprep.subr.mxu0 0.0
        %1859 = vmatpush1.msra.mxu0 %v1845
        %1860 = vmatprep.subr.mxu0 0.0
        %1861 = vmatpush1.msra.mxu0 %v1846
        %1862 = vmatprep.subr.mxu0 0.0
        %1863 = vmatpush1.msra.mxu0 %v1847
        %1864 = vmatprep.subr.mxu0 0.0
        %1865 = vmatpush1.msra.mxu0 %v1848
        %1866 = vmatprep.subr.mxu0 0.0
        %1867 = vmatpush1.msra.mxu0 %v1849
        %1868 = vmatprep.subr.mxu0 0.0
        %1869 = vmatpush1.msra.mxu0 %v1850
        %1870 = vmatprep.subr.mxu0 0.0
        %1871 = vmatpush1.msra.mxu0 %v1851
        %1872 = vmatprep.subr.mxu0 0.0
        %1873 = vmatpush1.msra.mxu0 0.0
        %1874 = vmatprep.subr.mxu0 0.0
        %1875 = vmatpush1.msra.mxu0 0.0
        %1876 = vmatprep.subr.mxu0 0.0
        %1877 = vmatpush1.msra.mxu0 0.0
        %1878 = vmatprep.subr.mxu0 0.0
        %1879 = vmatpush1.msra.mxu0 0.0
        %1880 = vmatprep.subr.mxu0 0.0
        %1881 = vmatpush1.msra.mxu0 0.0
        %1882 = vmatprep.subr.mxu0 0.0
        %1883 = vmatpush1.msra.mxu0 0.0
        %1884 = vmatprep.subr.mxu0 0.0
        %1885 = vmatpush1.msra.mxu0 0.0
        %1886 = vmatprep.subr.mxu0 0.0
        %1887 = vmatpush1.msra.mxu0 0.0
        %1888 = vmatprep.subr.mxu0 0.0
        %1889 = vmatpush1.msra.mxu0 0.0
        %1890 = vmatprep.subr.mxu0 0.0
        %1891 = vmatpush1.msra.mxu0 0.0
        %1892 = vmatprep.subr.mxu0 0.0
        %1893 = vmatpush1.msra.mxu0 0.0
        %1894 = vmatprep.subr.mxu0 0.0
        %1895 = vmatpush1.msra.mxu0 0.0
        %1896 = vmatprep.subr.mxu0 0.0
        %1897 = vmatpush1.msra.mxu0 0.0
        %1898 = vmatprep.subr.mxu0 0.0
        %1899 = vmatpush1.msra.mxu0 0.0
        %1900 = vmatprep.subr.mxu0 0.0
        %1901 = vmatpush1.msra.mxu0 0.0
        %1902 = vmatprep.subr.mxu0 0.0
        %1903 = vmatpush1.msra.mxu0 0.0
        %1904 = vmatprep.subr.mxu0 0.0
        %1905 = vmatpush1.msra.mxu0 0.0
        %1906 = vmatprep.subr.mxu0 0.0
        %1907 = vmatpush1.msra.mxu0 0.0
        %1908 = vmatprep.subr.mxu0 0.0
        %1909 = vmatpush1.msra.mxu0 0.0
        %1910 = vmatprep.subr.mxu0 0.0
        %1911 = vmatpush1.msra.mxu0 0.0
        %1912 = vmatprep.subr.mxu0 0.0
        %1913 = vmatpush1.msra.mxu0 0.0
        %1914 = vmatprep.subr.mxu0 0.0
        %1915 = vmatpush1.msra.mxu0 0.0
        %1916 = vmatprep.subr.mxu0 0.0
        %1917 = vmatpush1.msra.mxu0 0.0
        %1918 = vmatprep.subr.mxu0 0.0
        %1919 = vmatpush1.msra.mxu0 0.0
        %1920 = vmatprep.mubr.f32.mxu0 0.0
        %1921 = vmatmul.mubr.f32.gmra.mrb[0].mxu0 %v1854
        %v1922 = vpop.f32.mrb[0].mxu0
        %v1923 = vadd.f32 0.0, %v1922
        %v1924 = vpop.f32.mrb[0].mxu0
        %1925 = vdwg.mxu0
        %v1926 = vadd.f32 %v1765, %v1923
        %v1927 = vlaneseq
        %v1928 = vshrl.u32 %v1927, 7
        %v1929 = vsub.s32 0, %v1928
        %v1930 = vrot.slane %v1926, %v1929
        %v1931 = vlaneseq
        %v1932 = vshrl.u32 %v1931, 7
        %v1933 = vsub.s32 7, %v1932
        %v1934 = vrot.slane %v1926, %v1933
        %v1936 = vrot.slane %v1926, 6
        %v1938 = vsel %vm1736, %v1930, %v1936
        %v1939 = vsel %vm1736, %v1936, %v1934
        %v1942 = vrot.slane %v1938, 1
        %v1943 = vrot.slane %v1939, 1
        %v1944 = vsel %vm1741, %v1942, %v1943
        %v1946 = vadd.f32 %v1938, %v1944
        %v1947 = vrot.slane %v1938, 2
        %v1948 = vrot.slane %v1939, 2
        %v1949 = vsel %vm1747, %v1947, %v1948
        %v1951 = vadd.f32 %v1946, %v1949
        %v1952 = vrot.slane %v1938, 3
        %v1953 = vrot.slane %v1939, 3
        %v1954 = vsel %vm1753, %v1952, %v1953
        %v1956 = vadd.f32 %v1951, %v1954
        %v1957 = vrot.slane %v1938, 4
        %v1958 = vrot.slane %v1939, 4
        %v1959 = vsel %vm459, %v1957, %v1958
        %v1961 = vadd.f32 %v1956, %v1959
        %v1962 = vmul.f32 %v1961, 0.2
        %v1963 = vsub.f32 %v1926, %v1962
        %1964 = vrot.lane.b32.xlu0 %v992, 12
        %v1965 = vpop.permute.xlu0 %1964
        %1967 = vrot.lane.b32.xlu0 %v1313, 24
        %v1968 = vpop.permute.xlu0 %1967
        %1970 = vrot.lane.b32.xlu0 %v1561, 36
        %v1971 = vpop.permute.xlu0 %1970
        %v1973 = vsel %vm811, %v822, %v1965
        %vm1974 = vcmask 195584
        %v1975 = vsel %vm1974, %v1973, %v1968
        %vm1976 = vcmask 293888
        %v1977 = vsel %vm1976, %v1975, %v1971
        %v1979 = vrot.slane %v1977, 1
        %1980 = vrot.lane.b32.xlu0 %v1979, 48
        %v1981 = vpop.permute.xlu0 %1980
        %v1983 = vrot.slane %v1977, 2
        %1984 = vrot.lane.b32.xlu0 %v1983, 96
        %v1985 = vpop.permute.xlu0 %1984
        %v1987 = vrot.slane %v1977, 3
        %1988 = vrot.lane.b32.xlu0 %v1987, 16
        %v1989 = vpop.permute.xlu0 %1988
        %v1991 = vrot.slane %v1977, 4
        %1992 = vrot.lane.b32.xlu0 %v1991, 64
        %v1993 = vpop.permute.xlu0 %1992
        %v1995 = vrot.slane %v1977, 5
        %1996 = vrot.lane.b32.xlu0 %v1995, 112
        %v1997 = vpop.permute.xlu0 %1996
        %v1999 = vrot.slane %v1977, 6
        %2000 = vrot.lane.b32.xlu0 %v1999, 32
        %v2001 = vpop.permute.xlu0 %2000
        %v2003 = vrot.slane %v1977, 7
        %2004 = vrot.lane.b32.xlu0 %v2003, 80
        %v2005 = vpop.permute.xlu0 %2004
        %vm2007 = vcmask 392192
        %v2008 = vsel %vm2007, %v1977, %v1981
        %vm2009 = vcmask 785408
        %v2010 = vsel %vm2009, %v2008, %v1985
        %vm2011 = vcmask 130048
        %v2012 = vsel %vm2011, %v1985, %v1989
        %v2013 = vsel %vm1852, %v2012, %v1993
        %vm2014 = vcmask 916480
        %v2015 = vsel %vm2014, %v2013, %v1997
        %v2016 = vsel %vm472, %v1997, %v2001
        %vm2017 = vcmask 654336
        %v2018 = vsel %vm2017, %v2016, %v2005
        %v2022 = vcombine.low %v2010, %v2015
        %v2024 = vunpack.c.l.s4 1966171168
        %v2025 = vunpack.c.0.s8 %v2024
        %v2026 = vlaneseq
        %v2027 = vshrl.u32 %v2026, 7
        %v2028 = vsub.s32 %v2025, %v2027
        %v2029 = vrot.slane %v2022, %v2028
        %v2031 = vunpack.c.l.s4 1966171168
        %v2032 = vunpack.c.0.s8 %v2031
        %v2033 = vlaneseq
        %v2034 = vshrl.u32 %v2033, 7
        %v2035 = vsub.s32 %v2032, %v2034
        %v2036 = vrot.slane %v2018, %v2035
        %v2037 = vcombine.low %v2029, %v2036
        %v2039 = vunpack.c.l.s4 1966171168
        %v2040 = vunpack.c.0.s8 %v2039
        %v2041 = vlaneseq
        %v2042 = vshrl.u32 %v2041, 7
        %v2043 = vsub.s32 %v2040, %v2042
        %v2044 = vrot.slane %v2037, %v2043
        %v2046 = vlaneseq
        %vm2047 = vcmp.ge.s32.totalorder %v2046, 0
        %vm2048 = vcmp.lt.s32.totalorder %v2046, 384
        %vm2049 = vmand %vm2047, %vm2048
        %2050 = vst.msk [vmem:[%s453] ss:$2 sm:$0x7] %vm2049, %v2044
        %s2051 = scalar_lea.vmem %s1, 4
        %v2052 = vld [vmem:[%s2051] sm:$0xf]
        %v2054 = vrot.slane %v1963, 4
        %v2056 = vsel %vm459, %v2052, %v2054
        %s2057 = scalar_lea.vmem [#allocation2], 96
        %v2058 = vld [vmem:[%s2057] sm:$0xff]
        %v2059 = vld [vmem:[%s2057 + $0x8] sm:$0xff]
        %v2060 = vld [vmem:[%s2057 + $0x10] sm:$0xff]
        %v2061 = vld [vmem:[%s2057 + $0x18] sm:$0xff]
        %s2062 = scalar_lea.vmem %s3, 3
        %v2063 = vld [vmem:[%s2062] sm:$0x1]
        %v2065 = vlaneseq
        %v2066 = vshrl.u32 %v2065, 7
        %v2067 = vsub.s32 0, %v2066
        %v2068 = vrot.slane %v2063, %v2067
        %v2070 = vsel %vm472, %v1963, 0
        %2072 = vmatprep.subr.mxu0 0.0
        %2073 = vmatpush1.msra.mxu0 %v2058
        %2074 = vmatprep.subr.mxu0 0.0
        %2075 = vmatpush1.msra.mxu0 %v2059
        %2076 = vmatprep.subr.mxu0 0.0
        %2077 = vmatpush1.msra.mxu0 %v2060
        %2078 = vmatprep.subr.mxu0 0.0
        %2079 = vmatpush1.msra.mxu0 %v2061
        %2080 = vmatprep.subr.mxu0 0.0
        %2081 = vmatpush1.msra.mxu0 0.0
        %2082 = vmatprep.subr.mxu0 0.0
        %2083 = vmatpush1.msra.mxu0 0.0
        %2084 = vmatprep.subr.mxu0 0.0
        %2085 = vmatpush1.msra.mxu0 0.0
        %2086 = vmatprep.subr.mxu0 0.0
        %2087 = vmatpush1.msra.mxu0 0.0
        %2088 = vmatprep.subr.mxu0 0.0
        %2089 = vmatpush1.msra.mxu0 0.0
        %2090 = vmatprep.subr.mxu0 0.0
        %2091 = vmatpush1.msra.mxu0 0.0
        %2092 = vmatprep.subr.mxu0 0.0
        %2093 = vmatpush1.msra.mxu0 0.0
        %2094 = vmatprep.subr.mxu0 0.0
        %2095 = vmatpush1.msra.mxu0 0.0
        %2096 = vmatprep.subr.mxu0 0.0
        %2097 = vmatpush1.msra.mxu0 0.0
        %2098 = vmatprep.subr.mxu0 0.0
        %2099 = vmatpush1.msra.mxu0 0.0
        %2100 = vmatprep.subr.mxu0 0.0
        %2101 = vmatpush1.msra.mxu0 0.0
        %2102 = vmatprep.subr.mxu0 0.0
        %2103 = vmatpush1.msra.mxu0 0.0
        %2104 = vmatprep.subr.mxu0 0.0
        %2105 = vmatpush1.msra.mxu0 0.0
        %2106 = vmatprep.subr.mxu0 0.0
        %2107 = vmatpush1.msra.mxu0 0.0
        %2108 = vmatprep.subr.mxu0 0.0
        %2109 = vmatpush1.msra.mxu0 0.0
        %2110 = vmatprep.subr.mxu0 0.0
        %2111 = vmatpush1.msra.mxu0 0.0
        %2112 = vmatprep.subr.mxu0 0.0
        %2113 = vmatpush1.msra.mxu0 0.0
        %2114 = vmatprep.subr.mxu0 0.0
        %2115 = vmatpush1.msra.mxu0 0.0
        %2116 = vmatprep.subr.mxu0 0.0
        %2117 = vmatpush1.msra.mxu0 0.0
        %2118 = vmatprep.subr.mxu0 0.0
        %2119 = vmatpush1.msra.mxu0 0.0
        %2120 = vmatprep.subr.mxu0 0.0
        %2121 = vmatpush1.msra.mxu0 0.0
        %2122 = vmatprep.subr.mxu0 0.0
        %2123 = vmatpush1.msra.mxu0 0.0
        %2124 = vmatprep.subr.mxu0 0.0
        %2125 = vmatpush1.msra.mxu0 0.0
        %2126 = vmatprep.subr.mxu0 0.0
        %2127 = vmatpush1.msra.mxu0 0.0
        %2128 = vmatprep.subr.mxu0 0.0
        %2129 = vmatpush1.msra.mxu0 0.0
        %2130 = vmatprep.subr.mxu0 0.0
        %2131 = vmatpush1.msra.mxu0 0.0
        %2132 = vmatprep.subr.mxu0 0.0
        %2133 = vmatpush1.msra.mxu0 0.0
        %2134 = vmatprep.subr.mxu0 0.0
        %2135 = vmatpush1.msra.mxu0 0.0
        %2136 = vmatprep.mubr.f32.mxu0 0.0
        %2137 = vmatmul.mubr.f32.gmra.mrb[0].mxu0 %v2070
        %v2138 = vpop.f32.mrb[0].mxu0
        %v2139 = vadd.f32 %v2068, %v2138
        %v2140 = vpop.f32.mrb[0].mxu0
        %2141 = vdwg.mxu0
        %s2142 = scalar_lea.vmem [#allocation2], 128
        %v2143 = vld [vmem:[%s2142] sm:$0xff]
        %v2144 = vld [vmem:[%s2142 + $0x8] sm:$0xff]
        %v2145 = vld [vmem:[%s2142 + $0x10] sm:$0xff]
        %v2146 = vld [vmem:[%s2142 + $0x18] sm:$0xff]
        %s2147 = scalar_lea.vmem %s3, 4
        %v2148 = vld [vmem:[%s2147] sm:$0x1]
        %v2150 = vlaneseq
        %v2151 = vshrl.u32 %v2150, 7
        %v2152 = vsub.s32 0, %v2151
        %v2153 = vrot.slane %v2148, %v2152
        %v2156 = vsel %vm472, %v2056, 0
        %v2158 = vsel %vm472, %v2054, 0
        %2160 = vmatprep.subr.mxu0 0.0
        %2161 = vmatpush1.msra.mxu0 %v2143
        %2162 = vmatprep.subr.mxu0 0.0
        %2163 = vmatpush1.msra.mxu0 %v2144
        %2164 = vmatprep.subr.mxu0 0.0
        %2165 = vmatpush1.msra.mxu0 %v2145
        %2166 = vmatprep.subr.mxu0 0.0
        %2167 = vmatpush1.msra.mxu0 %v2146
        %2168 = vmatprep.subr.mxu0 0.0
        %2169 = vmatpush1.msra.mxu0 0.0
        %2170 = vmatprep.subr.mxu0 0.0
        %2171 = vmatpush1.msra.mxu0 0.0
        %2172 = vmatprep.subr.mxu0 0.0
        %2173 = vmatpush1.msra.mxu0 0.0
        %2174 = vmatprep.subr.mxu0 0.0
        %2175 = vmatpush1.msra.mxu0 0.0
        %2176 = vmatprep.subr.mxu0 0.0
        %2177 = vmatpush1.msra.mxu0 0.0
        %2178 = vmatprep.subr.mxu0 0.0
        %2179 = vmatpush1.msra.mxu0 0.0
        %2180 = vmatprep.subr.mxu0 0.0
        %2181 = vmatpush1.msra.mxu0 0.0
        %2182 = vmatprep.subr.mxu0 0.0
        %2183 = vmatpush1.msra.mxu0 0.0
        %2184 = vmatprep.subr.mxu0 0.0
        %2185 = vmatpush1.msra.mxu0 0.0
        %2186 = vmatprep.subr.mxu0 0.0
        %2187 = vmatpush1.msra.mxu0 0.0
        %2188 = vmatprep.subr.mxu0 0.0
        %2189 = vmatpush1.msra.mxu0 0.0
        %2190 = vmatprep.subr.mxu0 0.0
        %2191 = vmatpush1.msra.mxu0 0.0
        %2192 = vmatprep.subr.mxu0 0.0
        %2193 = vmatpush1.msra.mxu0 0.0
        %2194 = vmatprep.subr.mxu0 0.0
        %2195 = vmatpush1.msra.mxu0 0.0
        %2196 = vmatprep.subr.mxu0 0.0
        %2197 = vmatpush1.msra.mxu0 0.0
        %2198 = vmatprep.subr.mxu0 0.0
        %2199 = vmatpush1.msra.mxu0 0.0
        %2200 = vmatprep.subr.mxu0 0.0
        %2201 = vmatpush1.msra.mxu0 0.0
        %2202 = vmatprep.subr.mxu0 0.0
        %2203 = vmatpush1.msra.mxu0 0.0
        %2204 = vmatprep.subr.mxu0 0.0
        %2205 = vmatpush1.msra.mxu0 0.0
        %2206 = vmatprep.subr.mxu0 0.0
        %2207 = vmatpush1.msra.mxu0 0.0
        %2208 = vmatprep.subr.mxu0 0.0
        %2209 = vmatpush1.msra.mxu0 0.0
        %2210 = vmatprep.subr.mxu0 0.0
        %2211 = vmatpush1.msra.mxu0 0.0
        %2212 = vmatprep.subr.mxu0 0.0
        %2213 = vmatpush1.msra.mxu0 0.0
        %2214 = vmatprep.subr.mxu0 0.0
        %2215 = vmatpush1.msra.mxu0 0.0
        %2216 = vmatprep.subr.mxu0 0.0
        %2217 = vmatpush1.msra.mxu0 0.0
        %2218 = vmatprep.subr.mxu0 0.0
        %2219 = vmatpush1.msra.mxu0 0.0
        %2220 = vmatprep.subr.mxu0 0.0
        %2221 = vmatpush1.msra.mxu0 0.0
        %2222 = vmatprep.subr.mxu0 0.0
        %2223 = vmatpush1.msra.mxu0 0.0
        %2224 = vmatprep.mubr.f32.mxu0 0.0
        %2225 = vmatmul.mubr.f32.gmra.mrb[0].mxu0 %v2156
        %v2226 = vpop.f32.mrb[0].mxu0
        %v2227 = vadd.f32 %v2153, %v2226
        %v2228 = vpop.f32.mrb[0].mxu0
        %2229 = vmatprep.mubr.f32.mxu0 0.0
        %2230 = vmatmul.mubr.f32.gmra.mrb[0].mxu0 %v2158
        %v2231 = vpop.f32.mrb[0].mxu0
        %v2232 = vadd.f32 %v2153, %v2231
        %v2233 = vpop.f32.mrb[0].mxu0
        %2234 = vdwg.mxu0
        %s2235 = scalar_lea.vmem [#allocation2], 160
        %v2236 = vld [vmem:[%s2235] sm:$0xff]
        %v2237 = vld [vmem:[%s2235 + $0x8] sm:$0xff]
        %v2238 = vld [vmem:[%s2235 + $0x10] sm:$0xff]
        %v2239 = vld [vmem:[%s2235 + $0x18] sm:$0xff]
        %s2240 = scalar_lea.vmem %s3, 5
        %v2241 = vld [vmem:[%s2240] sm:$0x1]
        %v2243 = vlaneseq
        %v2244 = vshrl.u32 %v2243, 7
        %v2245 = vsub.s32 0, %v2244
        %v2246 = vrot.slane %v2241, %v2245
        %2248 = vmatprep.subr.mxu0 0.0
        %2249 = vmatpush1.msra.mxu0 %v2236
        %2250 = vmatprep.subr.mxu0 0.0
        %2251 = vmatpush1.msra.mxu0 %v2237
        %2252 = vmatprep.subr.mxu0 0.0
        %2253 = vmatpush1.msra.mxu0 %v2238
        %2254 = vmatprep.subr.mxu0 0.0
        %2255 = vmatpush1.msra.mxu0 %v2239
        %2256 = vmatprep.subr.mxu0 0.0
        %2257 = vmatpush1.msra.mxu0 0.0
        %2258 = vmatprep.subr.mxu0 0.0
        %2259 = vmatpush1.msra.mxu0 0.0
        %2260 = vmatprep.subr.mxu0 0.0
        %2261 = vmatpush1.msra.mxu0 0.0
        %2262 = vmatprep.subr.mxu0 0.0
        %2263 = vmatpush1.msra.mxu0 0.0
        %2264 = vmatprep.subr.mxu0 0.0
        %2265 = vmatpush1.msra.mxu0 0.0
        %2266 = vmatprep.subr.mxu0 0.0
        %2267 = vmatpush1.msra.mxu0 0.0
        %2268 = vmatprep.subr.mxu0 0.0
        %2269 = vmatpush1.msra.mxu0 0.0
        %2270 = vmatprep.subr.mxu0 0.0
        %2271 = vmatpush1.msra.mxu0 0.0
        %2272 = vmatprep.subr.mxu0 0.0
        %2273 = vmatpush1.msra.mxu0 0.0
        %2274 = vmatprep.subr.mxu0 0.0
        %2275 = vmatpush1.msra.mxu0 0.0
        %2276 = vmatprep.subr.mxu0 0.0
        %2277 = vmatpush1.msra.mxu0 0.0
        %2278 = vmatprep.subr.mxu0 0.0
        %2279 = vmatpush1.msra.mxu0 0.0
        %2280 = vmatprep.subr.mxu0 0.0
        %2281 = vmatpush1.msra.mxu0 0.0
        %2282 = vmatprep.subr.mxu0 0.0
        %2283 = vmatpush1.msra.mxu0 0.0
        %2284 = vmatprep.subr.mxu0 0.0
        %2285 = vmatpush1.msra.mxu0 0.0
        %2286 = vmatprep.subr.mxu0 0.0
        %2287 = vmatpush1.msra.mxu0 0.0
        %2288 = vmatprep.subr.mxu0 0.0
        %2289 = vmatpush1.msra.mxu0 0.0
        %2290 = vmatprep.subr.mxu0 0.0
        %2291 = vmatpush1.msra.mxu0 0.0
        %2292 = vmatprep.subr.mxu0 0.0
        %2293 = vmatpush1.msra.mxu0 0.0
        %2294 = vmatprep.subr.mxu0 0.0
        %2295 = vmatpush1.msra.mxu0 0.0
        %2296 = vmatprep.subr.mxu0 0.0
        %2297 = vmatpush1.msra.mxu0 0.0
        %2298 = vmatprep.subr.mxu0 0.0
        %2299 = vmatpush1.msra.mxu0 0.0
        %2300 = vmatprep.subr.mxu0 0.0
        %2301 = vmatpush1.msra.mxu0 0.0
        %2302 = vmatprep.subr.mxu0 0.0
        %2303 = vmatpush1.msra.mxu0 0.0
        %2304 = vmatprep.subr.mxu0 0.0
        %2305 = vmatpush1.msra.mxu0 0.0
        %2306 = vmatprep.subr.mxu0 0.0
        %2307 = vmatpush1.msra.mxu0 0.0
        %2308 = vmatprep.subr.mxu0 0.0
        %2309 = vmatpush1.msra.mxu0 0.0
        %2310 = vmatprep.subr.mxu0 0.0
        %2311 = vmatpush1.msra.mxu0 0.0
        %2312 = vmatprep.mubr.f32.mxu0 0.0
        %2313 = vmatmul.mubr.f32.gmra.mrb[0].mxu0 %v2156
        %v2314 = vpop.f32.mrb[0].mxu0
        %v2315 = vadd.f32 %v2246, %v2314
        %v2316 = vpop.f32.mrb[0].mxu0
        %2317 = vmatprep.mubr.f32.mxu0 0.0
        %2318 = vmatmul.mubr.f32.gmra.mrb[0].mxu0 %v2158
        %v2319 = vpop.f32.mrb[0].mxu0
        %v2320 = vadd.f32 %v2246, %v2319
        %v2321 = vpop.f32.mrb[0].mxu0
        %2322 = vdwg.mxu0
        %s2323 = scalar_lea.vmem [#allocation4], 32
        %v2324 = vld [vmem:[%s2323] sm:$0xff]
        %v2325 = vld [vmem:[%s2323 + $0x8] sm:$0xff]
        %v2326 = vld [vmem:[%s2323 + $0x10] sm:$0xff]
        %v2327 = vld [vmem:[%s2323 + $0x18] sm:$0xff]
        %v2329 = vsel %vm730, %v2139, 0
        %v2332 = vsel %vm730, %v2227, 0
        %v2335 = vsel %vm730, %v2232, 0
        %2337 = vmatprep.subr.mxu0 0.0
        %2338 = vmatpush1.xpose.msra.mxu0 %v2332
        %2339 = vmatprep.subr.mxu0 0.0
        %2340 = vmatpush1.xpose.msra.mxu0 %v2335
        %2341 = vmatprep.subr.mxu0 0.0
        %2342 = vmatpush1.xpose.msra.mxu0 0.0
        %2343 = vmatprep.subr.mxu0 0.0
        %2344 = vmatpush1.xpose.msra.mxu0 0.0
        %2345 = vmatprep.subr.mxu0 0.0
        %2346 = vmatpush1.xpose.msra.mxu0 0.0
        %2347 = vmatprep.subr.mxu0 0.0
        %2348 = vmatpush1.xpose.msra.mxu0 0.0
        %2349 = vmatprep.subr.mxu0 0.0
        %2350 = vmatpush1.xpose.msra.mxu0 0.0
        %2351 = vmatprep.subr.mxu0 0.0
        %2352 = vmatpush1.xpose.msra.mxu0 0.0
        %2353 = vmatprep.subr.mxu0 0.0
        %2354 = vmatpush1.xpose.msra.mxu0 0.0
        %2355 = vmatprep.subr.mxu0 0.0
        %2356 = vmatpush1.xpose.msra.mxu0 0.0
        %2357 = vmatprep.subr.mxu0 0.0
        %2358 = vmatpush1.xpose.msra.mxu0 0.0
        %2359 = vmatprep.subr.mxu0 0.0
        %2360 = vmatpush1.xpose.msra.mxu0 0.0
        %2361 = vmatprep.subr.mxu0 0.0
        %2362 = vmatpush1.xpose.msra.mxu0 0.0
        %2363 = vmatprep.subr.mxu0 0.0
        %2364 = vmatpush1.xpose.msra.mxu0 0.0
        %2365 = vmatprep.subr.mxu0 0.0
        %2366 = vmatpush1.xpose.msra.mxu0 0.0
        %2367 = vmatprep.subr.mxu0 0.0
        %2368 = vmatpush1.xpose.msra.mxu0 0.0
        %2369 = vmatprep.subr.mxu0 0.0
        %2370 = vmatpush1.xpose.msra.mxu0 0.0
        %2371 = vmatprep.subr.mxu0 0.0
        %2372 = vmatpush1.xpose.msra.mxu0 0.0
        %2373 = vmatprep.subr.mxu0 0.0
        %2374 = vmatpush1.xpose.msra.mxu0 0.0
        %2375 = vmatprep.subr.mxu0 0.0
        %2376 = vmatpush1.xpose.msra.mxu0 0.0
        %2377 = vmatprep.subr.mxu0 0.0
        %2378 = vmatpush1.xpose.msra.mxu0 0.0
        %2379 = vmatprep.subr.mxu0 0.0
        %2380 = vmatpush1.xpose.msra.mxu0 0.0
        %2381 = vmatprep.subr.mxu0 0.0
        %2382 = vmatpush1.xpose.msra.mxu0 0.0
        %2383 = vmatprep.subr.mxu0 0.0
        %2384 = vmatpush1.xpose.msra.mxu0 0.0
        %2385 = vmatprep.subr.mxu0 0.0
        %2386 = vmatpush1.xpose.msra.mxu0 0.0
        %2387 = vmatprep.subr.mxu0 0.0
        %2388 = vmatpush1.xpose.msra.mxu0 0.0
        %2389 = vmatprep.subr.mxu0 0.0
        %2390 = vmatpush1.xpose.msra.mxu0 0.0
        %2391 = vmatprep.subr.mxu0 0.0
        %2392 = vmatpush1.xpose.msra.mxu0 0.0
        %2393 = vmatprep.subr.mxu0 0.0
        %2394 = vmatpush1.xpose.msra.mxu0 0.0
        %2395 = vmatprep.subr.mxu0 0.0
        %2396 = vmatpush1.xpose.msra.mxu0 0.0
        %2397 = vmatprep.subr.mxu0 0.0
        %2398 = vmatpush1.xpose.msra.mxu0 0.0
        %2399 = vmatprep.subr.mxu0 0.0
        %2400 = vmatpush1.xpose.msra.mxu0 0.0
        %2401 = vmatprep.mubr.f32.mxu0 0.0
        %2402 = vmatmul.mubr.f32.gmra.mrb[0].mxu0 %v2329
        %v2403 = vpop.f32.mrb[0].mxu0
        %v2404 = vadd.f32 0.0, %v2403
        %v2405 = vpop.f32.mrb[0].mxu0
        %2406 = vdwg.mxu0
        %v2407 = vmul.f32 %v2404, 0.35355338
        %v2408 = vsel %vm811, %v2407, -inf
        %2409 = vmax.xlane.f32.xlu0 %v2408
        %v2410 = vpop.xlane.xlu0 %2409
        %v2411 = vsub.f32 %v2407, %v2410
        %v2412 = vmul.f32 %v2411, 1.442695
        %v2413 = vpow.pop %v2412
        %v2414 = vsel %vm811, %v2413, 0.0
        %2415 = vadd.xlane.f32.xlu0 %v2414
        %v2416 = vpop.xlane.xlu0 %2415
        %v2417 = vrcp.pop %v2416
        %v2418 = vmul.f32 %v2413, %v2417
        %v2420 = vsel %vm811, %v2418, 0
        %v2423 = vsel %vm459, %v2320, 0
        %2425 = vmatprep.subr.mxu0 0.0
        %2426 = vmatpush1.msra.mxu0 %v2315
        %2427 = vmatprep.subr.mxu0 0.0
        %2428 = vmatpush1.msra.mxu0 %v2423
        %2429 = vmatprep.subr.mxu0 0.0
        %2430 = vmatpush1.msra.mxu0 0.0
        %2431 = vmatprep.subr.mxu0 0.0
        %2432 = vmatpush1.msra.mxu0 0.0
        %2433 = vmatprep.subr.mxu0 0.0
        %2434 = vmatpush1.msra.mxu0 0.0
        %2435 = vmatprep.subr.mxu0 0.0
        %2436 = vmatpush1.msra.mxu0 0.0
        %2437 = vmatprep.subr.mxu0 0.0
        %2438 = vmatpush1.msra.mxu0 0.0
        %2439 = vmatprep.subr.mxu0 0.0
        %2440 = vmatpush1.msra.mxu0 0.0
        %2441 = vmatprep.subr.mxu0 0.0
        %2442 = vmatpush1.msra.mxu0 0.0
        %2443 = vmatprep.subr.mxu0 0.0
        %2444 = vmatpush1.msra.mxu0 0.0
        %2445 = vmatprep.subr.mxu0 0.0
        %2446 = vmatpush1.msra.mxu0 0.0
        %2447 = vmatprep.subr.mxu0 0.0
        %2448 = vmatpush1.msra.mxu0 0.0
        %2449 = vmatprep.subr.mxu0 0.0
        %2450 = vmatpush1.msra.mxu0 0.0
        %2451 = vmatprep.subr.mxu0 0.0
        %2452 = vmatpush1.msra.mxu0 0.0
        %2453 = vmatprep.subr.mxu0 0.0
        %2454 = vmatpush1.msra.mxu0 0.0
        %2455 = vmatprep.subr.mxu0 0.0
        %2456 = vmatpush1.msra.mxu0 0.0
        %2457 = vmatprep.subr.mxu0 0.0
        %2458 = vmatpush1.msra.mxu0 0.0
        %2459 = vmatprep.subr.mxu0 0.0
        %2460 = vmatpush1.msra.mxu0 0.0
        %2461 = vmatprep.subr.mxu0 0.0
        %2462 = vmatpush1.msra.mxu0 0.0
        %2463 = vmatprep.subr.mxu0 0.0
        %2464 = vmatpush1.msra.mxu0 0.0
        %2465 = vmatprep.subr.mxu0 0.0
        %2466 = vmatpush1.msra.mxu0 0.0
        %2467 = vmatprep.subr.mxu0 0.0
        %2468 = vmatpush1.msra.mxu0 0.0
        %2469 = vmatprep.subr.mxu0 0.0
        %2470 = vmatpush1.msra.mxu0 0.0
        %2471 = vmatprep.subr.mxu0 0.0
        %2472 = vmatpush1.msra.mxu0 0.0
        %2473 = vmatprep.subr.mxu0 0.0
        %2474 = vmatpush1.msra.mxu0 0.0
        %2475 = vmatprep.subr.mxu0 0.0
        %2476 = vmatpush1.msra.mxu0 0.0
        %2477 = vmatprep.subr.mxu0 0.0
        %2478 = vmatpush1.msra.mxu0 0.0
        %2479 = vmatprep.subr.mxu0 0.0
        %2480 = vmatpush1.msra.mxu0 0.0
        %2481 = vmatprep.subr.mxu0 0.0
        %2482 = vmatpush1.msra.mxu0 0.0
        %2483 = vmatprep.subr.mxu0 0.0
        %2484 = vmatpush1.msra.mxu0 0.0
        %2485 = vmatprep.subr.mxu0 0.0
        %2486 = vmatpush1.msra.mxu0 0.0
        %2487 = vmatprep.subr.mxu0 0.0
        %2488 = vmatpush1.msra.mxu0 0.0
        %2489 = vmatprep.mubr.f32.mxu0 0.0
        %2490 = vmatmul.mubr.f32.gmra.mrb[0].mxu0 %v2420
        %v2491 = vpop.f32.mrb[0].mxu0
        %v2492 = vadd.f32 0.0, %v2491
        %v2493 = vpop.f32.mrb[0].mxu0
        %2494 = vdwg.mxu0
        %2495 = vrot.lane.b32.xlu0 %v2139, 120
        %v2496 = vpop.permute.xlu0 %2495
        %2497 = vrot.lane.b32.xlu0 %v2227, 120
        %v2498 = vpop.permute.xlu0 %2497
        %2499 = vrot.lane.b32.xlu0 %v2232, 120
        %v2500 = vpop.permute.xlu0 %2499
        %v2501 = vsel %vm730, %v2496, 0
        %v2503 = vsel %vm730, %v2498, 0
        %v2505 = vsel %vm730, %v2500, 0
        %2507 = vmatprep.subr.mxu0 0.0
        %2508 = vmatpush1.xpose.msra.mxu0 %v2503
        %2509 = vmatprep.subr.mxu0 0.0
        %2510 = vmatpush1.xpose.msra.mxu0 %v2505
        %2511 = vmatprep.subr.mxu0 0.0
        %2512 = vmatpush1.xpose.msra.mxu0 0.0
        %2513 = vmatprep.subr.mxu0 0.0
        %2514 = vmatpush1.xpose.msra.mxu0 0.0
        %2515 = vmatprep.subr.mxu0 0.0
        %2516 = vmatpush1.xpose.msra.mxu0 0.0
        %2517 = vmatprep.subr.mxu0 0.0
        %2518 = vmatpush1.xpose.msra.mxu0 0.0
        %2519 = vmatprep.subr.mxu0 0.0
        %2520 = vmatpush1.xpose.msra.mxu0 0.0
        %2521 = vmatprep.subr.mxu0 0.0
        %2522 = vmatpush1.xpose.msra.mxu0 0.0
        %2523 = vmatprep.subr.mxu0 0.0
        %2524 = vmatpush1.xpose.msra.mxu0 0.0
        %2525 = vmatprep.subr.mxu0 0.0
        %2526 = vmatpush1.xpose.msra.mxu0 0.0
        %2527 = vmatprep.subr.mxu0 0.0
        %2528 = vmatpush1.xpose.msra.mxu0 0.0
        %2529 = vmatprep.subr.mxu0 0.0
        %2530 = vmatpush1.xpose.msra.mxu0 0.0
        %2531 = vmatprep.subr.mxu0 0.0
        %2532 = vmatpush1.xpose.msra.mxu0 0.0
        %2533 = vmatprep.subr.mxu0 0.0
        %2534 = vmatpush1.xpose.msra.mxu0 0.0
        %2535 = vmatprep.subr.mxu0 0.0
        %2536 = vmatpush1.xpose.msra.mxu0 0.0
        %2537 = vmatprep.subr.mxu0 0.0
        %2538 = vmatpush1.xpose.msra.mxu0 0.0
        %2539 = vmatprep.subr.mxu0 0.0
        %2540 = vmatpush1.xpose.msra.mxu0 0.0
        %2541 = vmatprep.subr.mxu0 0.0
        %2542 = vmatpush1.xpose.msra.mxu0 0.0
        %2543 = vmatprep.subr.mxu0 0.0
        %2544 = vmatpush1.xpose.msra.mxu0 0.0
        %2545 = vmatprep.subr.mxu0 0.0
        %2546 = vmatpush1.xpose.msra.mxu0 0.0
        %2547 = vmatprep.subr.mxu0 0.0
        %2548 = vmatpush1.xpose.msra.mxu0 0.0
        %2549 = vmatprep.subr.mxu0 0.0
        %2550 = vmatpush1.xpose.msra.mxu0 0.0
        %2551 = vmatprep.subr.mxu0 0.0
        %2552 = vmatpush1.xpose.msra.mxu0 0.0
        %2553 = vmatprep.subr.mxu0 0.0
        %2554 = vmatpush1.xpose.msra.mxu0 0.0
        %2555 = vmatprep.subr.mxu0 0.0
        %2556 = vmatpush1.xpose.msra.mxu0 0.0
        %2557 = vmatprep.subr.mxu0 0.0
        %2558 = vmatpush1.xpose.msra.mxu0 0.0
        %2559 = vmatprep.subr.mxu0 0.0
        %2560 = vmatpush1.xpose.msra.mxu0 0.0
        %2561 = vmatprep.subr.mxu0 0.0
        %2562 = vmatpush1.xpose.msra.mxu0 0.0
        %2563 = vmatprep.subr.mxu0 0.0
        %2564 = vmatpush1.xpose.msra.mxu0 0.0
        %2565 = vmatprep.subr.mxu0 0.0
        %2566 = vmatpush1.xpose.msra.mxu0 0.0
        %2567 = vmatprep.subr.mxu0 0.0
        %2568 = vmatpush1.xpose.msra.mxu0 0.0
        %2569 = vmatprep.subr.mxu0 0.0
        %2570 = vmatpush1.xpose.msra.mxu0 0.0
        %2571 = vmatprep.mubr.f32.mxu0 0.0
        %2572 = vmatmul.mubr.f32.gmra.mrb[0].mxu0 %v2501
        %v2573 = vpop.f32.mrb[0].mxu0
        %v2574 = vadd.f32 0.0, %v2573
        %v2575 = vpop.f32.mrb[0].mxu0
        %2576 = vdwg.mxu0
        %v2577 = vmul.f32 %v2574, 0.35355338
        %v2578 = vsel %vm811, %v2577, -inf
        %2579 = vmax.xlane.f32.xlu0 %v2578
        %v2580 = vpop.xlane.xlu0 %2579
        %v2581 = vsub.f32 %v2577, %v2580
        %v2582 = vmul.f32 %v2581, 1.442695
        %v2583 = vpow.pop %v2582
        %v2584 = vsel %vm811, %v2583, 0.0
        %2585 = vadd.xlane.f32.xlu0 %v2584
        %v2586 = vpop.xlane.xlu0 %2585
        %v2587 = vrcp.pop %v2586
        %v2588 = vmul.f32 %v2583, %v2587
        %2590 = vrot.lane.b32.xlu0 %v2315, 120
        %v2591 = vpop.permute.xlu0 %2590
        %2592 = vrot.lane.b32.xlu0 %v2320, 120
        %v2593 = vpop.permute.xlu0 %2592
        %v2596 = vsel %vm811, %v2588, 0
        %v2598 = vsel %vm459, %v2593, 0
        %2600 = vmatprep.subr.mxu0 0.0
        %2601 = vmatpush1.msra.mxu0 %v2591
        %2602 = vmatprep.subr.mxu0 0.0
        %2603 = vmatpush1.msra.mxu0 %v2598
        %2604 = vmatprep.subr.mxu0 0.0
        %2605 = vmatpush1.msra.mxu0 0.0
        %2606 = vmatprep.subr.mxu0 0.0
        %2607 = vmatpush1.msra.mxu0 0.0
        %2608 = vmatprep.subr.mxu0 0.0
        %2609 = vmatpush1.msra.mxu0 0.0
        %2610 = vmatprep.subr.mxu0 0.0
        %2611 = vmatpush1.msra.mxu0 0.0
        %2612 = vmatprep.subr.mxu0 0.0
        %2613 = vmatpush1.msra.mxu0 0.0
        %2614 = vmatprep.subr.mxu0 0.0
        %2615 = vmatpush1.msra.mxu0 0.0
        %2616 = vmatprep.subr.mxu0 0.0
        %2617 = vmatpush1.msra.mxu0 0.0
        %2618 = vmatprep.subr.mxu0 0.0
        %2619 = vmatpush1.msra.mxu0 0.0
        %2620 = vmatprep.subr.mxu0 0.0
        %2621 = vmatpush1.msra.mxu0 0.0
        %2622 = vmatprep.subr.mxu0 0.0
        %2623 = vmatpush1.msra.mxu0 0.0
        %2624 = vmatprep.subr.mxu0 0.0
        %2625 = vmatpush1.msra.mxu0 0.0
        %2626 = vmatprep.subr.mxu0 0.0
        %2627 = vmatpush1.msra.mxu0 0.0
        %2628 = vmatprep.subr.mxu0 0.0
        %2629 = vmatpush1.msra.mxu0 0.0
        %2630 = vmatprep.subr.mxu0 0.0
        %2631 = vmatpush1.msra.mxu0 0.0
        %2632 = vmatprep.subr.mxu0 0.0
        %2633 = vmatpush1.msra.mxu0 0.0
        %2634 = vmatprep.subr.mxu0 0.0
        %2635 = vmatpush1.msra.mxu0 0.0
        %2636 = vmatprep.subr.mxu0 0.0
        %2637 = vmatpush1.msra.mxu0 0.0
        %2638 = vmatprep.subr.mxu0 0.0
        %2639 = vmatpush1.msra.mxu0 0.0
        %2640 = vmatprep.subr.mxu0 0.0
        %2641 = vmatpush1.msra.mxu0 0.0
        %2642 = vmatprep.subr.mxu0 0.0
        %2643 = vmatpush1.msra.mxu0 0.0
        %2644 = vmatprep.subr.mxu0 0.0
        %2645 = vmatpush1.msra.mxu0 0.0
        %2646 = vmatprep.subr.mxu0 0.0
        %2647 = vmatpush1.msra.mxu0 0.0
        %2648 = vmatprep.subr.mxu0 0.0
        %2649 = vmatpush1.msra.mxu0 0.0
        %2650 = vmatprep.subr.mxu0 0.0
        %2651 = vmatpush1.msra.mxu0 0.0
        %2652 = vmatprep.subr.mxu0 0.0
        %2653 = vmatpush1.msra.mxu0 0.0
        %2654 = vmatprep.subr.mxu0 0.0
        %2655 = vmatpush1.msra.mxu0 0.0
        %2656 = vmatprep.subr.mxu0 0.0
        %2657 = vmatpush1.msra.mxu0 0.0
        %2658 = vmatprep.subr.mxu0 0.0
        %2659 = vmatpush1.msra.mxu0 0.0
        %2660 = vmatprep.subr.mxu0 0.0
        %2661 = vmatpush1.msra.mxu0 0.0
        %2662 = vmatprep.subr.mxu0 0.0
        %2663 = vmatpush1.msra.mxu0 0.0
        %2664 = vmatprep.mubr.f32.mxu0 0.0
        %2665 = vmatmul.mubr.f32.gmra.mrb[0].mxu0 %v2596
        %v2666 = vpop.f32.mrb[0].mxu0
        %v2667 = vadd.f32 0.0, %v2666
        %v2668 = vpop.f32.mrb[0].mxu0
        %2669 = vdwg.mxu0
        %v2671 = vsel %vm730, %v2667, 0
        %2673 = vmatprep.subr.mxu0 0.0
        %2674 = vmatpush1.msra.mxu0 %v2325
        %2675 = vmatprep.subr.mxu0 0.0
        %2676 = vmatpush1.msra.mxu0 0.0
        %2677 = vmatprep.subr.mxu0 0.0
        %2678 = vmatpush1.msra.mxu0 0.0
        %2679 = vmatprep.subr.mxu0 0.0
        %2680 = vmatpush1.msra.mxu0 0.0
        %2681 = vmatprep.subr.mxu0 0.0
        %2682 = vmatpush1.msra.mxu0 0.0
        %2683 = vmatprep.subr.mxu0 0.0
        %2684 = vmatpush1.msra.mxu0 0.0
        %2685 = vmatprep.subr.mxu0 0.0
        %2686 = vmatpush1.msra.mxu0 0.0
        %2687 = vmatprep.subr.mxu0 0.0
        %2688 = vmatpush1.msra.mxu0 0.0
        %2689 = vmatprep.subr.mxu0 0.0
        %2690 = vmatpush1.msra.mxu0 0.0
        %2691 = vmatprep.subr.mxu0 0.0
        %2692 = vmatpush1.msra.mxu0 0.0
        %2693 = vmatprep.subr.mxu0 0.0
        %2694 = vmatpush1.msra.mxu0 0.0
        %2695 = vmatprep.subr.mxu0 0.0
        %2696 = vmatpush1.msra.mxu0 0.0
        %2697 = vmatprep.subr.mxu0 0.0
        %2698 = vmatpush1.msra.mxu0 0.0
        %2699 = vmatprep.subr.mxu0 0.0
        %2700 = vmatpush1.msra.mxu0 0.0
        %2701 = vmatprep.subr.mxu0 0.0
        %2702 = vmatpush1.msra.mxu0 0.0
        %2703 = vmatprep.subr.mxu0 0.0
        %2704 = vmatpush1.msra.mxu0 0.0
        %2705 = vmatprep.subr.mxu0 0.0
        %2706 = vmatpush1.msra.mxu0 0.0
        %2707 = vmatprep.subr.mxu0 0.0
        %2708 = vmatpush1.msra.mxu0 0.0
        %2709 = vmatprep.subr.mxu0 0.0
        %2710 = vmatpush1.msra.mxu0 0.0
        %2711 = vmatprep.subr.mxu0 0.0
        %2712 = vmatpush1.msra.mxu0 0.0
        %2713 = vmatprep.subr.mxu0 0.0
        %2714 = vmatpush1.msra.mxu0 0.0
        %2715 = vmatprep.subr.mxu0 0.0
        %2716 = vmatpush1.msra.mxu0 0.0
        %2717 = vmatprep.subr.mxu0 0.0
        %2718 = vmatpush1.msra.mxu0 0.0
        %2719 = vmatprep.subr.mxu0 0.0
        %2720 = vmatpush1.msra.mxu0 0.0
        %2721 = vmatprep.subr.mxu0 0.0
        %2722 = vmatpush1.msra.mxu0 0.0
        %2723 = vmatprep.subr.mxu0 0.0
        %2724 = vmatpush1.msra.mxu0 0.0
        %2725 = vmatprep.subr.mxu0 0.0
        %2726 = vmatpush1.msra.mxu0 0.0
        %2727 = vmatprep.subr.mxu0 0.0
        %2728 = vmatpush1.msra.mxu0 0.0
        %2729 = vmatprep.subr.mxu0 0.0
        %2730 = vmatpush1.msra.mxu0 0.0
        %2731 = vmatprep.subr.mxu0 0.0
        %2732 = vmatpush1.msra.mxu0 0.0
        %2733 = vmatprep.subr.mxu0 0.0
        %2734 = vmatpush1.msra.mxu0 0.0
        %2735 = vmatprep.subr.mxu0 0.0
        %2736 = vmatpush1.msra.mxu0 0.0
        %2737 = vmatprep.mubr.f32.mxu0 0.0
        %2738 = vmatmul.mubr.f32.gmra.mrb[0].mxu0 %v2671
        %v2739 = vpop.f32.mrb[0].mxu0
        %v2740 = vadd.f32 0.0, %v2739
        %v2741 = vpop.f32.mrb[0].mxu0
        %2742 = vdwg.mxu0
        %v2744 = vsel %vm730, %v2492, 0
        %2746 = vmatprep.subr.mxu0 0.0
        %2747 = vmatpush1.msra.mxu0 %v2324
        %2748 = vmatprep.subr.mxu0 0.0
        %2749 = vmatpush1.msra.mxu0 0.0
        %2750 = vmatprep.subr.mxu0 0.0
        %2751 = vmatpush1.msra.mxu0 0.0
        %2752 = vmatprep.subr.mxu0 0.0
        %2753 = vmatpush1.msra.mxu0 0.0
        %2754 = vmatprep.subr.mxu0 0.0
        %2755 = vmatpush1.msra.mxu0 0.0
        %2756 = vmatprep.subr.mxu0 0.0
        %2757 = vmatpush1.msra.mxu0 0.0
        %2758 = vmatprep.subr.mxu0 0.0
        %2759 = vmatpush1.msra.mxu0 0.0
        %2760 = vmatprep.subr.mxu0 0.0
        %2761 = vmatpush1.msra.mxu0 0.0
        %2762 = vmatprep.subr.mxu0 0.0
        %2763 = vmatpush1.msra.mxu0 0.0
        %2764 = vmatprep.subr.mxu0 0.0
        %2765 = vmatpush1.msra.mxu0 0.0
        %2766 = vmatprep.subr.mxu0 0.0
        %2767 = vmatpush1.msra.mxu0 0.0
        %2768 = vmatprep.subr.mxu0 0.0
        %2769 = vmatpush1.msra.mxu0 0.0
        %2770 = vmatprep.subr.mxu0 0.0
        %2771 = vmatpush1.msra.mxu0 0.0
        %2772 = vmatprep.subr.mxu0 0.0
        %2773 = vmatpush1.msra.mxu0 0.0
        %2774 = vmatprep.subr.mxu0 0.0
        %2775 = vmatpush1.msra.mxu0 0.0
        %2776 = vmatprep.subr.mxu0 0.0
        %2777 = vmatpush1.msra.mxu0 0.0
        %2778 = vmatprep.subr.mxu0 0.0
        %2779 = vmatpush1.msra.mxu0 0.0
        %2780 = vmatprep.subr.mxu0 0.0
        %2781 = vmatpush1.msra.mxu0 0.0
        %2782 = vmatprep.subr.mxu0 0.0
        %2783 = vmatpush1.msra.mxu0 0.0
        %2784 = vmatprep.subr.mxu0 0.0
        %2785 = vmatpush1.msra.mxu0 0.0
        %2786 = vmatprep.subr.mxu0 0.0
        %2787 = vmatpush1.msra.mxu0 0.0
        %2788 = vmatprep.subr.mxu0 0.0
        %2789 = vmatpush1.msra.mxu0 0.0
        %2790 = vmatprep.subr.mxu0 0.0
        %2791 = vmatpush1.msra.mxu0 0.0
        %2792 = vmatprep.subr.mxu0 0.0
        %2793 = vmatpush1.msra.mxu0 0.0
        %2794 = vmatprep.subr.mxu0 0.0
        %2795 = vmatpush1.msra.mxu0 0.0
        %2796 = vmatprep.subr.mxu0 0.0
        %2797 = vmatpush1.msra.mxu0 0.0
        %2798 = vmatprep.subr.mxu0 0.0
        %2799 = vmatpush1.msra.mxu0 0.0
        %2800 = vmatprep.subr.mxu0 0.0
        %2801 = vmatpush1.msra.mxu0 0.0
        %2802 = vmatprep.subr.mxu0 0.0
        %2803 = vmatpush1.msra.mxu0 0.0
        %2804 = vmatprep.subr.mxu0 0.0
        %2805 = vmatpush1.msra.mxu0 0.0
        %2806 = vmatprep.subr.mxu0 0.0
        %2807 = vmatpush1.msra.mxu0 0.0
        %2808 = vmatprep.subr.mxu0 0.0
        %2809 = vmatpush1.msra.mxu0 0.0
        %2810 = vmatprep.mubr.f32.mxu0 0.0
        %2811 = vmatmul.mubr.f32.gmra.mrb[0].mxu0 %v2744
        %v2812 = vpop.f32.mrb[0].mxu0
        %v2813 = vadd.f32 %v2740, %v2812
        %v2814 = vpop.f32.mrb[0].mxu0
        %2815 = vdwg.mxu0
        %2816 = vrot.lane.b32.xlu0 %v2139, 112
        %v2817 = vpop.permute.xlu0 %2816
        %2818 = vrot.lane.b32.xlu0 %v2227, 112
        %v2819 = vpop.permute.xlu0 %2818
        %2820 = vrot.lane.b32.xlu0 %v2232, 112
        %v2821 = vpop.permute.xlu0 %2820
        %v2822 = vsel %vm730, %v2817, 0
        %v2824 = vsel %vm730, %v2819, 0
        %v2826 = vsel %vm730, %v2821, 0
        %2828 = vmatprep.subr.mxu0 0.0
        %2829 = vmatpush1.xpose.msra.mxu0 %v2824
        %2830 = vmatprep.subr.mxu0 0.0
        %2831 = vmatpush1.xpose.msra.mxu0 %v2826
        %2832 = vmatprep.subr.mxu0 0.0
        %2833 = vmatpush1.xpose.msra.mxu0 0.0
        %2834 = vmatprep.subr.mxu0 0.0
        %2835 = vmatpush1.xpose.msra.mxu0 0.0
        %2836 = vmatprep.subr.mxu0 0.0
        %2837 = vmatpush1.xpose.msra.mxu0 0.0
        %2838 = vmatprep.subr.mxu0 0.0
        %2839 = vmatpush1.xpose.msra.mxu0 0.0
        %2840 = vmatprep.subr.mxu0 0.0
        %2841 = vmatpush1.xpose.msra.mxu0 0.0
        %2842 = vmatprep.subr.mxu0 0.0
        %2843 = vmatpush1.xpose.msra.mxu0 0.0
        %2844 = vmatprep.subr.mxu0 0.0
        %2845 = vmatpush1.xpose.msra.mxu0 0.0
        %2846 = vmatprep.subr.mxu0 0.0
        %2847 = vmatpush1.xpose.msra.mxu0 0.0
        %2848 = vmatprep.subr.mxu0 0.0
        %2849 = vmatpush1.xpose.msra.mxu0 0.0
        %2850 = vmatprep.subr.mxu0 0.0
        %2851 = vmatpush1.xpose.msra.mxu0 0.0
        %2852 = vmatprep.subr.mxu0 0.0
        %2853 = vmatpush1.xpose.msra.mxu0 0.0
        %2854 = vmatprep.subr.mxu0 0.0
        %2855 = vmatpush1.xpose.msra.mxu0 0.0
        %2856 = vmatprep.subr.mxu0 0.0
        %2857 = vmatpush1.xpose.msra.mxu0 0.0
        %2858 = vmatprep.subr.mxu0 0.0
        %2859 = vmatpush1.xpose.msra.mxu0 0.0
        %2860 = vmatprep.subr.mxu0 0.0
        %2861 = vmatpush1.xpose.msra.mxu0 0.0
        %2862 = vmatprep.subr.mxu0 0.0
        %2863 = vmatpush1.xpose.msra.mxu0 0.0
        %2864 = vmatprep.subr.mxu0 0.0
        %2865 = vmatpush1.xpose.msra.mxu0 0.0
        %2866 = vmatprep.subr.mxu0 0.0
        %2867 = vmatpush1.xpose.msra.mxu0 0.0
        %2868 = vmatprep.subr.mxu0 0.0
        %2869 = vmatpush1.xpose.msra.mxu0 0.0
        %2870 = vmatprep.subr.mxu0 0.0
        %2871 = vmatpush1.xpose.msra.mxu0 0.0
        %2872 = vmatprep.subr.mxu0 0.0
        %2873 = vmatpush1.xpose.msra.mxu0 0.0
        %2874 = vmatprep.subr.mxu0 0.0
        %2875 = vmatpush1.xpose.msra.mxu0 0.0
        %2876 = vmatprep.subr.mxu0 0.0
        %2877 = vmatpush1.xpose.msra.mxu0 0.0
        %2878 = vmatprep.subr.mxu0 0.0
        %2879 = vmatpush1.xpose.msra.mxu0 0.0
        %2880 = vmatprep.subr.mxu0 0.0
        %2881 = vmatpush1.xpose.msra.mxu0 0.0
        %2882 = vmatprep.subr.mxu0 0.0
        %2883 = vmatpush1.xpose.msra.mxu0 0.0
        %2884 = vmatprep.subr.mxu0 0.0
        %2885 = vmatpush1.xpose.msra.mxu0 0.0
        %2886 = vmatprep.subr.mxu0 0.0
        %2887 = vmatpush1.xpose.msra.mxu0 0.0
        %2888 = vmatprep.subr.mxu0 0.0
        %2889 = vmatpush1.xpose.msra.mxu0 0.0
        %2890 = vmatprep.subr.mxu0 0.0
        %2891 = vmatpush1.xpose.msra.mxu0 0.0
        %2892 = vmatprep.mubr.f32.mxu0 0.0
        %2893 = vmatmul.mubr.f32.gmra.mrb[0].mxu0 %v2822
        %v2894 = vpop.f32.mrb[0].mxu0
        %v2895 = vadd.f32 0.0, %v2894
        %v2896 = vpop.f32.mrb[0].mxu0
        %2897 = vdwg.mxu0
        %v2898 = vmul.f32 %v2895, 0.35355338
        %v2899 = vsel %vm811, %v2898, -inf
        %2900 = vmax.xlane.f32.xlu0 %v2899
        %v2901 = vpop.xlane.xlu0 %2900
        %v2902 = vsub.f32 %v2898, %v2901
        %v2903 = vmul.f32 %v2902, 1.442695
        %v2904 = vpow.pop %v2903
        %v2905 = vsel %vm811, %v2904, 0.0
        %2906 = vadd.xlane.f32.xlu0 %v2905
        %v2907 = vpop.xlane.xlu0 %2906
        %v2908 = vrcp.pop %v2907
        %v2909 = vmul.f32 %v2904, %v2908
        %2910 = vrot.lane.b32.xlu0 %v2315, 112
        %v2911 = vpop.permute.xlu0 %2910
        %2912 = vrot.lane.b32.xlu0 %v2320, 112
        %v2913 = vpop.permute.xlu0 %2912
        %v2916 = vsel %vm811, %v2909, 0
        %v2918 = vsel %vm459, %v2913, 0
        %2920 = vmatprep.subr.mxu0 0.0
        %2921 = vmatpush1.msra.mxu0 %v2911
        %2922 = vmatprep.subr.mxu0 0.0
        %2923 = vmatpush1.msra.mxu0 %v2918
        %2924 = vmatprep.subr.mxu0 0.0
        %2925 = vmatpush1.msra.mxu0 0.0
        %2926 = vmatprep.subr.mxu0 0.0
        %2927 = vmatpush1.msra.mxu0 0.0
        %2928 = vmatprep.subr.mxu0 0.0
        %2929 = vmatpush1.msra.mxu0 0.0
        %2930 = vmatprep.subr.mxu0 0.0
        %2931 = vmatpush1.msra.mxu0 0.0
        %2932 = vmatprep.subr.mxu0 0.0
        %2933 = vmatpush1.msra.mxu0 0.0
        %2934 = vmatprep.subr.mxu0 0.0
        %2935 = vmatpush1.msra.mxu0 0.0
        %2936 = vmatprep.subr.mxu0 0.0
        %2937 = vmatpush1.msra.mxu0 0.0
        %2938 = vmatprep.subr.mxu0 0.0
        %2939 = vmatpush1.msra.mxu0 0.0
        %2940 = vmatprep.subr.mxu0 0.0
        %2941 = vmatpush1.msra.mxu0 0.0
        %2942 = vmatprep.subr.mxu0 0.0
        %2943 = vmatpush1.msra.mxu0 0.0
        %2944 = vmatprep.subr.mxu0 0.0
        %2945 = vmatpush1.msra.mxu0 0.0
        %2946 = vmatprep.subr.mxu0 0.0
        %2947 = vmatpush1.msra.mxu0 0.0
        %2948 = vmatprep.subr.mxu0 0.0
        %2949 = vmatpush1.msra.mxu0 0.0
        %2950 = vmatprep.subr.mxu0 0.0
        %2951 = vmatpush1.msra.mxu0 0.0
        %2952 = vmatprep.subr.mxu0 0.0
        %2953 = vmatpush1.msra.mxu0 0.0
        %2954 = vmatprep.subr.mxu0 0.0
        %2955 = vmatpush1.msra.mxu0 0.0
        %2956 = vmatprep.subr.mxu0 0.0
        %2957 = vmatpush1.msra.mxu0 0.0
        %2958 = vmatprep.subr.mxu0 0.0
        %2959 = vmatpush1.msra.mxu0 0.0
        %2960 = vmatprep.subr.mxu0 0.0
        %2961 = vmatpush1.msra.mxu0 0.0
        %2962 = vmatprep.subr.mxu0 0.0
        %2963 = vmatpush1.msra.mxu0 0.0
        %2964 = vmatprep.subr.mxu0 0.0
        %2965 = vmatpush1.msra.mxu0 0.0
        %2966 = vmatprep.subr.mxu0 0.0
        %2967 = vmatpush1.msra.mxu0 0.0
        %2968 = vmatprep.subr.mxu0 0.0
        %2969 = vmatpush1.msra.mxu0 0.0
        %2970 = vmatprep.subr.mxu0 0.0
        %2971 = vmatpush1.msra.mxu0 0.0
        %2972 = vmatprep.subr.mxu0 0.0
        %2973 = vmatpush1.msra.mxu0 0.0
        %2974 = vmatprep.subr.mxu0 0.0
        %2975 = vmatpush1.msra.mxu0 0.0
        %2976 = vmatprep.subr.mxu0 0.0
        %2977 = vmatpush1.msra.mxu0 0.0
        %2978 = vmatprep.subr.mxu0 0.0
        %2979 = vmatpush1.msra.mxu0 0.0
        %2980 = vmatprep.subr.mxu0 0.0
        %2981 = vmatpush1.msra.mxu0 0.0
        %2982 = vmatprep.subr.mxu0 0.0
        %2983 = vmatpush1.msra.mxu0 0.0
        %2984 = vmatprep.mubr.f32.mxu0 0.0
        %2985 = vmatmul.mubr.f32.gmra.mrb[0].mxu0 %v2916
        %v2986 = vpop.f32.mrb[0].mxu0
        %v2987 = vadd.f32 0.0, %v2986
        %v2988 = vpop.f32.mrb[0].mxu0
        %2989 = vdwg.mxu0
        %v2991 = vsel %vm730, %v2987, 0
        %2993 = vmatprep.subr.mxu0 0.0
        %2994 = vmatpush1.msra.mxu0 %v2326
        %2995 = vmatprep.subr.mxu0 0.0
        %2996 = vmatpush1.msra.mxu0 0.0
        %2997 = vmatprep.subr.mxu0 0.0
        %2998 = vmatpush1.msra.mxu0 0.0
        %2999 = vmatprep.subr.mxu0 0.0
        %3000 = vmatpush1.msra.mxu0 0.0
        %3001 = vmatprep.subr.mxu0 0.0
        %3002 = vmatpush1.msra.mxu0 0.0
        %3003 = vmatprep.subr.mxu0 0.0
        %3004 = vmatpush1.msra.mxu0 0.0
        %3005 = vmatprep.subr.mxu0 0.0
        %3006 = vmatpush1.msra.mxu0 0.0
        %3007 = vmatprep.subr.mxu0 0.0
        %3008 = vmatpush1.msra.mxu0 0.0
        %3009 = vmatprep.subr.mxu0 0.0
        %3010 = vmatpush1.msra.mxu0 0.0
        %3011 = vmatprep.subr.mxu0 0.0
        %3012 = vmatpush1.msra.mxu0 0.0
        %3013 = vmatprep.subr.mxu0 0.0
        %3014 = vmatpush1.msra.mxu0 0.0
        %3015 = vmatprep.subr.mxu0 0.0
        %3016 = vmatpush1.msra.mxu0 0.0
        %3017 = vmatprep.subr.mxu0 0.0
        %3018 = vmatpush1.msra.mxu0 0.0
        %3019 = vmatprep.subr.mxu0 0.0
        %3020 = vmatpush1.msra.mxu0 0.0
        %3021 = vmatprep.subr.mxu0 0.0
        %3022 = vmatpush1.msra.mxu0 0.0
        %3023 = vmatprep.subr.mxu0 0.0
        %3024 = vmatpush1.msra.mxu0 0.0
        %3025 = vmatprep.subr.mxu0 0.0
        %3026 = vmatpush1.msra.mxu0 0.0
        %3027 = vmatprep.subr.mxu0 0.0
        %3028 = vmatpush1.msra.mxu0 0.0
        %3029 = vmatprep.subr.mxu0 0.0
        %3030 = vmatpush1.msra.mxu0 0.0
        %3031 = vmatprep.subr.mxu0 0.0
        %3032 = vmatpush1.msra.mxu0 0.0
        %3033 = vmatprep.subr.mxu0 0.0
        %3034 = vmatpush1.msra.mxu0 0.0
        %3035 = vmatprep.subr.mxu0 0.0
        %3036 = vmatpush1.msra.mxu0 0.0
        %3037 = vmatprep.subr.mxu0 0.0
        %3038 = vmatpush1.msra.mxu0 0.0
        %3039 = vmatprep.subr.mxu0 0.0
        %3040 = vmatpush1.msra.mxu0 0.0
        %3041 = vmatprep.subr.mxu0 0.0
        %3042 = vmatpush1.msra.mxu0 0.0
        %3043 = vmatprep.subr.mxu0 0.0
        %3044 = vmatpush1.msra.mxu0 0.0
        %3045 = vmatprep.subr.mxu0 0.0
        %3046 = vmatpush1.msra.mxu0 0.0
        %3047 = vmatprep.subr.mxu0 0.0
        %3048 = vmatpush1.msra.mxu0 0.0
        %3049 = vmatprep.subr.mxu0 0.0
        %3050 = vmatpush1.msra.mxu0 0.0
        %3051 = vmatprep.subr.mxu0 0.0
        %3052 = vmatpush1.msra.mxu0 0.0
        %3053 = vmatprep.subr.mxu0 0.0
        %3054 = vmatpush1.msra.mxu0 0.0
        %3055 = vmatprep.subr.mxu0 0.0
        %3056 = vmatpush1.msra.mxu0 0.0
        %3057 = vmatprep.mubr.f32.mxu0 0.0
        %3058 = vmatmul.mubr.f32.gmra.mrb[0].mxu0 %v2991
        %v3059 = vpop.f32.mrb[0].mxu0
        %v3060 = vadd.f32 0.0, %v3059
        %v3061 = vpop.f32.mrb[0].mxu0
        %3062 = vdwg.mxu0
        %v3063 = vadd.f32 %v2813, %v3060
        %3064 = vrot.lane.b32.xlu0 %v2139, 104
        %v3065 = vpop.permute.xlu0 %3064
        %3066 = vrot.lane.b32.xlu0 %v2227, 104
        %v3067 = vpop.permute.xlu0 %3066
        %3068 = vrot.lane.b32.xlu0 %v2232, 104
        %v3069 = vpop.permute.xlu0 %3068
        %v3070 = vsel %vm730, %v3065, 0
        %v3072 = vsel %vm730, %v3067, 0
        %v3074 = vsel %vm730, %v3069, 0
        %3076 = vmatprep.subr.mxu0 0.0
        %3077 = vmatpush1.xpose.msra.mxu0 %v3072
        %3078 = vmatprep.subr.mxu0 0.0
        %3079 = vmatpush1.xpose.msra.mxu0 %v3074
        %3080 = vmatprep.subr.mxu0 0.0
        %3081 = vmatpush1.xpose.msra.mxu0 0.0
        %3082 = vmatprep.subr.mxu0 0.0
        %3083 = vmatpush1.xpose.msra.mxu0 0.0
        %3084 = vmatprep.subr.mxu0 0.0
        %3085 = vmatpush1.xpose.msra.mxu0 0.0
        %3086 = vmatprep.subr.mxu0 0.0
        %3087 = vmatpush1.xpose.msra.mxu0 0.0
        %3088 = vmatprep.subr.mxu0 0.0
        %3089 = vmatpush1.xpose.msra.mxu0 0.0
        %3090 = vmatprep.subr.mxu0 0.0
        %3091 = vmatpush1.xpose.msra.mxu0 0.0
        %3092 = vmatprep.subr.mxu0 0.0
        %3093 = vmatpush1.xpose.msra.mxu0 0.0
        %3094 = vmatprep.subr.mxu0 0.0
        %3095 = vmatpush1.xpose.msra.mxu0 0.0
        %3096 = vmatprep.subr.mxu0 0.0
        %3097 = vmatpush1.xpose.msra.mxu0 0.0
        %3098 = vmatprep.subr.mxu0 0.0
        %3099 = vmatpush1.xpose.msra.mxu0 0.0
        %3100 = vmatprep.subr.mxu0 0.0
        %3101 = vmatpush1.xpose.msra.mxu0 0.0
        %3102 = vmatprep.subr.mxu0 0.0
        %3103 = vmatpush1.xpose.msra.mxu0 0.0
        %3104 = vmatprep.subr.mxu0 0.0
        %3105 = vmatpush1.xpose.msra.mxu0 0.0
        %3106 = vmatprep.subr.mxu0 0.0
        %3107 = vmatpush1.xpose.msra.mxu0 0.0
        %3108 = vmatprep.subr.mxu0 0.0
        %3109 = vmatpush1.xpose.msra.mxu0 0.0
        %3110 = vmatprep.subr.mxu0 0.0
        %3111 = vmatpush1.xpose.msra.mxu0 0.0
        %3112 = vmatprep.subr.mxu0 0.0
        %3113 = vmatpush1.xpose.msra.mxu0 0.0
        %3114 = vmatprep.subr.mxu0 0.0
        %3115 = vmatpush1.xpose.msra.mxu0 0.0
        %3116 = vmatprep.subr.mxu0 0.0
        %3117 = vmatpush1.xpose.msra.mxu0 0.0
        %3118 = vmatprep.subr.mxu0 0.0
        %3119 = vmatpush1.xpose.msra.mxu0 0.0
        %3120 = vmatprep.subr.mxu0 0.0
        %3121 = vmatpush1.xpose.msra.mxu0 0.0
        %3122 = vmatprep.subr.mxu0 0.0
        %3123 = vmatpush1.xpose.msra.mxu0 0.0
        %3124 = vmatprep.subr.mxu0 0.0
        %3125 = vmatpush1.xpose.msra.mxu0 0.0
        %3126 = vmatprep.subr.mxu0 0.0
        %3127 = vmatpush1.xpose.msra.mxu0 0.0
        %3128 = vmatprep.subr.mxu0 0.0
        %3129 = vmatpush1.xpose.msra.mxu0 0.0
        %3130 = vmatprep.subr.mxu0 0.0
        %3131 = vmatpush1.xpose.msra.mxu0 0.0
        %3132 = vmatprep.subr.mxu0 0.0
        %3133 = vmatpush1.xpose.msra.mxu0 0.0
        %3134 = vmatprep.subr.mxu0 0.0
        %3135 = vmatpush1.xpose.msra.mxu0 0.0
        %3136 = vmatprep.subr.mxu0 0.0
        %3137 = vmatpush1.xpose.msra.mxu0 0.0
        %3138 = vmatprep.subr.mxu0 0.0
        %3139 = vmatpush1.xpose.msra.mxu0 0.0
        %3140 = vmatprep.mubr.f32.mxu0 0.0
        %3141 = vmatmul.mubr.f32.gmra.mrb[0].mxu0 %v3070
        %v3142 = vpop.f32.mrb[0].mxu0
        %v3143 = vadd.f32 0.0, %v3142
        %v3144 = vpop.f32.mrb[0].mxu0
        %3145 = vdwg.mxu0
        %v3146 = vmul.f32 %v3143, 0.35355338
        %v3147 = vsel %vm811, %v3146, -inf
        %3148 = vmax.xlane.f32.xlu0 %v3147
        %v3149 = vpop.xlane.xlu0 %3148
        %v3150 = vsub.f32 %v3146, %v3149
        %v3151 = vmul.f32 %v3150, 1.442695
        %v3152 = vpow.pop %v3151
        %v3153 = vsel %vm811, %v3152, 0.0
        %3154 = vadd.xlane.f32.xlu0 %v3153
        %v3155 = vpop.xlane.xlu0 %3154
        %v3156 = vrcp.pop %v3155
        %v3157 = vmul.f32 %v3152, %v3156
        %3158 = vrot.lane.b32.xlu0 %v2315, 104
        %v3159 = vpop.permute.xlu0 %3158
        %3160 = vrot.lane.b32.xlu0 %v2320, 104
        %v3161 = vpop.permute.xlu0 %3160
        %v3164 = vsel %vm811, %v3157, 0
        %v3166 = vsel %vm459, %v3161, 0
        %3168 = vmatprep.subr.mxu0 0.0
        %3169 = vmatpush1.msra.mxu0 %v3159
        %3170 = vmatprep.subr.mxu0 0.0
        %3171 = vmatpush1.msra.mxu0 %v3166
        %3172 = vmatprep.subr.mxu0 0.0
        %3173 = vmatpush1.msra.mxu0 0.0
        %3174 = vmatprep.subr.mxu0 0.0
        %3175 = vmatpush1.msra.mxu0 0.0
        %3176 = vmatprep.subr.mxu0 0.0
        %3177 = vmatpush1.msra.mxu0 0.0
        %3178 = vmatprep.subr.mxu0 0.0
        %3179 = vmatpush1.msra.mxu0 0.0
        %3180 = vmatprep.subr.mxu0 0.0
        %3181 = vmatpush1.msra.mxu0 0.0
        %3182 = vmatprep.subr.mxu0 0.0
        %3183 = vmatpush1.msra.mxu0 0.0
        %3184 = vmatprep.subr.mxu0 0.0
        %3185 = vmatpush1.msra.mxu0 0.0
        %3186 = vmatprep.subr.mxu0 0.0
        %3187 = vmatpush1.msra.mxu0 0.0
        %3188 = vmatprep.subr.mxu0 0.0
        %3189 = vmatpush1.msra.mxu0 0.0
        %3190 = vmatprep.subr.mxu0 0.0
        %3191 = vmatpush1.msra.mxu0 0.0
        %3192 = vmatprep.subr.mxu0 0.0
        %3193 = vmatpush1.msra.mxu0 0.0
        %3194 = vmatprep.subr.mxu0 0.0
        %3195 = vmatpush1.msra.mxu0 0.0
        %3196 = vmatprep.subr.mxu0 0.0
        %3197 = vmatpush1.msra.mxu0 0.0
        %3198 = vmatprep.subr.mxu0 0.0
        %3199 = vmatpush1.msra.mxu0 0.0
        %3200 = vmatprep.subr.mxu0 0.0
        %3201 = vmatpush1.msra.mxu0 0.0
        %3202 = vmatprep.subr.mxu0 0.0
        %3203 = vmatpush1.msra.mxu0 0.0
        %3204 = vmatprep.subr.mxu0 0.0
        %3205 = vmatpush1.msra.mxu0 0.0
        %3206 = vmatprep.subr.mxu0 0.0
        %3207 = vmatpush1.msra.mxu0 0.0
        %3208 = vmatprep.subr.mxu0 0.0
        %3209 = vmatpush1.msra.mxu0 0.0
        %3210 = vmatprep.subr.mxu0 0.0
        %3211 = vmatpush1.msra.mxu0 0.0
        %3212 = vmatprep.subr.mxu0 0.0
        %3213 = vmatpush1.msra.mxu0 0.0
        %3214 = vmatprep.subr.mxu0 0.0
        %3215 = vmatpush1.msra.mxu0 0.0
        %3216 = vmatprep.subr.mxu0 0.0
        %3217 = vmatpush1.msra.mxu0 0.0
        %3218 = vmatprep.subr.mxu0 0.0
        %3219 = vmatpush1.msra.mxu0 0.0
        %3220 = vmatprep.subr.mxu0 0.0
        %3221 = vmatpush1.msra.mxu0 0.0
        %3222 = vmatprep.subr.mxu0 0.0
        %3223 = vmatpush1.msra.mxu0 0.0
        %3224 = vmatprep.subr.mxu0 0.0
        %3225 = vmatpush1.msra.mxu0 0.0
        %3226 = vmatprep.subr.mxu0 0.0
        %3227 = vmatpush1.msra.mxu0 0.0
        %3228 = vmatprep.subr.mxu0 0.0
        %3229 = vmatpush1.msra.mxu0 0.0
        %3230 = vmatprep.subr.mxu0 0.0
        %3231 = vmatpush1.msra.mxu0 0.0
        %3232 = vmatprep.mubr.f32.mxu0 0.0
        %3233 = vmatmul.mubr.f32.gmra.mrb[0].mxu0 %v3164
        %v3234 = vpop.f32.mrb[0].mxu0
        %v3235 = vadd.f32 0.0, %v3234
        %v3236 = vpop.f32.mrb[0].mxu0
        %3237 = vdwg.mxu0
        %v3239 = vsel %vm730, %v3235, 0
        %3241 = vmatprep.subr.mxu0 0.0
        %3242 = vmatpush1.msra.mxu0 %v2327
        %3243 = vmatprep.subr.mxu0 0.0
        %3244 = vmatpush1.msra.mxu0 0.0
        %3245 = vmatprep.subr.mxu0 0.0
        %3246 = vmatpush1.msra.mxu0 0.0
        %3247 = vmatprep.subr.mxu0 0.0
        %3248 = vmatpush1.msra.mxu0 0.0
        %3249 = vmatprep.subr.mxu0 0.0
        %3250 = vmatpush1.msra.mxu0 0.0
        %3251 = vmatprep.subr.mxu0 0.0
        %3252 = vmatpush1.msra.mxu0 0.0
        %3253 = vmatprep.subr.mxu0 0.0
        %3254 = vmatpush1.msra.mxu0 0.0
        %3255 = vmatprep.subr.mxu0 0.0
        %3256 = vmatpush1.msra.mxu0 0.0
        %3257 = vmatprep.subr.mxu0 0.0
        %3258 = vmatpush1.msra.mxu0 0.0
        %3259 = vmatprep.subr.mxu0 0.0
        %3260 = vmatpush1.msra.mxu0 0.0
        %3261 = vmatprep.subr.mxu0 0.0
        %3262 = vmatpush1.msra.mxu0 0.0
        %3263 = vmatprep.subr.mxu0 0.0
        %3264 = vmatpush1.msra.mxu0 0.0
        %3265 = vmatprep.subr.mxu0 0.0
        %3266 = vmatpush1.msra.mxu0 0.0
        %3267 = vmatprep.subr.mxu0 0.0
        %3268 = vmatpush1.msra.mxu0 0.0
        %3269 = vmatprep.subr.mxu0 0.0
        %3270 = vmatpush1.msra.mxu0 0.0
        %3271 = vmatprep.subr.mxu0 0.0
        %3272 = vmatpush1.msra.mxu0 0.0
        %3273 = vmatprep.subr.mxu0 0.0
        %3274 = vmatpush1.msra.mxu0 0.0
        %3275 = vmatprep.subr.mxu0 0.0
        %3276 = vmatpush1.msra.mxu0 0.0
        %3277 = vmatprep.subr.mxu0 0.0
        %3278 = vmatpush1.msra.mxu0 0.0
        %3279 = vmatprep.subr.mxu0 0.0
        %3280 = vmatpush1.msra.mxu0 0.0
        %3281 = vmatprep.subr.mxu0 0.0
        %3282 = vmatpush1.msra.mxu0 0.0
        %3283 = vmatprep.subr.mxu0 0.0
        %3284 = vmatpush1.msra.mxu0 0.0
        %3285 = vmatprep.subr.mxu0 0.0
        %3286 = vmatpush1.msra.mxu0 0.0
        %3287 = vmatprep.subr.mxu0 0.0
        %3288 = vmatpush1.msra.mxu0 0.0
        %3289 = vmatprep.subr.mxu0 0.0
        %3290 = vmatpush1.msra.mxu0 0.0
        %3291 = vmatprep.subr.mxu0 0.0
        %3292 = vmatpush1.msra.mxu0 0.0
        %3293 = vmatprep.subr.mxu0 0.0
        %3294 = vmatpush1.msra.mxu0 0.0
        %3295 = vmatprep.subr.mxu0 0.0
        %3296 = vmatpush1.msra.mxu0 0.0
        %3297 = vmatprep.subr.mxu0 0.0
        %3298 = vmatpush1.msra.mxu0 0.0
        %3299 = vmatprep.subr.mxu0 0.0
        %3300 = vmatpush1.msra.mxu0 0.0
        %3301 = vmatprep.subr.mxu0 0.0
        %3302 = vmatpush1.msra.mxu0 0.0
        %3303 = vmatprep.subr.mxu0 0.0
        %3304 = vmatpush1.msra.mxu0 0.0
        %3305 = vmatprep.mubr.f32.mxu0 0.0
        %3306 = vmatmul.mubr.f32.gmra.mrb[0].mxu0 %v3239
        %v3307 = vpop.f32.mrb[0].mxu0
        %v3308 = vadd.f32 0.0, %v3307
        %v3309 = vpop.f32.mrb[0].mxu0
        %3310 = vdwg.mxu0
        %v3311 = vadd.f32 %v3063, %v3308
        %v3312 = vadd.f32 %v1963, %v3311
        %s3313 = scalar_lea.vmem %s5, 1
        %v3314 = vld [vmem:[%s3313] sm:$0x1]
        %v3316 = vlaneseq
        %v3317 = vshrl.u32 %v3316, 7
        %v3318 = vsub.s32 0, %v3317
        %v3319 = vrot.slane %v3314, %v3318
        %v3321 = vadd.f32 %v3312, %v3319
        %v3322 = vlaneseq
        %v3323 = vshrl.u32 %v3322, 7
        %v3324 = vsub.s32 0, %v3323
        %v3325 = vrot.slane %v3321, %v3324
        %v3326 = vlaneseq
        %v3327 = vshrl.u32 %v3326, 7
        %v3328 = vsub.s32 7, %v3327
        %v3329 = vrot.slane %v3321, %v3328
        %v3331 = vrot.slane %v3321, 6
        %v3333 = vsel %vm1736, %v3325, %v3331
        %v3334 = vsel %vm1736, %v3331, %v3329
        %v3337 = vrot.slane %v3333, 1
        %v3338 = vrot.slane %v3334, 1
        %v3339 = vsel %vm1741, %v3337, %v3338
        %v3341 = vadd.f32 %v3333, %v3339
        %v3342 = vrot.slane %v3333, 2
        %v3343 = vrot.slane %v3334, 2
        %v3344 = vsel %vm1747, %v3342, %v3343
        %v3346 = vadd.f32 %v3341, %v3344
        %v3347 = vrot.slane %v3333, 3
        %v3348 = vrot.slane %v3334, 3
        %v3349 = vsel %vm1753, %v3347, %v3348
        %v3351 = vadd.f32 %v3346, %v3349
        %v3352 = vrot.slane %v3333, 4
        %v3353 = vrot.slane %v3334, 4
        %v3354 = vsel %vm459, %v3352, %v3353
        %v3356 = vadd.f32 %v3351, %v3354
        %v3357 = vmul.f32 %v3356, 0.2
        %v3358 = vsub.f32 %v3321, %v3357
        %s3359 = scalar_lea.vmem [#allocation6], 32
        %v3360 = vld [vmem:[%s3359] sm:$0xff]
        %v3361 = vld [vmem:[%s3359 + $0x8] sm:$0xff]
        %v3362 = vld [vmem:[%s3359 + $0x10] sm:$0xff]
        %v3363 = vld [vmem:[%s3359 + $0x18] sm:$0xff]
        %v3365 = vsel %vm472, %v3358, 0
        %3367 = vmatprep.subr.mxu0 0.0
        %3368 = vmatpush1.msra.mxu0 %v3360
        %3369 = vmatprep.subr.mxu0 0.0
        %3370 = vmatpush1.msra.mxu0 %v3361
        %3371 = vmatprep.subr.mxu0 0.0
        %3372 = vmatpush1.msra.mxu0 %v3362
        %3373 = vmatprep.subr.mxu0 0.0
        %3374 = vmatpush1.msra.mxu0 %v3363
        %3375 = vmatprep.subr.mxu0 0.0
        %3376 = vmatpush1.msra.mxu0 0.0
        %3377 = vmatprep.subr.mxu0 0.0
        %3378 = vmatpush1.msra.mxu0 0.0
        %3379 = vmatprep.subr.mxu0 0.0
        %3380 = vmatpush1.msra.mxu0 0.0
        %3381 = vmatprep.subr.mxu0 0.0
        %3382 = vmatpush1.msra.mxu0 0.0
        %3383 = vmatprep.subr.mxu0 0.0
        %3384 = vmatpush1.msra.mxu0 0.0
        %3385 = vmatprep.subr.mxu0 0.0
        %3386 = vmatpush1.msra.mxu0 0.0
        %3387 = vmatprep.subr.mxu0 0.0
        %3388 = vmatpush1.msra.mxu0 0.0
        %3389 = vmatprep.subr.mxu0 0.0
        %3390 = vmatpush1.msra.mxu0 0.0
        %3391 = vmatprep.subr.mxu0 0.0
        %3392 = vmatpush1.msra.mxu0 0.0
        %3393 = vmatprep.subr.mxu0 0.0
        %3394 = vmatpush1.msra.mxu0 0.0
        %3395 = vmatprep.subr.mxu0 0.0
        %3396 = vmatpush1.msra.mxu0 0.0
        %3397 = vmatprep.subr.mxu0 0.0
        %3398 = vmatpush1.msra.mxu0 0.0
        %3399 = vmatprep.subr.mxu0 0.0
        %3400 = vmatpush1.msra.mxu0 0.0
        %3401 = vmatprep.subr.mxu0 0.0
        %3402 = vmatpush1.msra.mxu0 0.0
        %3403 = vmatprep.subr.mxu0 0.0
        %3404 = vmatpush1.msra.mxu0 0.0
        %3405 = vmatprep.subr.mxu0 0.0
        %3406 = vmatpush1.msra.mxu0 0.0
        %3407 = vmatprep.subr.mxu0 0.0
        %3408 = vmatpush1.msra.mxu0 0.0
        %3409 = vmatprep.subr.mxu0 0.0
        %3410 = vmatpush1.msra.mxu0 0.0
        %3411 = vmatprep.subr.mxu0 0.0
        %3412 = vmatpush1.msra.mxu0 0.0
        %3413 = vmatprep.subr.mxu0 0.0
        %3414 = vmatpush1.msra.mxu0 0.0
        %3415 = vmatprep.subr.mxu0 0.0
        %3416 = vmatpush1.msra.mxu0 0.0
        %3417 = vmatprep.subr.mxu0 0.0
        %3418 = vmatpush1.msra.mxu0 0.0
        %3419 = vmatprep.subr.mxu0 0.0
        %3420 = vmatpush1.msra.mxu0 0.0
        %3421 = vmatprep.subr.mxu0 0.0
        %3422 = vmatpush1.msra.mxu0 0.0
        %3423 = vmatprep.subr.mxu0 0.0
        %3424 = vmatpush1.msra.mxu0 0.0
        %3425 = vmatprep.subr.mxu0 0.0
        %3426 = vmatpush1.msra.mxu0 0.0
        %3427 = vmatprep.subr.mxu0 0.0
        %3428 = vmatpush1.msra.mxu0 0.0
        %3429 = vmatprep.subr.mxu0 0.0
        %3430 = vmatpush1.msra.mxu0 0.0
        %3431 = vmatprep.mubr.f32.mxu0 0.0
        %3432 = vmatmul.mubr.f32.gmra.mrb[0].mxu0 %v3365
        %v3433 = vpop.f32.mrb[0].mxu0
        %v3434 = vadd.f32 0.0, %v3433
        %v3435 = vpop.f32.mrb[0].mxu0
        %3436 = vdwg.mxu0
        %v3437 = vmax.f32 %v3434, 0.0
        %s3438 = scalar_lea.vmem [#allocation7], 64
        %v3439 = vld [vmem:[%s3438] sm:$0xff]
        %v3440 = vld [vmem:[%s3438 + $0x8] sm:$0xff]
        %v3441 = vld [vmem:[%s3438 + $0x10] sm:$0xff]
        %v3442 = vld [vmem:[%s3438 + $0x18] sm:$0xff]
        %v3443 = vld [vmem:[%s3438 + $0x20] sm:$0xff]
        %v3444 = vld [vmem:[%s3438 + $0x28] sm:$0xff]
        %v3445 = vld [vmem:[%s3438 + $0x30] sm:$0xff]
        %v3446 = vld [vmem:[%s3438 + $0x38] sm:$0xff]
        %v3448 = vsel %vm1852, %v3437, 0
        %3450 = vmatprep.subr.mxu0 0.0
        %3451 = vmatpush1.msra.mxu0 %v3439
        %3452 = vmatprep.subr.mxu0 0.0
        %3453 = vmatpush1.msra.mxu0 %v3440
        %3454 = vmatprep.subr.mxu0 0.0
        %3455 = vmatpush1.msra.mxu0 %v3441
        %3456 = vmatprep.subr.mxu0 0.0
        %3457 = vmatpush1.msra.mxu0 %v3442
        %3458 = vmatprep.subr.mxu0 0.0
        %3459 = vmatpush1.msra.mxu0 %v3443
        %3460 = vmatprep.subr.mxu0 0.0
        %3461 = vmatpush1.msra.mxu0 %v3444
        %3462 = vmatprep.subr.mxu0 0.0
        %3463 = vmatpush1.msra.mxu0 %v3445
        %3464 = vmatprep.subr.mxu0 0.0
        %3465 = vmatpush1.msra.mxu0 %v3446
        %3466 = vmatprep.subr.mxu0 0.0
        %3467 = vmatpush1.msra.mxu0 0.0
        %3468 = vmatprep.subr.mxu0 0.0
        %3469 = vmatpush1.msra.mxu0 0.0
        %3470 = vmatprep.subr.mxu0 0.0
        %3471 = vmatpush1.msra.mxu0 0.0
        %3472 = vmatprep.subr.mxu0 0.0
        %3473 = vmatpush1.msra.mxu0 0.0
        %3474 = vmatprep.subr.mxu0 0.0
        %3475 = vmatpush1.msra.mxu0 0.0
        %3476 = vmatprep.subr.mxu0 0.0
        %3477 = vmatpush1.msra.mxu0 0.0
        %3478 = vmatprep.subr.mxu0 0.0
        %3479 = vmatpush1.msra.mxu0 0.0
        %3480 = vmatprep.subr.mxu0 0.0
        %3481 = vmatpush1.msra.mxu0 0.0
        %3482 = vmatprep.subr.mxu0 0.0
        %3483 = vmatpush1.msra.mxu0 0.0
        %3484 = vmatprep.subr.mxu0 0.0
        %3485 = vmatpush1.msra.mxu0 0.0
        %3486 = vmatprep.subr.mxu0 0.0
        %3487 = vmatpush1.msra.mxu0 0.0
        %3488 = vmatprep.subr.mxu0 0.0
        %3489 = vmatpush1.msra.mxu0 0.0
        %3490 = vmatprep.subr.mxu0 0.0
        %3491 = vmatpush1.msra.mxu0 0.0
        %3492 = vmatprep.subr.mxu0 0.0
        %3493 = vmatpush1.msra.mxu0 0.0
        %3494 = vmatprep.subr.mxu0 0.0
        %3495 = vmatpush1.msra.mxu0 0.0
        %3496 = vmatprep.subr.mxu0 0.0
        %3497 = vmatpush1.msra.mxu0 0.0
        %3498 = vmatprep.subr.mxu0 0.0
        %3499 = vmatpush1.msra.mxu0 0.0
        %3500 = vmatprep.subr.mxu0 0.0
        %3501 = vmatpush1.msra.mxu0 0.0
        %3502 = vmatprep.subr.mxu0 0.0
        %3503 = vmatpush1.msra.mxu0 0.0
        %3504 = vmatprep.subr.mxu0 0.0
        %3505 = vmatpush1.msra.mxu0 0.0
        %3506 = vmatprep.subr.mxu0 0.0
        %3507 = vmatpush1.msra.mxu0 0.0
        %3508 = vmatprep.subr.mxu0 0.0
        %3509 = vmatpush1.msra.mxu0 0.0
        %3510 = vmatprep.subr.mxu0 0.0
        %3511 = vmatpush1.msra.mxu0 0.0
        %3512 = vmatprep.subr.mxu0 0.0
        %3513 = vmatpush1.msra.mxu0 0.0
        %3514 = vmatprep.mubr.f32.mxu0 0.0
        %3515 = vmatmul.mubr.f32.gmra.mrb[0].mxu0 %v3448
        %v3516 = vpop.f32.mrb[0].mxu0
        %v3517 = vadd.f32 0.0, %v3516
        %v3518 = vpop.f32.mrb[0].mxu0
        %3519 = vdwg.mxu0
        %v3520 = vadd.f32 %v3358, %v3517
        %v3521 = vlaneseq
        %v3522 = vshrl.u32 %v3521, 7
        %v3523 = vsub.s32 0, %v3522
        %v3524 = vrot.slane %v3520, %v3523
        %v3525 = vlaneseq
        %v3526 = vshrl.u32 %v3525, 7
        %v3527 = vsub.s32 7, %v3526
        %v3528 = vrot.slane %v3520, %v3527
        %v3530 = vrot.slane %v3520, 6
        %v3532 = vsel %vm1736, %v3524, %v3530
        %v3533 = vsel %vm1736, %v3530, %v3528
        %v3536 = vrot.slane %v3532, 1
        %v3537 = vrot.slane %v3533, 1
        %v3538 = vsel %vm1741, %v3536, %v3537
        %v3540 = vadd.f32 %v3532, %v3538
        %v3541 = vrot.slane %v3532, 2
        %v3542 = vrot.slane %v3533, 2
        %v3543 = vsel %vm1747, %v3541, %v3542
        %v3545 = vadd.f32 %v3540, %v3543
        %v3546 = vrot.slane %v3532, 3
        %v3547 = vrot.slane %v3533, 3
        %v3548 = vsel %vm1753, %v3546, %v3547
        %v3550 = vadd.f32 %v3545, %v3548
        %v3551 = vrot.slane %v3532, 4
        %v3552 = vrot.slane %v3533, 4
        %v3553 = vsel %vm459, %v3551, %v3552
        %v3555 = vadd.f32 %v3550, %v3553
        %v3556 = vmul.f32 %v3555, 0.2
        %v3557 = vsub.f32 %v3520, %v3556
        %3558 = vrot.lane.b32.xlu0 %v2588, 12
        %v3559 = vpop.permute.xlu0 %3558
        %3561 = vrot.lane.b32.xlu0 %v2909, 24
        %v3562 = vpop.permute.xlu0 %3561
        %3564 = vrot.lane.b32.xlu0 %v3157, 36
        %v3565 = vpop.permute.xlu0 %3564
        %v3567 = vsel %vm811, %v2418, %v3559
        %v3568 = vsel %vm1974, %v3567, %v3562
        %v3569 = vsel %vm1976, %v3568, %v3565
        %v3571 = vrot.slane %v3569, 1
        %3572 = vrot.lane.b32.xlu0 %v3571, 48
        %v3573 = vpop.permute.xlu0 %3572
        %v3575 = vrot.slane %v3569, 2
        %3576 = vrot.lane.b32.xlu0 %v3575, 96
        %v3577 = vpop.permute.xlu0 %3576
        %v3579 = vrot.slane %v3569, 3
        %3580 = vrot.lane.b32.xlu0 %v3579, 16
        %v3581 = vpop.permute.xlu0 %3580
        %v3583 = vrot.slane %v3569, 4
        %3584 = vrot.lane.b32.xlu0 %v3583, 64
        %v3585 = vpop.permute.xlu0 %3584
        %v3587 = vrot.slane %v3569, 5
        %3588 = vrot.lane.b32.xlu0 %v3587, 112
        %v3589 = vpop.permute.xlu0 %3588
        %v3591 = vrot.slane %v3569, 6
        %3592 = vrot.lane.b32.xlu0 %v3591, 32
        %v3593 = vpop.permute.xlu0 %3592
        %v3595 = vrot.slane %v3569, 7
        %3596 = vrot.lane.b32.xlu0 %v3595, 80
        %v3597 = vpop.permute.xlu0 %3596
        %v3599 = vsel %vm2007, %v3569, %v3573
        %v3600 = vsel %vm2009, %v3599, %v3577
        %v3601 = vsel %vm2011, %v3577, %v3581
        %v3602 = vsel %vm1852, %v3601, %v3585
        %v3603 = vsel %vm2014, %v3602, %v3589
        %v3604 = vsel %vm472, %v3589, %v3593
        %v3605 = vsel %vm2017, %v3604, %v3597
        %v3609 = vcombine.low %v3600, %v3603
        %v3611 = vunpack.c.l.s4 1966171168
        %v3612 = vunpack.c.0.s8 %v3611
        %v3613 = vlaneseq
        %v3614 = vshrl.u32 %v3613, 7
        %v3615 = vsub.s32 %v3612, %v3614
        %v3616 = vrot.slane %v3609, %v3615
        %v3618 = vunpack.c.l.s4 1966171168
        %v3619 = vunpack.c.0.s8 %v3618
        %v3620 = vlaneseq
        %v3621 = vshrl.u32 %v3620, 7
        %v3622 = vsub.s32 %v3619, %v3621
        %v3623 = vrot.slane %v3605, %v3622
        %v3624 = vcombine.low %v3616, %v3623
        %v3626 = vunpack.c.l.s4 1966171168
        %v3627 = vunpack.c.0.s8 %v3626
        %v3628 = vlaneseq
        %v3629 = vshrl.u32 %v3628, 7
        %v3630 = vsub.s32 %v3627, %v3629
        %v3631 = vrot.slane %v3624, %v3630
        %s3633 = scalar_lea.vmem %s453, 1
        %3634 = vst.msk [vmem:[%s3633] ss:$2 sm:$0x7] %vm2049, %v3631
        %v3635 = vsel %vm472, %v3557, 0.0
        %3636 = vadd.xlane.f32.xlu0 %v3635
        %v3637 = vpop.xlane.xlu0 %3636
        %v3638 = vrcp.pop 32.0
        %v3639 = vmul.f32 %v3637, %v3638
        %v3640 = vsub.f32 %v3557, %v3639
        %v3641 = vmul.f32 %v3640, %v3640
        %v3642 = vsel %vm472, %v3641, 0.0
        %3643 = vadd.xlane.f32.xlu0 %v3642
        %v3644 = vpop.xlane.xlu0 %3643
        %v3645 = vmul.f32 %v3644, %v3638
        %v3646 = vadd.f32 %v3645, 1e-05
        %v3647 = vrsqrt.pop %v3646
        %v3648 = vmul.f32 %v3640, %v3647
        %v3649 = vld [vmem:[%s8] sm:$0x1]
        %v3651 = vlaneseq
        %v3652 = vshrl.u32 %v3651, 7
        %v3653 = vsub.s32 0, %v3652
        %v3654 = vrot.slane %v3649, %v3653
        %v3656 = vmul.f32 %v3648, %v3654
        %v3657 = vld [vmem:[%s9] sm:$0x1]
        %v3659 = vlaneseq
        %v3660 = vshrl.u32 %v3659, 7
        %v3661 = vsub.s32 0, %v3660
        %v3662 = vrot.slane %v3657, %v3661
        %v3664 = vadd.f32 %v3656, %v3662
        %v3665 = vsel %vm472, %v3664, 0.0
        %v3666 = vrot.slane %v3665, 4
        %v3667 = vadd.f32 %v3665, %v3666
        %v3668 = vrot.slane %v3667, 2
        %v3669 = vadd.f32 %v3667, %v3668
        %v3670 = vrot.slane %v3669, 1
        %v3671 = vadd.f32 %v3669, %v3670
        %v3672 = vrcp.pop 8.0
        %v3673 = vmul.f32 %v3671, %v3672
        %v3674 = vsub.f32 %v3664, %v3673
        %v3676 = vrot.slane %v3674, 1
        %3677 = vrot.lane.b32.xlu0 %v3676, 32
        %v3678 = vpop.permute.xlu0 %3677
        %v3680 = vrot.slane %v3674, 2
        %3681 = vrot.lane.b32.xlu0 %v3680, 64
        %v3682 = vpop.permute.xlu0 %3681
        %v3684 = vrot.slane %v3674, 3
        %3685 = vrot.lane.b32.xlu0 %v3684, 96
        %v3686 = vpop.permute.xlu0 %3685
        %v3688 = vrot.slane %v3674, 4
        %v3690 = vrot.slane %v3674, 5
        %3691 = vrot.lane.b32.xlu0 %v3690, 32
        %v3692 = vpop.permute.xlu0 %3691
        %v3694 = vrot.slane %v3674, 6
        %3695 = vrot.lane.b32.xlu0 %v3694, 64
        %v3696 = vpop.permute.xlu0 %3695
        %v3698 = vrot.slane %v3674, 7
        %3699 = vrot.lane.b32.xlu0 %v3698, 96
        %v3700 = vpop.permute.xlu0 %3699
        %v3702 = vsel %vm472, %v3674, %v3678
        %v3703 = vsel %vm1852, %v3702, %v3682
        %v3704 = vsel %vm2009, %v3703, %v3686
        %v3705 = vsel %vm472, %v3688, %v3692
        %v3706 = vsel %vm1852, %v3705, %v3696
        %v3707 = vsel %vm2009, %v3706, %v3700
        %v3710 = vcombine.low %v3704, %v3707
        %v3712 = vunpack.c.l.s4 1966171168
        %v3713 = vunpack.c.0.s8 %v3712
        %v3714 = vlaneseq
        %v3715 = vshrl.u32 %v3714, 7
        %v3716 = vsub.s32 %v3713, %v3715
        %v3717 = vrot.slane %v3710, %v3716
        %v3719 = vunpack.c.l.s4 1966171168
        %v3720 = vunpack.c.0.s8 %v3719
        %v3721 = vlaneseq
        %v3722 = vshrl.u32 %v3721, 7
        %v3723 = vsub.s32 %v3720, %v3722
        %v3724 = vrot.slane %v3717, %v3723
        %vm3726 = vcmp.lt.s32.totalorder %v2046, 256
        %vm3727 = vmand %vm2047, %vm3726
        %3728 = vst.msk [vmem:[%s448] sm:$0x3] %vm3727, %v3724
        %p3729 = scmp.lt.s32.totalorder %s26, 1
        %s3730 = scalar_select %p3729, %s26, 1
        %s3731 = smul.addr %s3730, 2
        %s3732 = scalar_lea.vmem %s10, %s3731
        %p3733 = scmp.lt.s32.totalorder %s26, 1
        %s3734 = scalar_select %p3733, %s26, 1
        %s3735 = smul.addr %s3734, 3
        %s3736 = smul.addr %s3735, 2
        %s3737 = scalar_lea.vmem %s11, %s3736
        // Predicated region
        $region77: #{encoder_forward.1} parent=59 // pred_check
          %p3738 = pneg %p259
        $region78: #{encoder_forward.1} parent=59 // pred_check_branch
          %3740 = sbr.rel (%p3738) target = $region80
        $region79: #{encoder_forward.1} parent=59 // pred_region
          _
        $region80: #{encoder_forward.1} parent=59 // pred_fallthru
          _
        // Predicated region
        $region81: #{encoder_forward.1} parent=59 // pred_check
          %p3741 = pneg %p285
        $region82: #{encoder_forward.1} parent=59 // pred_check_branch
          %3743 = sbr.rel (%p3741) target = $region84
        $region83: #{encoder_forward.1} parent=59 // pred_region
          _
        $region84: #{encoder_forward.1} parent=59 // pred_fallthru
          _
      $region60: #{encoder_forward.1} parent=5 // pred_fallthru
        _
      %p3744 = scmp.le.s32.totalorder 2, %s21
      // Predicated region
      $region85: #{encoder_forward.1} parent=5 // pred_check
        %p3745 = pneg %p3744
      $region86: #{encoder_forward.1} parent=5 // pred_check_branch
        %3747 = sbr.rel (%p3745) target = $region88
      $region87: #{encoder_forward.1} parent=5 // pred_region
        %s3748 = ssub.s32 %s21, 2
        // Predicated region
        $region89: #{encoder_forward.1} parent=87 // pred_check
          %p3749 = pneg %p265
        $region90: #{encoder_forward.1} parent=87 // pred_check_branch
          %3751 = sbr.rel (%p3749) target = $region92
        $region91: #{encoder_forward.1} parent=87 // pred_region
          %p3752 = scmp.lt.s32.totalorder %s27, 1
          %s3753 = scalar_select %p3752, %s27, 1
          %s3754 = smul.addr %s3753, 2
          %s3755 = scalar_lea.vmem %s10, %s3754
        $region92: #{encoder_forward.1} parent=87 // pred_fallthru
          _
        // Predicated region
        $region93: #{encoder_forward.1} parent=87 // pred_check
          %p3756 = pneg %p291
        $region94: #{encoder_forward.1} parent=87 // pred_check_branch
          %3758 = sbr.rel (%p3756) target = $region96
        $region95: #{encoder_forward.1} parent=87 // pred_region
          %p3759 = scmp.lt.s32.totalorder %s27, 1
          %s3760 = scalar_select %p3759, %s27, 1
          %s3761 = smul.addr %s3760, 3
          %s3762 = smul.addr %s3761, 2
          %s3763 = scalar_lea.vmem %s11, %s3762
        $region96: #{encoder_forward.1} parent=87 // pred_fallthru
          _
      $region88: #{encoder_forward.1} parent=5 // pred_fallthru
        _
    $region6: #{encoder_forward.1} parent=1 // loop_footer
      %s25 = sadd.s32 1, %s21
    $region7: #{encoder_forward.1} parent=1 // loop_footer_branch
      %20 = sbr.rel target = $region3
    $region8: #{encoder_forward.1} parent=1 // loop_exit
      _
    %3764 = vsyncpa [#allocation3], 1
    %s3765 = scalar_lea.sflag [#allocation3], 1
    %3766 = vsyncpa %s3765, 1
    %3767 = vsyncpa [#allocation5], 1
    %3768 = vsyncpa [#allocation8], 1

</llo_original>
